<compile_context>
chip_gen: v6e
topology: v6e:2x2x1
jax: 0.10.0
libtpu: 0.0.40
codegen_flags: <defaults>
</compile_context>

<pallas_src>
import functools

import jax
import jax.numpy as jnp
from jax import lax
from jax.experimental import pallas as pl
from jax.experimental.pallas import tpu as pltpu


_LEAKY_SLOPE = 0.01   # nn.LeakyReLU() default negative_slope
_NORM_EPS = 1e-12     # F.normalize default eps


def _compiler_params(num_axes):
    return pltpu.CompilerParams(
        dimension_semantics=("parallel",) * num_axes,
        vmem_limit_bytes=48 * 1024 * 1024,
    )


# ---------------------------------------------------------------------------
# Fused conv3x3 + bias + LeakyReLU + 2x2 max-pool (one image per grid step)
# ---------------------------------------------------------------------------
def _conv_lrelu_pool_kernel(x_ref, w_ref, b_ref, o_ref, *, H, W, cout):
    """x_ref : (H+2, (W+2)*Cin)  padded input image, lanes = (w, cin)  (f32)
       w_ref : (3, (W+2)*Cin, W*Cout) banded per-kh matmul weights     (bf16)
       b_ref : (1, W*Cout)  bias tiled over W                          (f32)
       o_ref : (H//2 + 2, (W//2 + 2)*Cout)  pooled output, already padded
               with a zero halo and (w, c)-flattened for the next layer."""
    Ho, Wo = H // 2, W // 2

    # 3 row-banded matmuls accumulate the full conv output (H, W*Cout) in f32.
    acc = jnp.zeros((H, W * cout), jnp.float32)
    for kh in range(3):
        a = x_ref[kh:kh + H, :].astype(jnp.bfloat16)
        acc += jnp.dot(a, w_ref[kh], preferred_element_type=jnp.float32)

    acc = acc + b_ref[...]                                   # bias (f32)
    acc = jnp.where(acc >= 0.0, acc, _LEAKY_SLOPE * acc)     # LeakyReLU (f32)

    # Zero the whole padded output block, then write the pooled interior.
    o_ref[...] = jnp.zeros(o_ref.shape, o_ref.dtype)
    for ho in range(Ho):
        row = jnp.maximum(acc[2 * ho:2 * ho + 1, :],
                          acc[2 * ho + 1:2 * ho + 2, :])     # (1, W*Cout)
        for wo in range(Wo):
            p = jnp.maximum(row[:, (2 * wo) * cout:(2 * wo + 1) * cout],
                            row[:, (2 * wo + 1) * cout:(2 * wo + 2) * cout])
            o_ref[ho + 1:ho + 2, (wo + 1) * cout:(wo + 2) * cout] = (
                p.astype(o_ref.dtype))


def conv_lrelu_pool(xp, w_banded, b_tiled, *, H, W, cout):
    """xp: (N, H+2, (W+2)*Cin) padded-flat activation -> (N, H//2+2, (W//2+2)*Cout)."""
    n, hp, wpc = xp.shape
    Ho, Wo = H // 2, W // 2
    out_cols = (Wo + 2) * cout
    kern = functools.partial(_conv_lrelu_pool_kernel, H=H, W=W, cout=cout)
    return pl.pallas_call(
        kern,
        out_shape=jax.ShapeDtypeStruct((n, Ho + 2, out_cols), jnp.float32),
        grid=(n,),
        in_specs=[
            pl.BlockSpec((None, hp, wpc), lambda i: (i, 0, 0)),
            pl.BlockSpec(w_banded.shape, lambda i: (0, 0, 0)),
            pl.BlockSpec(b_tiled.shape, lambda i: (0, 0)),
        ],
        out_specs=pl.BlockSpec((None, Ho + 2, out_cols), lambda i: (i, 0, 0)),
        compiler_params=_compiler_params(1),
    )(xp, w_banded, b_tiled)


# ---------------------------------------------------------------------------
# Fused tail: fc -> L2 normalize -> proj Linear+ReLU -> proj Linear
# ---------------------------------------------------------------------------
def _tail_kernel(x_ref, fcw_ref, fcb_ref, w1_ref, b1_ref, w2_ref, b2_ref,
                 z_ref, p_ref):
    # encoder fc (MXU in bf16, f32 accumulate)
    z = jnp.dot(x_ref[...].astype(jnp.bfloat16), fcw_ref[...],
                preferred_element_type=jnp.float32) + fcb_ref[...]
    # F.normalize(dim=1): x / max(||x||, eps)  ==  x * rsqrt(max(||x||^2, eps^2))
    ss = jnp.sum(z * z, axis=1, keepdims=True)
    z = z * lax.rsqrt(jnp.maximum(ss, _NORM_EPS * _NORM_EPS))
    z_ref[...] = z.astype(z_ref.dtype)
    # projection head: Linear -> ReLU -> Linear
    h = jnp.dot(z.astype(jnp.bfloat16), w1_ref[...],
                preferred_element_type=jnp.float32) + b1_ref[...]
    h = jnp.maximum(h, 0.0)
    p = jnp.dot(h.astype(jnp.bfloat16), w2_ref[...],
                preferred_element_type=jnp.float32) + b2_ref[...]
    p_ref[...] = p.astype(p_ref.dtype)


def encoder_tail(x, fc_w, fc_b, w1, b1, w2, b2):
    b, enc = x.shape
    e = fc_w.shape[1]
    pdim = w2.shape[1]
    bm = min(b, 256)
    if b % bm != 0:
        bm = b
    grid_m = b // bm
    return pl.pallas_call(
        _tail_kernel,
        out_shape=(jax.ShapeDtypeStruct((b, e), jnp.float32),
                   jax.ShapeDtypeStruct((b, pdim), jnp.float32)),
        grid=(grid_m,),
        in_specs=[
            pl.BlockSpec((bm, enc), lambda i: (i, 0)),
            pl.BlockSpec(fc_w.shape, lambda i: (0, 0)),
            pl.BlockSpec(fc_b.shape, lambda i: (0, 0)),
            pl.BlockSpec(w1.shape, lambda i: (0, 0)),
            pl.BlockSpec(b1.shape, lambda i: (0, 0)),
            pl.BlockSpec(w2.shape, lambda i: (0, 0)),
            pl.BlockSpec(b2.shape, lambda i: (0, 0)),
        ],
        out_specs=(pl.BlockSpec((bm, e), lambda i: (i, 0)),
                   pl.BlockSpec((bm, pdim), lambda i: (i, 0))),
        compiler_params=_compiler_params(1),
    )(x, fc_w, fc_b, w1, b1, w2, b2)


# ---------------------------------------------------------------------------
# Parameter construction / preparation
# ---------------------------------------------------------------------------
def init_params(key, input_channels=3, input_patch_size=16, num_layers=4,
                num_filters=8, embedding_size=32, projection_dim=16):
    """Raw parameters in PyTorch layouts (conv: (Cout, Cin, 3, 3))."""
    params = {"conv": []}
    cin, nf, sp = input_channels, num_filters, input_patch_size
    for _ in range(num_layers):
        key, k1, k2 = jax.random.split(key, 3)
        w = 0.1 * jax.random.normal(k1, (nf, cin, 3, 3), jnp.float32)
        b = 0.1 * jax.random.normal(k2, (nf,), jnp.float32)
        params["conv"].append((w, b))
        cin, nf, sp = nf, nf * 2, sp // 2
    enc_size = cin * sp * sp
    key, k1, k2, k3, k4, k5, k6 = jax.random.split(key, 7)
    # linear weights stored as (in, out) so no transpose is needed in-kernel
    params["fc"] = (0.1 * jax.random.normal(k1, (enc_size, embedding_size), jnp.float32),
                    0.1 * jax.random.normal(k2, (embedding_size,), jnp.float32))
    params["proj1"] = (0.1 * jax.random.normal(k3, (embedding_size, embedding_size), jnp.float32),
                       0.1 * jax.random.normal(k4, (embedding_size,), jnp.float32))
    params["proj2"] = (0.1 * jax.random.normal(k5, (embedding_size, projection_dim), jnp.float32),
                       0.1 * jax.random.normal(k6, (projection_dim,), jnp.float32))
    return params


def _make_banded_weights(w, W):
    """w: torch-layout conv weight (Cout, Cin, 3, 3) ->
       (3, (W+2)*Cin, W*Cout) bf16 banded matmul weights (one band per kh).

       band[kh][x*Cin + ci, w_*Cout + co] = w[co, ci, kh, x - w_]  if 0<=x-w_<=2."""
    cout, cin = w.shape[0], w.shape[1]
    wp = W + 2
    wk = jnp.transpose(w, (2, 3, 1, 0))                      # (kh, kw, Cin, Cout)
    delta = jnp.arange(wp)[:, None] - jnp.arange(W)[None, :]  # (Wp, W)
    bw = jnp.zeros((3, wp, cin, W, cout), jnp.float32)
    for kw in range(3):
        mask = (delta == kw).astype(jnp.float32)             # (Wp, W)
        bw = bw + mask[None, :, None, :, None] * wk[:, kw][:, None, :, None, :]
    return bw.reshape(3, wp * cin, W * cout).astype(jnp.bfloat16)


def prepare_params(params, input_patch_size):
    """Convert raw params into kernel-ready layouts (banded conv weights,
    W-tiled biases, bf16 MXU weights, (1, out) f32 biases)."""
    sp = input_patch_size
    conv = []
    for (w, b) in params["conv"]:
        cout = w.shape[0]
        conv.append((_make_banded_weights(w, sp),
                     jnp.tile(b, sp).reshape(1, sp * cout).astype(jnp.float32)))
        sp //= 2

    def lin(w, b):
        return w.astype(jnp.bfloat16), b.reshape(1, -1).astype(jnp.float32)

    return {"conv": conv,
            "fc": lin(*params["fc"]),
            "proj1": lin(*params["proj1"]),
            "proj2": lin(*params["proj2"])}


# ---------------------------------------------------------------------------
# Forward pass
# ---------------------------------------------------------------------------
def simclr_forward(prepped, x_nchw):
    """x_nchw: (N, C, H, W) float32 -> (z, projection), encoder_type='cnn' path."""
    n = x_nchw.shape[0]
    # One-time input prep: NCHW -> NHWC, pad spatial by 1, flatten (w, c) into lanes.
    x = jnp.transpose(x_nchw, (0, 2, 3, 1))
    x = jnp.pad(x, ((0, 0), (1, 1), (1, 1), (0, 0)))
    x = x.reshape(n, x.shape[1], x.shape[2] * x.shape[3])

    cout = None
    for (wb, bt) in prepped["conv"]:
        H = x.shape[1] - 2                 # square patches: W == H
        cout = bt.shape[1] // H
        x = conv_lrelu_pool(x, wb, bt, H=H, W=H, cout=cout)

    # Strip the zero halo and flatten exactly like torch: x.view(N, -1) on NCHW.
    hf = x.shape[1] - 2
    x = x.reshape(n, hf + 2, hf + 2, cout)[:, 1:1 + hf, 1:1 + hf, :]
    x = jnp.transpose(x, (0, 3, 1, 2)).reshape(n, -1)

    fc_w, fc_b = prepped["fc"]
    w1, b1 = prepped["proj1"]
    w2, b2 = prepped["proj2"]
    z, projection = encoder_tail(x, fc_w, fc_b, w1, b1, w2, b2)
    return z, projection


if __name__ == "__main__":
    key = jax.random.PRNGKey(0)
    kp, kx = jax.random.split(key)

    # batch=2, channels=3, patch=16, num_layers=4 (16 -> 8 -> 4 -> 2 -> 1 spatial),
    # num_filters=8 (8,16,32,64), embedding_size=32, projection_dim=16.
    params = init_params(kp, input_channels=3, input_patch_size=16,
                         num_layers=4, num_filters=8,
                         embedding_size=32, projection_dim=16)
    prepped = prepare_params(params, input_patch_size=16)
    x = jax.random.normal(kx, (2, 3, 16, 16), jnp.float32)

    fwd = jax.jit(simclr_forward)
    z, projection = fwd(prepped, x)
    jax.block_until_ready((z, projection))

    assert z.shape == (2, 32) and projection.shape == (2, 16)
    print("KERNEL_OK")
</pallas_src>

<mosaic_0001>
module attributes {stable_mosaic.version = 11 : i64} {
  func.func @_conv_lrelu_pool_kernel(%arg0: i32, %arg1: memref<1x18x54xf32, #tpu.memory_space<vmem>>, %arg2: memref<3x54x128xbf16, #tpu.memory_space<vmem>>, %arg3: memref<1x128xf32, #tpu.memory_space<vmem>>, %arg4: memref<1x10x80xf32, #tpu.memory_space<vmem>>) attributes {dimension_semantics = [#tpu.dimension_semantics<parallel>], iteration_bounds = array<i64: 2>, scalar_prefetch = 0 : i64, scratch_operands = 0 : i64, tpu.core_type = #tpu.core_type<tc>, window_params = [{transform_indices = @transform_0, window_bounds = array<i64: 1, 18, 54>}, {pipeline_mode = #tpu.pipeline_mode<synchronous>, transform_indices = @transform_1, window_bounds = array<i64: 3, 54, 128>}, {pipeline_mode = #tpu.pipeline_mode<synchronous>, transform_indices = @transform_2, window_bounds = array<i64: 1, 128>}, {transform_indices = @transform_3, window_bounds = array<i64: 1, 10, 80>}]} {
    %cst = arith.constant 0.000000e+00 : f32
    %0 = vector.broadcast %cst : f32 to vector<16x128xf32>
    %c0 = arith.constant 0 : index
    %c0_0 = arith.constant 0 : index
    %c0_1 = arith.constant 0 : index
    %1 = vector.load %arg1[%c0, %c0_0, %c0_1] : memref<1x18x54xf32, #tpu.memory_space<vmem>>, vector<1x16x54xf32>
    %2 = vector.shape_cast %1 : vector<1x16x54xf32> to vector<16x54xf32>
    %3 = arith.truncf %2 : vector<16x54xf32> to vector<16x54xbf16>
    %c0_2 = arith.constant 0 : index
    %c0_3 = arith.constant 0 : index
    %c0_4 = arith.constant 0 : index
    %4 = vector.load %arg2[%c0_2, %c0_3, %c0_4] : memref<3x54x128xbf16, #tpu.memory_space<vmem>>, vector<1x54x128xbf16>
    %5 = vector.shape_cast %4 : vector<1x54x128xbf16> to vector<54x128xbf16>
    %cst_5 = arith.constant dense<0.000000e+00> : vector<16x128xf32>
    %6 = tpu.matmul %3, %5, %cst_5 {dimension_numbers = #tpu.dot_dimension_numbers<[1], [0], [0], [1], [0, 0, 1, 1], [], []>} : vector<16x54xbf16>, vector<54x128xbf16>, vector<16x128xf32> -> vector<16x128xf32>
    %7 = arith.addf %0, %6 : vector<16x128xf32>
    %c0_6 = arith.constant 0 : index
    %c1 = arith.constant 1 : index
    %c0_7 = arith.constant 0 : index
    %8 = vector.load %arg1[%c0_6, %c1, %c0_7] : memref<1x18x54xf32, #tpu.memory_space<vmem>>, vector<1x16x54xf32>
    %9 = vector.shape_cast %8 : vector<1x16x54xf32> to vector<16x54xf32>
    %10 = arith.truncf %9 : vector<16x54xf32> to vector<16x54xbf16>
    %c1_8 = arith.constant 1 : index
    %c0_9 = arith.constant 0 : index
    %c0_10 = arith.constant 0 : index
    %11 = vector.load %arg2[%c1_8, %c0_9, %c0_10] : memref<3x54x128xbf16, #tpu.memory_space<vmem>>, vector<1x54x128xbf16>
    %12 = vector.shape_cast %11 : vector<1x54x128xbf16> to vector<54x128xbf16>
    %cst_11 = arith.constant dense<0.000000e+00> : vector<16x128xf32>
    %13 = tpu.matmul %10, %12, %cst_11 {dimension_numbers = #tpu.dot_dimension_numbers<[1], [0], [0], [1], [0, 0, 1, 1], [], []>} : vector<16x54xbf16>, vector<54x128xbf16>, vector<16x128xf32> -> vector<16x128xf32>
    %14 = arith.addf %7, %13 : vector<16x128xf32>
    %c0_12 = arith.constant 0 : index
    %c2 = arith.constant 2 : index
    %c0_13 = arith.constant 0 : index
    %15 = vector.load %arg1[%c0_12, %c2, %c0_13] : memref<1x18x54xf32, #tpu.memory_space<vmem>>, vector<1x16x54xf32>
    %16 = vector.shape_cast %15 : vector<1x16x54xf32> to vector<16x54xf32>
    %17 = arith.truncf %16 : vector<16x54xf32> to vector<16x54xbf16>
    %c2_14 = arith.constant 2 : index
    %c0_15 = arith.constant 0 : index
    %c0_16 = arith.constant 0 : index
    %18 = vector.load %arg2[%c2_14, %c0_15, %c0_16] : memref<3x54x128xbf16, #tpu.memory_space<vmem>>, vector<1x54x128xbf16>
    %19 = vector.shape_cast %18 : vector<1x54x128xbf16> to vector<54x128xbf16>
    %cst_17 = arith.constant dense<0.000000e+00> : vector<16x128xf32>
    %20 = tpu.matmul %17, %19, %cst_17 {dimension_numbers = #tpu.dot_dimension_numbers<[1], [0], [0], [1], [0, 0, 1, 1], [], []>} : vector<16x54xbf16>, vector<54x128xbf16>, vector<16x128xf32> -> vector<16x128xf32>
    %21 = arith.addf %14, %20 : vector<16x128xf32>
    %c0_18 = arith.constant 0 : index
    %c0_19 = arith.constant 0 : index
    %22 = vector.load %arg3[%c0_18, %c0_19] : memref<1x128xf32, #tpu.memory_space<vmem>>, vector<1x128xf32>
    %23 = vector.broadcast %22 : vector<1x128xf32> to vector<16x128xf32>
    %24 = arith.addf %21, %23 : vector<16x128xf32>
    %cst_20 = arith.constant 0.000000e+00 : f32
    %25 = vector.broadcast %cst_20 : f32 to vector<16x128xf32>
    %26 = arith.cmpf oge, %24, %25 : vector<16x128xf32>
    %cst_21 = arith.constant 0.00999999977 : f32
    %27 = vector.broadcast %cst_21 : f32 to vector<16x128xf32>
    %28 = arith.mulf %27, %24 : vector<16x128xf32>
    %29 = arith.select %26, %24, %28 : vector<16x128xi1>, vector<16x128xf32>
    %cst_22 = arith.constant 0.000000e+00 : f32
    %30 = vector.broadcast %cst_22 : f32 to vector<10x80xf32>
    %c0_23 = arith.constant 0 : index
    %c0_24 = arith.constant 0 : index
    %c0_25 = arith.constant 0 : index
    %31 = vector.load %arg4[%c0_23, %c0_24, %c0_25] : memref<1x10x80xf32, #tpu.memory_space<vmem>>, vector<1x10x80xf32>
    %32 = vector.shape_cast %31 : vector<1x10x80xf32> to vector<10x80xf32>
    %33 = vector.shape_cast %30 : vector<10x80xf32> to vector<1x10x80xf32>
    tpu.vector_store %arg4[%c0_23, %c0_24, %c0_25], %33 {strides = array<i32>} : memref<1x10x80xf32, #tpu.memory_space<vmem>>, vector<1x10x80xf32>,
    %34 = vector.extract_strided_slice %29 {offsets = [0, 0], sizes = [1, 128], strides = [1, 1]} : vector<16x128xf32> to vector<1x128xf32>
    %35 = vector.extract_strided_slice %29 {offsets = [1, 0], sizes = [1, 128], strides = [1, 1]} : vector<16x128xf32> to vector<1x128xf32>
    %36 = arith.maximumf %34, %35 : vector<1x128xf32>
    %37 = vector.extract_strided_slice %36 {offsets = [0, 0], sizes = [1, 8], strides = [1, 1]} : vector<1x128xf32> to vector<1x8xf32>
    %38 = vector.extract_strided_slice %36 {offsets = [0, 8], sizes = [1, 8], strides = [1, 1]} : vector<1x128xf32> to vector<1x8xf32>
    %39 = arith.maximumf %37, %38 : vector<1x8xf32>
    %c0_26 = arith.constant 0 : index
    %c1_27 = arith.constant 1 : index
    %c8 = arith.constant 8 : index
    %40 = vector.load %arg4[%c0_26, %c1_27, %c8] : memref<1x10x80xf32, #tpu.memory_space<vmem>>, vector<1x1x8xf32>
    %41 = vector.shape_cast %40 : vector<1x1x8xf32> to vector<1x8xf32>
    %42 = vector.shape_cast %39 : vector<1x8xf32> to vector<1x1x8xf32>
    tpu.vector_store %arg4[%c0_26, %c1_27, %c8], %42 {strides = array<i32>} : memref<1x10x80xf32, #tpu.memory_space<vmem>>, vector<1x1x8xf32>,
    %43 = vector.extract_strided_slice %36 {offsets = [0, 16], sizes = [1, 8], strides = [1, 1]} : vector<1x128xf32> to vector<1x8xf32>
    %44 = vector.extract_strided_slice %36 {offsets = [0, 24], sizes = [1, 8], strides = [1, 1]} : vector<1x128xf32> to vector<1x8xf32>
    %45 = arith.maximumf %43, %44 : vector<1x8xf32>
    %c0_28 = arith.constant 0 : index
    %c1_29 = arith.constant 1 : index
    %c16 = arith.constant 16 : index
    %46 = vector.load %arg4[%c0_28, %c1_29, %c16] : memref<1x10x80xf32, #tpu.memory_space<vmem>>, vector<1x1x8xf32>
    %47 = vector.shape_cast %46 : vector<1x1x8xf32> to vector<1x8xf32>
    %48 = vector.shape_cast %45 : vector<1x8xf32> to vector<1x1x8xf32>
    tpu.vector_store %arg4[%c0_28, %c1_29, %c16], %48 {strides = array<i32>} : memref<1x10x80xf32, #tpu.memory_space<vmem>>, vector<1x1x8xf32>,
    %49 = vector.extract_strided_slice %36 {offsets = [0, 32], sizes = [1, 8], strides = [1, 1]} : vector<1x128xf32> to vector<1x8xf32>
    %50 = vector.extract_strided_slice %36 {offsets = [0, 40], sizes = [1, 8], strides = [1, 1]} : vector<1x128xf32> to vector<1x8xf32>
    %51 = arith.maximumf %49, %50 : vector<1x8xf32>
    %c0_30 = arith.constant 0 : index
    %c1_31 = arith.constant 1 : index
    %c24 = arith.constant 24 : index
    %52 = vector.load %arg4[%c0_30, %c1_31, %c24] : memref<1x10x80xf32, #tpu.memory_space<vmem>>, vector<1x1x8xf32>
    %53 = vector.shape_cast %52 : vector<1x1x8xf32> to vector<1x8xf32>
    %54 = vector.shape_cast %51 : vector<1x8xf32> to vector<1x1x8xf32>
    tpu.vector_store %arg4[%c0_30, %c1_31, %c24], %54 {strides = array<i32>} : memref<1x10x80xf32, #tpu.memory_space<vmem>>, vector<1x1x8xf32>,
    %55 = vector.extract_strided_slice %36 {offsets = [0, 48], sizes = [1, 8], strides = [1, 1]} : vector<1x128xf32> to vector<1x8xf32>
    %56 = vector.extract_strided_slice %36 {offsets = [0, 56], sizes = [1, 8], strides = [1, 1]} : vector<1x128xf32> to vector<1x8xf32>
    %57 = arith.maximumf %55, %56 : vector<1x8xf32>
    %c0_32 = arith.constant 0 : index
    %c1_33 = arith.constant 1 : index
    %c32 = arith.constant 32 : index
    %58 = vector.load %arg4[%c0_32, %c1_33, %c32] : memref<1x10x80xf32, #tpu.memory_space<vmem>>, vector<1x1x8xf32>
    %59 = vector.shape_cast %58 : vector<1x1x8xf32> to vector<1x8xf32>
    %60 = vector.shape_cast %57 : vector<1x8xf32> to vector<1x1x8xf32>
    tpu.vector_store %arg4[%c0_32, %c1_33, %c32], %60 {strides = array<i32>} : memref<1x10x80xf32, #tpu.memory_space<vmem>>, vector<1x1x8xf32>,
    %61 = vector.extract_strided_slice %36 {offsets = [0, 64], sizes = [1, 8], strides = [1, 1]} : vector<1x128xf32> to vector<1x8xf32>
    %62 = vector.extract_strided_slice %36 {offsets = [0, 72], sizes = [1, 8], strides = [1, 1]} : vector<1x128xf32> to vector<1x8xf32>
    %63 = arith.maximumf %61, %62 : vector<1x8xf32>
    %c0_34 = arith.constant 0 : index
    %c1_35 = arith.constant 1 : index
    %c40 = arith.constant 40 : index
    %64 = vector.load %arg4[%c0_34, %c1_35, %c40] : memref<1x10x80xf32, #tpu.memory_space<vmem>>, vector<1x1x8xf32>
    %65 = vector.shape_cast %64 : vector<1x1x8xf32> to vector<1x8xf32>
    %66 = vector.shape_cast %63 : vector<1x8xf32> to vector<1x1x8xf32>
    tpu.vector_store %arg4[%c0_34, %c1_35, %c40], %66 {strides = array<i32>} : memref<1x10x80xf32, #tpu.memory_space<vmem>>, vector<1x1x8xf32>,
    %67 = vector.extract_strided_slice %36 {offsets = [0, 80], sizes = [1, 8], strides = [1, 1]} : vector<1x128xf32> to vector<1x8xf32>
    %68 = vector.extract_strided_slice %36 {offsets = [0, 88], sizes = [1, 8], strides = [1, 1]} : vector<1x128xf32> to vector<1x8xf32>
    %69 = arith.maximumf %67, %68 : vector<1x8xf32>
    %c0_36 = arith.constant 0 : index
    %c1_37 = arith.constant 1 : index
    %c48 = arith.constant 48 : index
    %70 = vector.load %arg4[%c0_36, %c1_37, %c48] : memref<1x10x80xf32, #tpu.memory_space<vmem>>, vector<1x1x8xf32>
    %71 = vector.shape_cast %70 : vector<1x1x8xf32> to vector<1x8xf32>
    %72 = vector.shape_cast %69 : vector<1x8xf32> to vector<1x1x8xf32>
    tpu.vector_store %arg4[%c0_36, %c1_37, %c48], %72 {strides = array<i32>} : memref<1x10x80xf32, #tpu.memory_space<vmem>>, vector<1x1x8xf32>,
    %73 = vector.extract_strided_slice %36 {offsets = [0, 96], sizes = [1, 8], strides = [1, 1]} : vector<1x128xf32> to vector<1x8xf32>
    %74 = vector.extract_strided_slice %36 {offsets = [0, 104], sizes = [1, 8], strides = [1, 1]} : vector<1x128xf32> to vector<1x8xf32>
    %75 = arith.maximumf %73, %74 : vector<1x8xf32>
    %c0_38 = arith.constant 0 : index
    %c1_39 = arith.constant 1 : index
    %c56 = arith.constant 56 : index
    %76 = vector.load %arg4[%c0_38, %c1_39, %c56] : memref<1x10x80xf32, #tpu.memory_space<vmem>>, vector<1x1x8xf32>
    %77 = vector.shape_cast %76 : vector<1x1x8xf32> to vector<1x8xf32>
    %78 = vector.shape_cast %75 : vector<1x8xf32> to vector<1x1x8xf32>
    tpu.vector_store %arg4[%c0_38, %c1_39, %c56], %78 {strides = array<i32>} : memref<1x10x80xf32, #tpu.memory_space<vmem>>, vector<1x1x8xf32>,
    %79 = vector.extract_strided_slice %36 {offsets = [0, 112], sizes = [1, 8], strides = [1, 1]} : vector<1x128xf32> to vector<1x8xf32>
    %80 = vector.extract_strided_slice %36 {offsets = [0, 120], sizes = [1, 8], strides = [1, 1]} : vector<1x128xf32> to vector<1x8xf32>
    %81 = arith.maximumf %79, %80 : vector<1x8xf32>
    %c0_40 = arith.constant 0 : index
    %c1_41 = arith.constant 1 : index
    %c64 = arith.constant 64 : index
    %82 = vector.load %arg4[%c0_40, %c1_41, %c64] : memref<1x10x80xf32, #tpu.memory_space<vmem>>, vector<1x1x8xf32>
    %83 = vector.shape_cast %82 : vector<1x1x8xf32> to vector<1x8xf32>
    %84 = vector.shape_cast %81 : vector<1x8xf32> to vector<1x1x8xf32>
    tpu.vector_store %arg4[%c0_40, %c1_41, %c64], %84 {strides = array<i32>} : memref<1x10x80xf32, #tpu.memory_space<vmem>>, vector<1x1x8xf32>,
    %85 = vector.extract_strided_slice %29 {offsets = [2, 0], sizes = [1, 128], strides = [1, 1]} : vector<16x128xf32> to vector<1x128xf32>
    %86 = vector.extract_strided_slice %29 {offsets = [3, 0], sizes = [1, 128], strides = [1, 1]} : vector<16x128xf32> to vector<1x128xf32>
    %87 = arith.maximumf %85, %86 : vector<1x128xf32>
    %88 = vector.extract_strided_slice %87 {offsets = [0, 0], sizes = [1, 8], strides = [1, 1]} : vector<1x128xf32> to vector<1x8xf32>
    %89 = vector.extract_strided_slice %87 {offsets = [0, 8], sizes = [1, 8], strides = [1, 1]} : vector<1x128xf32> to vector<1x8xf32>
    %90 = arith.maximumf %88, %89 : vector<1x8xf32>
    %c0_42 = arith.constant 0 : index
    %c2_43 = arith.constant 2 : index
    %c8_44 = arith.constant 8 : index
    %91 = vector.load %arg4[%c0_42, %c2_43, %c8_44] : memref<1x10x80xf32, #tpu.memory_space<vmem>>, vector<1x1x8xf32>
    %92 = vector.shape_cast %91 : vector<1x1x8xf32> to vector<1x8xf32>
    %93 = vector.shape_cast %90 : vector<1x8xf32> to vector<1x1x8xf32>
    tpu.vector_store %arg4[%c0_42, %c2_43, %c8_44], %93 {strides = array<i32>} : memref<1x10x80xf32, #tpu.memory_space<vmem>>, vector<1x1x8xf32>,
    %94 = vector.extract_strided_slice %87 {offsets = [0, 16], sizes = [1, 8], strides = [1, 1]} : vector<1x128xf32> to vector<1x8xf32>
    %95 = vector.extract_strided_slice %87 {offsets = [0, 24], sizes = [1, 8], strides = [1, 1]} : vector<1x128xf32> to vector<1x8xf32>
    %96 = arith.maximumf %94, %95 : vector<1x8xf32>
    %c0_45 = arith.constant 0 : index
    %c2_46 = arith.constant 2 : index
    %c16_47 = arith.constant 16 : index
    %97 = vector.load %arg4[%c0_45, %c2_46, %c16_47] : memref<1x10x80xf32, #tpu.memory_space<vmem>>, vector<1x1x8xf32>
    %98 = vector.shape_cast %97 : vector<1x1x8xf32> to vector<1x8xf32>
    %99 = vector.shape_cast %96 : vector<1x8xf32> to vector<1x1x8xf32>
    tpu.vector_store %arg4[%c0_45, %c2_46, %c16_47], %99 {strides = array<i32>} : memref<1x10x80xf32, #tpu.memory_space<vmem>>, vector<1x1x8xf32>,
    %100 = vector.extract_strided_slice %87 {offsets = [0, 32], sizes = [1, 8], strides = [1, 1]} : vector<1x128xf32> to vector<1x8xf32>
    %101 = vector.extract_strided_slice %87 {offsets = [0, 40], sizes = [1, 8], strides = [1, 1]} : vector<1x128xf32> to vector<1x8xf32>
    %102 = arith.maximumf %100, %101 : vector<1x8xf32>
    %c0_48 = arith.constant 0 : index
    %c2_49 = arith.constant 2 : index
    %c24_50 = arith.constant 24 : index
    %103 = vector.load %arg4[%c0_48, %c2_49, %c24_50] : memref<1x10x80xf32, #tpu.memory_space<vmem>>, vector<1x1x8xf32>
    %104 = vector.shape_cast %103 : vector<1x1x8xf32> to vector<1x8xf32>
    %105 = vector.shape_cast %102 : vector<1x8xf32> to vector<1x1x8xf32>
    tpu.vector_store %arg4[%c0_48, %c2_49, %c24_50], %105 {strides = array<i32>} : memref<1x10x80xf32, #tpu.memory_space<vmem>>, vector<1x1x8xf32>,
    %106 = vector.extract_strided_slice %87 {offsets = [0, 48], sizes = [1, 8], strides = [1, 1]} : vector<1x128xf32> to vector<1x8xf32>
    %107 = vector.extract_strided_slice %87 {offsets = [0, 56], sizes = [1, 8], strides = [1, 1]} : vector<1x128xf32> to vector<1x8xf32>
    %108 = arith.maximumf %106, %107 : vector<1x8xf32>
    %c0_51 = arith.constant 0 : index
    %c2_52 = arith.constant 2 : index
    %c32_53 = arith.constant 32 : index
    %109 = vector.load %arg4[%c0_51, %c2_52, %c32_53] : memref<1x10x80xf32, #tpu.memory_space<vmem>>, vector<1x1x8xf32>
    %110 = vector.shape_cast %109 : vector<1x1x8xf32> to vector<1x8xf32>
    %111 = vector.shape_cast %108 : vector<1x8xf32> to vector<1x1x8xf32>
    tpu.vector_store %arg4[%c0_51, %c2_52, %c32_53], %111 {strides = array<i32>} : memref<1x10x80xf32, #tpu.memory_space<vmem>>, vector<1x1x8xf32>,
    %112 = vector.extract_strided_slice %87 {offsets = [0, 64], sizes = [1, 8], strides = [1, 1]} : vector<1x128xf32> to vector<1x8xf32>
    %113 = vector.extract_strided_slice %87 {offsets = [0, 72], sizes = [1, 8], strides = [1, 1]} : vector<1x128xf32> to vector<1x8xf32>
    %114 = arith.maximumf %112, %113 : vector<1x8xf32>
    %c0_54 = arith.constant 0 : index
    %c2_55 = arith.constant 2 : index
    %c40_56 = arith.constant 40 : index
    %115 = vector.load %arg4[%c0_54, %c2_55, %c40_56] : memref<1x10x80xf32, #tpu.memory_space<vmem>>, vector<1x1x8xf32>
    %116 = vector.shape_cast %115 : vector<1x1x8xf32> to vector<1x8xf32>
    %117 = vector.shape_cast %114 : vector<1x8xf32> to vector<1x1x8xf32>
    tpu.vector_store %arg4[%c0_54, %c2_55, %c40_56], %117 {strides = array<i32>} : memref<1x10x80xf32, #tpu.memory_space<vmem>>, vector<1x1x8xf32>,
    %118 = vector.extract_strided_slice %87 {offsets = [0, 80], sizes = [1, 8], strides = [1, 1]} : vector<1x128xf32> to vector<1x8xf32>
    %119 = vector.extract_strided_slice %87 {offsets = [0, 88], sizes = [1, 8], strides = [1, 1]} : vector<1x128xf32> to vector<1x8xf32>
    %120 = arith.maximumf %118, %119 : vector<1x8xf32>
    %c0_57 = arith.constant 0 : index
    %c2_58 = arith.constant 2 : index
    %c48_59 = arith.constant 48 : index
    %121 = vector.load %arg4[%c0_57, %c2_58, %c48_59] : memref<1x10x80xf32, #tpu.memory_space<vmem>>, vector<1x1x8xf32>
    %122 = vector.shape_cast %121 : vector<1x1x8xf32> to vector<1x8xf32>
    %123 = vector.shape_cast %120 : vector<1x8xf32> to vector<1x1x8xf32>
    tpu.vector_store %arg4[%c0_57, %c2_58, %c48_59], %123 {strides = array<i32>} : memref<1x10x80xf32, #tpu.memory_space<vmem>>, vector<1x1x8xf32>,
    %124 = vector.extract_strided_slice %87 {offsets = [0, 96], sizes = [1, 8], strides = [1, 1]} : vector<1x128xf32> to vector<1x8xf32>
    %125 = vector.extract_strided_slice %87 {offsets = [0, 104], sizes = [1, 8], strides = [1, 1]} : vector<1x128xf32> to vector<1x8xf32>
    %126 = arith.maximumf %124, %125 : vector<1x8xf32>
    %c0_60 = arith.constant 0 : index
    %c2_61 = arith.constant 2 : index
    %c56_62 = arith.constant 56 : index
    %127 = vector.load %arg4[%c0_60, %c2_61, %c56_62] : memref<1x10x80xf32, #tpu.memory_space<vmem>>, vector<1x1x8xf32>
    %128 = vector.shape_cast %127 : vector<1x1x8xf32> to vector<1x8xf32>
    %129 = vector.shape_cast %126 : vector<1x8xf32> to vector<1x1x8xf32>
    tpu.vector_store %arg4[%c0_60, %c2_61, %c56_62], %129 {strides = array<i32>} : memref<1x10x80xf32, #tpu.memory_space<vmem>>, vector<1x1x8xf32>,
    %130 = vector.extract_strided_slice %87 {offsets = [0, 112], sizes = [1, 8], strides = [1, 1]} : vector<1x128xf32> to vector<1x8xf32>
    %131 = vector.extract_strided_slice %87 {offsets = [0, 120], sizes = [1, 8], strides = [1, 1]} : vector<1x128xf32> to vector<1x8xf32>
    %132 = arith.maximumf %130, %131 : vector<1x8xf32>
    %c0_63 = arith.constant 0 : index
    %c2_64 = arith.constant 2 : index
    %c64_65 = arith.constant 64 : index
    %133 = vector.load %arg4[%c0_63, %c2_64, %c64_65] : memref<1x10x80xf32, #tpu.memory_space<vmem>>, vector<1x1x8xf32>
    %134 = vector.shape_cast %133 : vector<1x1x8xf32> to vector<1x8xf32>
    %135 = vector.shape_cast %132 : vector<1x8xf32> to vector<1x1x8xf32>
    tpu.vector_store %arg4[%c0_63, %c2_64, %c64_65], %135 {strides = array<i32>} : memref<1x10x80xf32, #tpu.memory_space<vmem>>, vector<1x1x8xf32>,
    %136 = vector.extract_strided_slice %29 {offsets = [4, 0], sizes = [1, 128], strides = [1, 1]} : vector<16x128xf32> to vector<1x128xf32>
    %137 = vector.extract_strided_slice %29 {offsets = [5, 0], sizes = [1, 128], strides = [1, 1]} : vector<16x128xf32> to vector<1x128xf32>
    %138 = arith.maximumf %136, %137 : vector<1x128xf32>
    %139 = vector.extract_strided_slice %138 {offsets = [0, 0], sizes = [1, 8], strides = [1, 1]} : vector<1x128xf32> to vector<1x8xf32>
    %140 = vector.extract_strided_slice %138 {offsets = [0, 8], sizes = [1, 8], strides = [1, 1]} : vector<1x128xf32> to vector<1x8xf32>
    %141 = arith.maximumf %139, %140 : vector<1x8xf32>
    %c0_66 = arith.constant 0 : index
    %c3 = arith.constant 3 : index
    %c8_67 = arith.constant 8 : index
    %142 = vector.load %arg4[%c0_66, %c3, %c8_67] : memref<1x10x80xf32, #tpu.memory_space<vmem>>, vector<1x1x8xf32>
    %143 = vector.shape_cast %142 : vector<1x1x8xf32> to vector<1x8xf32>
    %144 = vector.shape_cast %141 : vector<1x8xf32> to vector<1x1x8xf32>
    tpu.vector_store %arg4[%c0_66, %c3, %c8_67], %144 {strides = array<i32>} : memref<1x10x80xf32, #tpu.memory_space<vmem>>, vector<1x1x8xf32>,
    %145 = vector.extract_strided_slice %138 {offsets = [0, 16], sizes = [1, 8], strides = [1, 1]} : vector<1x128xf32> to vector<1x8xf32>
    %146 = vector.extract_strided_slice %138 {offsets = [0, 24], sizes = [1, 8], strides = [1, 1]} : vector<1x128xf32> to vector<1x8xf32>
    %147 = arith.maximumf %145, %146 : vector<1x8xf32>
    %c0_68 = arith.constant 0 : index
    %c3_69 = arith.constant 3 : index
    %c16_70 = arith.constant 16 : index
    %148 = vector.load %arg4[%c0_68, %c3_69, %c16_70] : memref<1x10x80xf32, #tpu.memory_space<vmem>>, vector<1x1x8xf32>
    %149 = vector.shape_cast %148 : vector<1x1x8xf32> to vector<1x8xf32>
    %150 = vector.shape_cast %147 : vector<1x8xf32> to vector<1x1x8xf32>
    tpu.vector_store %arg4[%c0_68, %c3_69, %c16_70], %150 {strides = array<i32>} : memref<1x10x80xf32, #tpu.memory_space<vmem>>, vector<1x1x8xf32>,
    %151 = vector.extract_strided_slice %138 {offsets = [0, 32], sizes = [1, 8], strides = [1, 1]} : vector<1x128xf32> to vector<1x8xf32>
    %152 = vector.extract_strided_slice %138 {offsets = [0, 40], sizes = [1, 8], strides = [1, 1]} : vector<1x128xf32> to vector<1x8xf32>
    %153 = arith.maximumf %151, %152 : vector<1x8xf32>
    %c0_71 = arith.constant 0 : index
    %c3_72 = arith.constant 3 : index
    %c24_73 = arith.constant 24 : index
    %154 = vector.load %arg4[%c0_71, %c3_72, %c24_73] : memref<1x10x80xf32, #tpu.memory_space<vmem>>, vector<1x1x8xf32>
    %155 = vector.shape_cast %154 : vector<1x1x8xf32> to vector<1x8xf32>
    %156 = vector.shape_cast %153 : vector<1x8xf32> to vector<1x1x8xf32>
    tpu.vector_store %arg4[%c0_71, %c3_72, %c24_73], %156 {strides = array<i32>} : memref<1x10x80xf32, #tpu.memory_space<vmem>>, vector<1x1x8xf32>,
    %157 = vector.extract_strided_slice %138 {offsets = [0, 48], sizes = [1, 8], strides = [1, 1]} : vector<1x128xf32> to vector<1x8xf32>
    %158 = vector.extract_strided_slice %138 {offsets = [0, 56], sizes = [1, 8], strides = [1, 1]} : vector<1x128xf32> to vector<1x8xf32>
    %159 = arith.maximumf %157, %158 : vector<1x8xf32>
    %c0_74 = arith.constant 0 : index
    %c3_75 = arith.constant 3 : index
    %c32_76 = arith.constant 32 : index
    %160 = vector.load %arg4[%c0_74, %c3_75, %c32_76] : memref<1x10x80xf32, #tpu.memory_space<vmem>>, vector<1x1x8xf32>
    %161 = vector.shape_cast %160 : vector<1x1x8xf32> to vector<1x8xf32>
    %162 = vector.shape_cast %159 : vector<1x8xf32> to vector<1x1x8xf32>
    tpu.vector_store %arg4[%c0_74, %c3_75, %c32_76], %162 {strides = array<i32>} : memref<1x10x80xf32, #tpu.memory_space<vmem>>, vector<1x1x8xf32>,
    %163 = vector.extract_strided_slice %138 {offsets = [0, 64], sizes = [1, 8], strides = [1, 1]} : vector<1x128xf32> to vector<1x8xf32>
    %164 = vector.extract_strided_slice %138 {offsets = [0, 72], sizes = [1, 8], strides = [1, 1]} : vector<1x128xf32> to vector<1x8xf32>
    %165 = arith.maximumf %163, %164 : vector<1x8xf32>
    %c0_77 = arith.constant 0 : index
    %c3_78 = arith.constant 3 : index
    %c40_79 = arith.constant 40 : index
    %166 = vector.load %arg4[%c0_77, %c3_78, %c40_79] : memref<1x10x80xf32, #tpu.memory_space<vmem>>, vector<1x1x8xf32>
    %167 = vector.shape_cast %166 : vector<1x1x8xf32> to vector<1x8xf32>
    %168 = vector.shape_cast %165 : vector<1x8xf32> to vector<1x1x8xf32>
    tpu.vector_store %arg4[%c0_77, %c3_78, %c40_79], %168 {strides = array<i32>} : memref<1x10x80xf32, #tpu.memory_space<vmem>>, vector<1x1x8xf32>,
    %169 = vector.extract_strided_slice %138 {offsets = [0, 80], sizes = [1, 8], strides = [1, 1]} : vector<1x128xf32> to vector<1x8xf32>
    %170 = vector.extract_strided_slice %138 {offsets = [0, 88], sizes = [1, 8], strides = [1, 1]} : vector<1x128xf32> to vector<1x8xf32>
    %171 = arith.maximumf %169, %170 : vector<1x8xf32>
    %c0_80 = arith.constant 0 : index
    %c3_81 = arith.constant 3 : index
    %c48_82 = arith.constant 48 : index
    %172 = vector.load %arg4[%c0_80, %c3_81, %c48_82] : memref<1x10x80xf32, #tpu.memory_space<vmem>>, vector<1x1x8xf32>
    %173 = vector.shape_cast %172 : vector<1x1x8xf32> to vector<1x8xf32>
    %174 = vector.shape_cast %171 : vector<1x8xf32> to vector<1x1x8xf32>
    tpu.vector_store %arg4[%c0_80, %c3_81, %c48_82], %174 {strides = array<i32>} : memref<1x10x80xf32, #tpu.memory_space<vmem>>, vector<1x1x8xf32>,
    %175 = vector.extract_strided_slice %138 {offsets = [0, 96], sizes = [1, 8], strides = [1, 1]} : vector<1x128xf32> to vector<1x8xf32>
    %176 = vector.extract_strided_slice %138 {offsets = [0, 104], sizes = [1, 8], strides = [1, 1]} : vector<1x128xf32> to vector<1x8xf32>
    %177 = arith.maximumf %175, %176 : vector<1x8xf32>
    %c0_83 = arith.constant 0 : index
    %c3_84 = arith.constant 3 : index
    %c56_85 = arith.constant 56 : index
    %178 = vector.load %arg4[%c0_83, %c3_84, %c56_85] : memref<1x10x80xf32, #tpu.memory_space<vmem>>, vector<1x1x8xf32>
    %179 = vector.shape_cast %178 : vector<1x1x8xf32> to vector<1x8xf32>
    %180 = vector.shape_cast %177 : vector<1x8xf32> to vector<1x1x8xf32>
    tpu.vector_store %arg4[%c0_83, %c3_84, %c56_85], %180 {strides = array<i32>} : memref<1x10x80xf32, #tpu.memory_space<vmem>>, vector<1x1x8xf32>,
    %181 = vector.extract_strided_slice %138 {offsets = [0, 112], sizes = [1, 8], strides = [1, 1]} : vector<1x128xf32> to vector<1x8xf32>
    %182 = vector.extract_strided_slice %138 {offsets = [0, 120], sizes = [1, 8], strides = [1, 1]} : vector<1x128xf32> to vector<1x8xf32>
    %183 = arith.maximumf %181, %182 : vector<1x8xf32>
    %c0_86 = arith.constant 0 : index
    %c3_87 = arith.constant 3 : index
    %c64_88 = arith.constant 64 : index
    %184 = vector.load %arg4[%c0_86, %c3_87, %c64_88] : memref<1x10x80xf32, #tpu.memory_space<vmem>>, vector<1x1x8xf32>
    %185 = vector.shape_cast %184 : vector<1x1x8xf32> to vector<1x8xf32>
    %186 = vector.shape_cast %183 : vector<1x8xf32> to vector<1x1x8xf32>
    tpu.vector_store %arg4[%c0_86, %c3_87, %c64_88], %186 {strides = array<i32>} : memref<1x10x80xf32, #tpu.memory_space<vmem>>, vector<1x1x8xf32>,
    %187 = vector.extract_strided_slice %29 {offsets = [6, 0], sizes = [1, 128], strides = [1, 1]} : vector<16x128xf32> to vector<1x128xf32>
    %188 = vector.extract_strided_slice %29 {offsets = [7, 0], sizes = [1, 128], strides = [1, 1]} : vector<16x128xf32> to vector<1x128xf32>
    %189 = arith.maximumf %187, %188 : vector<1x128xf32>
    %190 = vector.extract_strided_slice %189 {offsets = [0, 0], sizes = [1, 8], strides = [1, 1]} : vector<1x128xf32> to vector<1x8xf32>
    %191 = vector.extract_strided_slice %189 {offsets = [0, 8], sizes = [1, 8], strides = [1, 1]} : vector<1x128xf32> to vector<1x8xf32>
    %192 = arith.maximumf %190, %191 : vector<1x8xf32>
    %c0_89 = arith.constant 0 : index
    %c4 = arith.constant 4 : index
    %c8_90 = arith.constant 8 : index
    %193 = vector.load %arg4[%c0_89, %c4, %c8_90] : memref<1x10x80xf32, #tpu.memory_space<vmem>>, vector<1x1x8xf32>
    %194 = vector.shape_cast %193 : vector<1x1x8xf32> to vector<1x8xf32>
    %195 = vector.shape_cast %192 : vector<1x8xf32> to vector<1x1x8xf32>
    tpu.vector_store %arg4[%c0_89, %c4, %c8_90], %195 {strides = array<i32>} : memref<1x10x80xf32, #tpu.memory_space<vmem>>, vector<1x1x8xf32>,
    %196 = vector.extract_strided_slice %189 {offsets = [0, 16], sizes = [1, 8], strides = [1, 1]} : vector<1x128xf32> to vector<1x8xf32>
    %197 = vector.extract_strided_slice %189 {offsets = [0, 24], sizes = [1, 8], strides = [1, 1]} : vector<1x128xf32> to vector<1x8xf32>
    %198 = arith.maximumf %196, %197 : vector<1x8xf32>
    %c0_91 = arith.constant 0 : index
    %c4_92 = arith.constant 4 : index
    %c16_93 = arith.constant 16 : index
    %199 = vector.load %arg4[%c0_91, %c4_92, %c16_93] : memref<1x10x80xf32, #tpu.memory_space<vmem>>, vector<1x1x8xf32>
    %200 = vector.shape_cast %199 : vector<1x1x8xf32> to vector<1x8xf32>
    %201 = vector.shape_cast %198 : vector<1x8xf32> to vector<1x1x8xf32>
    tpu.vector_store %arg4[%c0_91, %c4_92, %c16_93], %201 {strides = array<i32>} : memref<1x10x80xf32, #tpu.memory_space<vmem>>, vector<1x1x8xf32>,
    %202 = vector.extract_strided_slice %189 {offsets = [0, 32], sizes = [1, 8], strides = [1, 1]} : vector<1x128xf32> to vector<1x8xf32>
    %203 = vector.extract_strided_slice %189 {offsets = [0, 40], sizes = [1, 8], strides = [1, 1]} : vector<1x128xf32> to vector<1x8xf32>
    %204 = arith.maximumf %202, %203 : vector<1x8xf32>
    %c0_94 = arith.constant 0 : index
    %c4_95 = arith.constant 4 : index
    %c24_96 = arith.constant 24 : index
    %205 = vector.load %arg4[%c0_94, %c4_95, %c24_96] : memref<1x10x80xf32, #tpu.memory_space<vmem>>, vector<1x1x8xf32>
    %206 = vector.shape_cast %205 : vector<1x1x8xf32> to vector<1x8xf32>
    %207 = vector.shape_cast %204 : vector<1x8xf32> to vector<1x1x8xf32>
    tpu.vector_store %arg4[%c0_94, %c4_95, %c24_96], %207 {strides = array<i32>} : memref<1x10x80xf32, #tpu.memory_space<vmem>>, vector<1x1x8xf32>,
    %208 = vector.extract_strided_slice %189 {offsets = [0, 48], sizes = [1, 8], strides = [1, 1]} : vector<1x128xf32> to vector<1x8xf32>
    %209 = vector.extract_strided_slice %189 {offsets = [0, 56], sizes = [1, 8], strides = [1, 1]} : vector<1x128xf32> to vector<1x8xf32>
    %210 = arith.maximumf %208, %209 : vector<1x8xf32>
    %c0_97 = arith.constant 0 : index
    %c4_98 = arith.constant 4 : index
    %c32_99 = arith.constant 32 : index
    %211 = vector.load %arg4[%c0_97, %c4_98, %c32_99] : memref<1x10x80xf32, #tpu.memory_space<vmem>>, vector<1x1x8xf32>
    %212 = vector.shape_cast %211 : vector<1x1x8xf32> to vector<1x8xf32>
    %213 = vector.shape_cast %210 : vector<1x8xf32> to vector<1x1x8xf32>
    tpu.vector_store %arg4[%c0_97, %c4_98, %c32_99], %213 {strides = array<i32>} : memref<1x10x80xf32, #tpu.memory_space<vmem>>, vector<1x1x8xf32>,
    %214 = vector.extract_strided_slice %189 {offsets = [0, 64], sizes = [1, 8], strides = [1, 1]} : vector<1x128xf32> to vector<1x8xf32>
    %215 = vector.extract_strided_slice %189 {offsets = [0, 72], sizes = [1, 8], strides = [1, 1]} : vector<1x128xf32> to vector<1x8xf32>
    %216 = arith.maximumf %214, %215 : vector<1x8xf32>
    %c0_100 = arith.constant 0 : index
    %c4_101 = arith.constant 4 : index
    %c40_102 = arith.constant 40 : index
    %217 = vector.load %arg4[%c0_100, %c4_101, %c40_102] : memref<1x10x80xf32, #tpu.memory_space<vmem>>, vector<1x1x8xf32>
    %218 = vector.shape_cast %217 : vector<1x1x8xf32> to vector<1x8xf32>
    %219 = vector.shape_cast %216 : vector<1x8xf32> to vector<1x1x8xf32>
    tpu.vector_store %arg4[%c0_100, %c4_101, %c40_102], %219 {strides = array<i32>} : memref<1x10x80xf32, #tpu.memory_space<vmem>>, vector<1x1x8xf32>,
    %220 = vector.extract_strided_slice %189 {offsets = [0, 80], sizes = [1, 8], strides = [1, 1]} : vector<1x128xf32> to vector<1x8xf32>
    %221 = vector.extract_strided_slice %189 {offsets = [0, 88], sizes = [1, 8], strides = [1, 1]} : vector<1x128xf32> to vector<1x8xf32>
    %222 = arith.maximumf %220, %221 : vector<1x8xf32>
    %c0_103 = arith.constant 0 : index
    %c4_104 = arith.constant 4 : index
    %c48_105 = arith.constant 48 : index
    %223 = vector.load %arg4[%c0_103, %c4_104, %c48_105] : memref<1x10x80xf32, #tpu.memory_space<vmem>>, vector<1x1x8xf32>
    %224 = vector.shape_cast %223 : vector<1x1x8xf32> to vector<1x8xf32>
    %225 = vector.shape_cast %222 : vector<1x8xf32> to vector<1x1x8xf32>
    tpu.vector_store %arg4[%c0_103, %c4_104, %c48_105], %225 {strides = array<i32>} : memref<1x10x80xf32, #tpu.memory_space<vmem>>, vector<1x1x8xf32>,
    %226 = vector.extract_strided_slice %189 {offsets = [0, 96], sizes = [1, 8], strides = [1, 1]} : vector<1x128xf32> to vector<1x8xf32>
    %227 = vector.extract_strided_slice %189 {offsets = [0, 104], sizes = [1, 8], strides = [1, 1]} : vector<1x128xf32> to vector<1x8xf32>
    %228 = arith.maximumf %226, %227 : vector<1x8xf32>
    %c0_106 = arith.constant 0 : index
    %c4_107 = arith.constant 4 : index
    %c56_108 = arith.constant 56 : index
    %229 = vector.load %arg4[%c0_106, %c4_107, %c56_108] : memref<1x10x80xf32, #tpu.memory_space<vmem>>, vector<1x1x8xf32>
    %230 = vector.shape_cast %229 : vector<1x1x8xf32> to vector<1x8xf32>
    %231 = vector.shape_cast %228 : vector<1x8xf32> to vector<1x1x8xf32>
    tpu.vector_store %arg4[%c0_106, %c4_107, %c56_108], %231 {strides = array<i32>} : memref<1x10x80xf32, #tpu.memory_space<vmem>>, vector<1x1x8xf32>,
    %232 = vector.extract_strided_slice %189 {offsets = [0, 112], sizes = [1, 8], strides = [1, 1]} : vector<1x128xf32> to vector<1x8xf32>
    %233 = vector.extract_strided_slice %189 {offsets = [0, 120], sizes = [1, 8], strides = [1, 1]} : vector<1x128xf32> to vector<1x8xf32>
    %234 = arith.maximumf %232, %233 : vector<1x8xf32>
    %c0_109 = arith.constant 0 : index
    %c4_110 = arith.constant 4 : index
    %c64_111 = arith.constant 64 : index
    %235 = vector.load %arg4[%c0_109, %c4_110, %c64_111] : memref<1x10x80xf32, #tpu.memory_space<vmem>>, vector<1x1x8xf32>
    %236 = vector.shape_cast %235 : vector<1x1x8xf32> to vector<1x8xf32>
    %237 = vector.shape_cast %234 : vector<1x8xf32> to vector<1x1x8xf32>
    tpu.vector_store %arg4[%c0_109, %c4_110, %c64_111], %237 {strides = array<i32>} : memref<1x10x80xf32, #tpu.memory_space<vmem>>, vector<1x1x8xf32>,
    %238 = vector.extract_strided_slice %29 {offsets = [8, 0], sizes = [1, 128], strides = [1, 1]} : vector<16x128xf32> to vector<1x128xf32>
    %239 = vector.extract_strided_slice %29 {offsets = [9, 0], sizes = [1, 128], strides = [1, 1]} : vector<16x128xf32> to vector<1x128xf32>
    %240 = arith.maximumf %238, %239 : vector<1x128xf32>
    %241 = vector.extract_strided_slice %240 {offsets = [0, 0], sizes = [1, 8], strides = [1, 1]} : vector<1x128xf32> to vector<1x8xf32>
    %242 = vector.extract_strided_slice %240 {offsets = [0, 8], sizes = [1, 8], strides = [1, 1]} : vector<1x128xf32> to vector<1x8xf32>
    %243 = arith.maximumf %241, %242 : vector<1x8xf32>
    %c0_112 = arith.constant 0 : index
    %c5 = arith.constant 5 : index
    %c8_113 = arith.constant 8 : index
    %244 = vector.load %arg4[%c0_112, %c5, %c8_113] : memref<1x10x80xf32, #tpu.memory_space<vmem>>, vector<1x1x8xf32>
    %245 = vector.shape_cast %244 : vector<1x1x8xf32> to vector<1x8xf32>
    %246 = vector.shape_cast %243 : vector<1x8xf32> to vector<1x1x8xf32>
    tpu.vector_store %arg4[%c0_112, %c5, %c8_113], %246 {strides = array<i32>} : memref<1x10x80xf32, #tpu.memory_space<vmem>>, vector<1x1x8xf32>,
    %247 = vector.extract_strided_slice %240 {offsets = [0, 16], sizes = [1, 8], strides = [1, 1]} : vector<1x128xf32> to vector<1x8xf32>
    %248 = vector.extract_strided_slice %240 {offsets = [0, 24], sizes = [1, 8], strides = [1, 1]} : vector<1x128xf32> to vector<1x8xf32>
    %249 = arith.maximumf %247, %248 : vector<1x8xf32>
    %c0_114 = arith.constant 0 : index
    %c5_115 = arith.constant 5 : index
    %c16_116 = arith.constant 16 : index
    %250 = vector.load %arg4[%c0_114, %c5_115, %c16_116] : memref<1x10x80xf32, #tpu.memory_space<vmem>>, vector<1x1x8xf32>
    %251 = vector.shape_cast %250 : vector<1x1x8xf32> to vector<1x8xf32>
    %252 = vector.shape_cast %249 : vector<1x8xf32> to vector<1x1x8xf32>
    tpu.vector_store %arg4[%c0_114, %c5_115, %c16_116], %252 {strides = array<i32>} : memref<1x10x80xf32, #tpu.memory_space<vmem>>, vector<1x1x8xf32>,
    %253 = vector.extract_strided_slice %240 {offsets = [0, 32], sizes = [1, 8], strides = [1, 1]} : vector<1x128xf32> to vector<1x8xf32>
    %254 = vector.extract_strided_slice %240 {offsets = [0, 40], sizes = [1, 8], strides = [1, 1]} : vector<1x128xf32> to vector<1x8xf32>
    %255 = arith.maximumf %253, %254 : vector<1x8xf32>
    %c0_117 = arith.constant 0 : index
    %c5_118 = arith.constant 5 : index
    %c24_119 = arith.constant 24 : index
    %256 = vector.load %arg4[%c0_117, %c5_118, %c24_119] : memref<1x10x80xf32, #tpu.memory_space<vmem>>, vector<1x1x8xf32>
    %257 = vector.shape_cast %256 : vector<1x1x8xf32> to vector<1x8xf32>
    %258 = vector.shape_cast %255 : vector<1x8xf32> to vector<1x1x8xf32>
    tpu.vector_store %arg4[%c0_117, %c5_118, %c24_119], %258 {strides = array<i32>} : memref<1x10x80xf32, #tpu.memory_space<vmem>>, vector<1x1x8xf32>,
    %259 = vector.extract_strided_slice %240 {offsets = [0, 48], sizes = [1, 8], strides = [1, 1]} : vector<1x128xf32> to vector<1x8xf32>
    %260 = vector.extract_strided_slice %240 {offsets = [0, 56], sizes = [1, 8], strides = [1, 1]} : vector<1x128xf32> to vector<1x8xf32>
    %261 = arith.maximumf %259, %260 : vector<1x8xf32>
    %c0_120 = arith.constant 0 : index
    %c5_121 = arith.constant 5 : index
    %c32_122 = arith.constant 32 : index
    %262 = vector.load %arg4[%c0_120, %c5_121, %c32_122] : memref<1x10x80xf32, #tpu.memory_space<vmem>>, vector<1x1x8xf32>
    %263 = vector.shape_cast %262 : vector<1x1x8xf32> to vector<1x8xf32>
    %264 = vector.shape_cast %261 : vector<1x8xf32> to vector<1x1x8xf32>
    tpu.vector_store %arg4[%c0_120, %c5_121, %c32_122], %264 {strides = array<i32>} : memref<1x10x80xf32, #tpu.memory_space<vmem>>, vector<1x1x8xf32>,
    %265 = vector.extract_strided_slice %240 {offsets = [0, 64], sizes = [1, 8], strides = [1, 1]} : vector<1x128xf32> to vector<1x8xf32>
    %266 = vector.extract_strided_slice %240 {offsets = [0, 72], sizes = [1, 8], strides = [1, 1]} : vector<1x128xf32> to vector<1x8xf32>
    %267 = arith.maximumf %265, %266 : vector<1x8xf32>
    %c0_123 = arith.constant 0 : index
    %c5_124 = arith.constant 5 : index
    %c40_125 = arith.constant 40 : index
    %268 = vector.load %arg4[%c0_123, %c5_124, %c40_125] : memref<1x10x80xf32, #tpu.memory_space<vmem>>, vector<1x1x8xf32>
    %269 = vector.shape_cast %268 : vector<1x1x8xf32> to vector<1x8xf32>
    %270 = vector.shape_cast %267 : vector<1x8xf32> to vector<1x1x8xf32>
    tpu.vector_store %arg4[%c0_123, %c5_124, %c40_125], %270 {strides = array<i32>} : memref<1x10x80xf32, #tpu.memory_space<vmem>>, vector<1x1x8xf32>,
    %271 = vector.extract_strided_slice %240 {offsets = [0, 80], sizes = [1, 8], strides = [1, 1]} : vector<1x128xf32> to vector<1x8xf32>
    %272 = vector.extract_strided_slice %240 {offsets = [0, 88], sizes = [1, 8], strides = [1, 1]} : vector<1x128xf32> to vector<1x8xf32>
    %273 = arith.maximumf %271, %272 : vector<1x8xf32>
    %c0_126 = arith.constant 0 : index
    %c5_127 = arith.constant 5 : index
    %c48_128 = arith.constant 48 : index
    %274 = vector.load %arg4[%c0_126, %c5_127, %c48_128] : memref<1x10x80xf32, #tpu.memory_space<vmem>>, vector<1x1x8xf32>
    %275 = vector.shape_cast %274 : vector<1x1x8xf32> to vector<1x8xf32>
    %276 = vector.shape_cast %273 : vector<1x8xf32> to vector<1x1x8xf32>
    tpu.vector_store %arg4[%c0_126, %c5_127, %c48_128], %276 {strides = array<i32>} : memref<1x10x80xf32, #tpu.memory_space<vmem>>, vector<1x1x8xf32>,
    %277 = vector.extract_strided_slice %240 {offsets = [0, 96], sizes = [1, 8], strides = [1, 1]} : vector<1x128xf32> to vector<1x8xf32>
    %278 = vector.extract_strided_slice %240 {offsets = [0, 104], sizes = [1, 8], strides = [1, 1]} : vector<1x128xf32> to vector<1x8xf32>
    %279 = arith.maximumf %277, %278 : vector<1x8xf32>
    %c0_129 = arith.constant 0 : index
    %c5_130 = arith.constant 5 : index
    %c56_131 = arith.constant 56 : index
    %280 = vector.load %arg4[%c0_129, %c5_130, %c56_131] : memref<1x10x80xf32, #tpu.memory_space<vmem>>, vector<1x1x8xf32>
    %281 = vector.shape_cast %280 : vector<1x1x8xf32> to vector<1x8xf32>
    %282 = vector.shape_cast %279 : vector<1x8xf32> to vector<1x1x8xf32>
    tpu.vector_store %arg4[%c0_129, %c5_130, %c56_131], %282 {strides = array<i32>} : memref<1x10x80xf32, #tpu.memory_space<vmem>>, vector<1x1x8xf32>,
    %283 = vector.extract_strided_slice %240 {offsets = [0, 112], sizes = [1, 8], strides = [1, 1]} : vector<1x128xf32> to vector<1x8xf32>
    %284 = vector.extract_strided_slice %240 {offsets = [0, 120], sizes = [1, 8], strides = [1, 1]} : vector<1x128xf32> to vector<1x8xf32>
    %285 = arith.maximumf %283, %284 : vector<1x8xf32>
    %c0_132 = arith.constant 0 : index
    %c5_133 = arith.constant 5 : index
    %c64_134 = arith.constant 64 : index
    %286 = vector.load %arg4[%c0_132, %c5_133, %c64_134] : memref<1x10x80xf32, #tpu.memory_space<vmem>>, vector<1x1x8xf32>
    %287 = vector.shape_cast %286 : vector<1x1x8xf32> to vector<1x8xf32>
    %288 = vector.shape_cast %285 : vector<1x8xf32> to vector<1x1x8xf32>
    tpu.vector_store %arg4[%c0_132, %c5_133, %c64_134], %288 {strides = array<i32>} : memref<1x10x80xf32, #tpu.memory_space<vmem>>, vector<1x1x8xf32>,
    %289 = vector.extract_strided_slice %29 {offsets = [10, 0], sizes = [1, 128], strides = [1, 1]} : vector<16x128xf32> to vector<1x128xf32>
    %290 = vector.extract_strided_slice %29 {offsets = [11, 0], sizes = [1, 128], strides = [1, 1]} : vector<16x128xf32> to vector<1x128xf32>
    %291 = arith.maximumf %289, %290 : vector<1x128xf32>
    %292 = vector.extract_strided_slice %291 {offsets = [0, 0], sizes = [1, 8], strides = [1, 1]} : vector<1x128xf32> to vector<1x8xf32>
    %293 = vector.extract_strided_slice %291 {offsets = [0, 8], sizes = [1, 8], strides = [1, 1]} : vector<1x128xf32> to vector<1x8xf32>
    %294 = arith.maximumf %292, %293 : vector<1x8xf32>
    %c0_135 = arith.constant 0 : index
    %c6 = arith.constant 6 : index
    %c8_136 = arith.constant 8 : index
    %295 = vector.load %arg4[%c0_135, %c6, %c8_136] : memref<1x10x80xf32, #tpu.memory_space<vmem>>, vector<1x1x8xf32>
    %296 = vector.shape_cast %295 : vector<1x1x8xf32> to vector<1x8xf32>
    %297 = vector.shape_cast %294 : vector<1x8xf32> to vector<1x1x8xf32>
    tpu.vector_store %arg4[%c0_135, %c6, %c8_136], %297 {strides = array<i32>} : memref<1x10x80xf32, #tpu.memory_space<vmem>>, vector<1x1x8xf32>,
    %298 = vector.extract_strided_slice %291 {offsets = [0, 16], sizes = [1, 8], strides = [1, 1]} : vector<1x128xf32> to vector<1x8xf32>
    %299 = vector.extract_strided_slice %291 {offsets = [0, 24], sizes = [1, 8], strides = [1, 1]} : vector<1x128xf32> to vector<1x8xf32>
    %300 = arith.maximumf %298, %299 : vector<1x8xf32>
    %c0_137 = arith.constant 0 : index
    %c6_138 = arith.constant 6 : index
    %c16_139 = arith.constant 16 : index
    %301 = vector.load %arg4[%c0_137, %c6_138, %c16_139] : memref<1x10x80xf32, #tpu.memory_space<vmem>>, vector<1x1x8xf32>
    %302 = vector.shape_cast %301 : vector<1x1x8xf32> to vector<1x8xf32>
    %303 = vector.shape_cast %300 : vector<1x8xf32> to vector<1x1x8xf32>
    tpu.vector_store %arg4[%c0_137, %c6_138, %c16_139], %303 {strides = array<i32>} : memref<1x10x80xf32, #tpu.memory_space<vmem>>, vector<1x1x8xf32>,
    %304 = vector.extract_strided_slice %291 {offsets = [0, 32], sizes = [1, 8], strides = [1, 1]} : vector<1x128xf32> to vector<1x8xf32>
    %305 = vector.extract_strided_slice %291 {offsets = [0, 40], sizes = [1, 8], strides = [1, 1]} : vector<1x128xf32> to vector<1x8xf32>
    %306 = arith.maximumf %304, %305 : vector<1x8xf32>
    %c0_140 = arith.constant 0 : index
    %c6_141 = arith.constant 6 : index
    %c24_142 = arith.constant 24 : index
    %307 = vector.load %arg4[%c0_140, %c6_141, %c24_142] : memref<1x10x80xf32, #tpu.memory_space<vmem>>, vector<1x1x8xf32>
    %308 = vector.shape_cast %307 : vector<1x1x8xf32> to vector<1x8xf32>
    %309 = vector.shape_cast %306 : vector<1x8xf32> to vector<1x1x8xf32>
    tpu.vector_store %arg4[%c0_140, %c6_141, %c24_142], %309 {strides = array<i32>} : memref<1x10x80xf32, #tpu.memory_space<vmem>>, vector<1x1x8xf32>,
    %310 = vector.extract_strided_slice %291 {offsets = [0, 48], sizes = [1, 8], strides = [1, 1]} : vector<1x128xf32> to vector<1x8xf32>
    %311 = vector.extract_strided_slice %291 {offsets = [0, 56], sizes = [1, 8], strides = [1, 1]} : vector<1x128xf32> to vector<1x8xf32>
    %312 = arith.maximumf %310, %311 : vector<1x8xf32>
    %c0_143 = arith.constant 0 : index
    %c6_144 = arith.constant 6 : index
    %c32_145 = arith.constant 32 : index
    %313 = vector.load %arg4[%c0_143, %c6_144, %c32_145] : memref<1x10x80xf32, #tpu.memory_space<vmem>>, vector<1x1x8xf32>
    %314 = vector.shape_cast %313 : vector<1x1x8xf32> to vector<1x8xf32>
    %315 = vector.shape_cast %312 : vector<1x8xf32> to vector<1x1x8xf32>
    tpu.vector_store %arg4[%c0_143, %c6_144, %c32_145], %315 {strides = array<i32>} : memref<1x10x80xf32, #tpu.memory_space<vmem>>, vector<1x1x8xf32>,
    %316 = vector.extract_strided_slice %291 {offsets = [0, 64], sizes = [1, 8], strides = [1, 1]} : vector<1x128xf32> to vector<1x8xf32>
    %317 = vector.extract_strided_slice %291 {offsets = [0, 72], sizes = [1, 8], strides = [1, 1]} : vector<1x128xf32> to vector<1x8xf32>
    %318 = arith.maximumf %316, %317 : vector<1x8xf32>
    %c0_146 = arith.constant 0 : index
    %c6_147 = arith.constant 6 : index
    %c40_148 = arith.constant 40 : index
    %319 = vector.load %arg4[%c0_146, %c6_147, %c40_148] : memref<1x10x80xf32, #tpu.memory_space<vmem>>, vector<1x1x8xf32>
    %320 = vector.shape_cast %319 : vector<1x1x8xf32> to vector<1x8xf32>
    %321 = vector.shape_cast %318 : vector<1x8xf32> to vector<1x1x8xf32>
    tpu.vector_store %arg4[%c0_146, %c6_147, %c40_148], %321 {strides = array<i32>} : memref<1x10x80xf32, #tpu.memory_space<vmem>>, vector<1x1x8xf32>,
    %322 = vector.extract_strided_slice %291 {offsets = [0, 80], sizes = [1, 8], strides = [1, 1]} : vector<1x128xf32> to vector<1x8xf32>
    %323 = vector.extract_strided_slice %291 {offsets = [0, 88], sizes = [1, 8], strides = [1, 1]} : vector<1x128xf32> to vector<1x8xf32>
    %324 = arith.maximumf %322, %323 : vector<1x8xf32>
    %c0_149 = arith.constant 0 : index
    %c6_150 = arith.constant 6 : index
    %c48_151 = arith.constant 48 : index
    %325 = vector.load %arg4[%c0_149, %c6_150, %c48_151] : memref<1x10x80xf32, #tpu.memory_space<vmem>>, vector<1x1x8xf32>
    %326 = vector.shape_cast %325 : vector<1x1x8xf32> to vector<1x8xf32>
    %327 = vector.shape_cast %324 : vector<1x8xf32> to vector<1x1x8xf32>
    tpu.vector_store %arg4[%c0_149, %c6_150, %c48_151], %327 {strides = array<i32>} : memref<1x10x80xf32, #tpu.memory_space<vmem>>, vector<1x1x8xf32>,
    %328 = vector.extract_strided_slice %291 {offsets = [0, 96], sizes = [1, 8], strides = [1, 1]} : vector<1x128xf32> to vector<1x8xf32>
    %329 = vector.extract_strided_slice %291 {offsets = [0, 104], sizes = [1, 8], strides = [1, 1]} : vector<1x128xf32> to vector<1x8xf32>
    %330 = arith.maximumf %328, %329 : vector<1x8xf32>
    %c0_152 = arith.constant 0 : index
    %c6_153 = arith.constant 6 : index
    %c56_154 = arith.constant 56 : index
    %331 = vector.load %arg4[%c0_152, %c6_153, %c56_154] : memref<1x10x80xf32, #tpu.memory_space<vmem>>, vector<1x1x8xf32>
    %332 = vector.shape_cast %331 : vector<1x1x8xf32> to vector<1x8xf32>
    %333 = vector.shape_cast %330 : vector<1x8xf32> to vector<1x1x8xf32>
    tpu.vector_store %arg4[%c0_152, %c6_153, %c56_154], %333 {strides = array<i32>} : memref<1x10x80xf32, #tpu.memory_space<vmem>>, vector<1x1x8xf32>,
    %334 = vector.extract_strided_slice %291 {offsets = [0, 112], sizes = [1, 8], strides = [1, 1]} : vector<1x128xf32> to vector<1x8xf32>
    %335 = vector.extract_strided_slice %291 {offsets = [0, 120], sizes = [1, 8], strides = [1, 1]} : vector<1x128xf32> to vector<1x8xf32>
    %336 = arith.maximumf %334, %335 : vector<1x8xf32>
    %c0_155 = arith.constant 0 : index
    %c6_156 = arith.constant 6 : index
    %c64_157 = arith.constant 64 : index
    %337 = vector.load %arg4[%c0_155, %c6_156, %c64_157] : memref<1x10x80xf32, #tpu.memory_space<vmem>>, vector<1x1x8xf32>
    %338 = vector.shape_cast %337 : vector<1x1x8xf32> to vector<1x8xf32>
    %339 = vector.shape_cast %336 : vector<1x8xf32> to vector<1x1x8xf32>
    tpu.vector_store %arg4[%c0_155, %c6_156, %c64_157], %339 {strides = array<i32>} : memref<1x10x80xf32, #tpu.memory_space<vmem>>, vector<1x1x8xf32>,
    %340 = vector.extract_strided_slice %29 {offsets = [12, 0], sizes = [1, 128], strides = [1, 1]} : vector<16x128xf32> to vector<1x128xf32>
    %341 = vector.extract_strided_slice %29 {offsets = [13, 0], sizes = [1, 128], strides = [1, 1]} : vector<16x128xf32> to vector<1x128xf32>
    %342 = arith.maximumf %340, %341 : vector<1x128xf32>
    %343 = vector.extract_strided_slice %342 {offsets = [0, 0], sizes = [1, 8], strides = [1, 1]} : vector<1x128xf32> to vector<1x8xf32>
    %344 = vector.extract_strided_slice %342 {offsets = [0, 8], sizes = [1, 8], strides = [1, 1]} : vector<1x128xf32> to vector<1x8xf32>
    %345 = arith.maximumf %343, %344 : vector<1x8xf32>
    %c0_158 = arith.constant 0 : index
    %c7 = arith.constant 7 : index
    %c8_159 = arith.constant 8 : index
    %346 = vector.load %arg4[%c0_158, %c7, %c8_159] : memref<1x10x80xf32, #tpu.memory_space<vmem>>, vector<1x1x8xf32>
    %347 = vector.shape_cast %346 : vector<1x1x8xf32> to vector<1x8xf32>
    %348 = vector.shape_cast %345 : vector<1x8xf32> to vector<1x1x8xf32>
    tpu.vector_store %arg4[%c0_158, %c7, %c8_159], %348 {strides = array<i32>} : memref<1x10x80xf32, #tpu.memory_space<vmem>>, vector<1x1x8xf32>,
    %349 = vector.extract_strided_slice %342 {offsets = [0, 16], sizes = [1, 8], strides = [1, 1]} : vector<1x128xf32> to vector<1x8xf32>
    %350 = vector.extract_strided_slice %342 {offsets = [0, 24], sizes = [1, 8], strides = [1, 1]} : vector<1x128xf32> to vector<1x8xf32>
    %351 = arith.maximumf %349, %350 : vector<1x8xf32>
    %c0_160 = arith.constant 0 : index
    %c7_161 = arith.constant 7 : index
    %c16_162 = arith.constant 16 : index
    %352 = vector.load %arg4[%c0_160, %c7_161, %c16_162] : memref<1x10x80xf32, #tpu.memory_space<vmem>>, vector<1x1x8xf32>
    %353 = vector.shape_cast %352 : vector<1x1x8xf32> to vector<1x8xf32>
    %354 = vector.shape_cast %351 : vector<1x8xf32> to vector<1x1x8xf32>
    tpu.vector_store %arg4[%c0_160, %c7_161, %c16_162], %354 {strides = array<i32>} : memref<1x10x80xf32, #tpu.memory_space<vmem>>, vector<1x1x8xf32>,
    %355 = vector.extract_strided_slice %342 {offsets = [0, 32], sizes = [1, 8], strides = [1, 1]} : vector<1x128xf32> to vector<1x8xf32>
    %356 = vector.extract_strided_slice %342 {offsets = [0, 40], sizes = [1, 8], strides = [1, 1]} : vector<1x128xf32> to vector<1x8xf32>
    %357 = arith.maximumf %355, %356 : vector<1x8xf32>
    %c0_163 = arith.constant 0 : index
    %c7_164 = arith.constant 7 : index
    %c24_165 = arith.constant 24 : index
    %358 = vector.load %arg4[%c0_163, %c7_164, %c24_165] : memref<1x10x80xf32, #tpu.memory_space<vmem>>, vector<1x1x8xf32>
    %359 = vector.shape_cast %358 : vector<1x1x8xf32> to vector<1x8xf32>
    %360 = vector.shape_cast %357 : vector<1x8xf32> to vector<1x1x8xf32>
    tpu.vector_store %arg4[%c0_163, %c7_164, %c24_165], %360 {strides = array<i32>} : memref<1x10x80xf32, #tpu.memory_space<vmem>>, vector<1x1x8xf32>,
    %361 = vector.extract_strided_slice %342 {offsets = [0, 48], sizes = [1, 8], strides = [1, 1]} : vector<1x128xf32> to vector<1x8xf32>
    %362 = vector.extract_strided_slice %342 {offsets = [0, 56], sizes = [1, 8], strides = [1, 1]} : vector<1x128xf32> to vector<1x8xf32>
    %363 = arith.maximumf %361, %362 : vector<1x8xf32>
    %c0_166 = arith.constant 0 : index
    %c7_167 = arith.constant 7 : index
    %c32_168 = arith.constant 32 : index
    %364 = vector.load %arg4[%c0_166, %c7_167, %c32_168] : memref<1x10x80xf32, #tpu.memory_space<vmem>>, vector<1x1x8xf32>
    %365 = vector.shape_cast %364 : vector<1x1x8xf32> to vector<1x8xf32>
    %366 = vector.shape_cast %363 : vector<1x8xf32> to vector<1x1x8xf32>
    tpu.vector_store %arg4[%c0_166, %c7_167, %c32_168], %366 {strides = array<i32>} : memref<1x10x80xf32, #tpu.memory_space<vmem>>, vector<1x1x8xf32>,
    %367 = vector.extract_strided_slice %342 {offsets = [0, 64], sizes = [1, 8], strides = [1, 1]} : vector<1x128xf32> to vector<1x8xf32>
    %368 = vector.extract_strided_slice %342 {offsets = [0, 72], sizes = [1, 8], strides = [1, 1]} : vector<1x128xf32> to vector<1x8xf32>
    %369 = arith.maximumf %367, %368 : vector<1x8xf32>
    %c0_169 = arith.constant 0 : index
    %c7_170 = arith.constant 7 : index
    %c40_171 = arith.constant 40 : index
    %370 = vector.load %arg4[%c0_169, %c7_170, %c40_171] : memref<1x10x80xf32, #tpu.memory_space<vmem>>, vector<1x1x8xf32>
    %371 = vector.shape_cast %370 : vector<1x1x8xf32> to vector<1x8xf32>
    %372 = vector.shape_cast %369 : vector<1x8xf32> to vector<1x1x8xf32>
    tpu.vector_store %arg4[%c0_169, %c7_170, %c40_171], %372 {strides = array<i32>} : memref<1x10x80xf32, #tpu.memory_space<vmem>>, vector<1x1x8xf32>,
    %373 = vector.extract_strided_slice %342 {offsets = [0, 80], sizes = [1, 8], strides = [1, 1]} : vector<1x128xf32> to vector<1x8xf32>
    %374 = vector.extract_strided_slice %342 {offsets = [0, 88], sizes = [1, 8], strides = [1, 1]} : vector<1x128xf32> to vector<1x8xf32>
    %375 = arith.maximumf %373, %374 : vector<1x8xf32>
    %c0_172 = arith.constant 0 : index
    %c7_173 = arith.constant 7 : index
    %c48_174 = arith.constant 48 : index
    %376 = vector.load %arg4[%c0_172, %c7_173, %c48_174] : memref<1x10x80xf32, #tpu.memory_space<vmem>>, vector<1x1x8xf32>
    %377 = vector.shape_cast %376 : vector<1x1x8xf32> to vector<1x8xf32>
    %378 = vector.shape_cast %375 : vector<1x8xf32> to vector<1x1x8xf32>
    tpu.vector_store %arg4[%c0_172, %c7_173, %c48_174], %378 {strides = array<i32>} : memref<1x10x80xf32, #tpu.memory_space<vmem>>, vector<1x1x8xf32>,
    %379 = vector.extract_strided_slice %342 {offsets = [0, 96], sizes = [1, 8], strides = [1, 1]} : vector<1x128xf32> to vector<1x8xf32>
    %380 = vector.extract_strided_slice %342 {offsets = [0, 104], sizes = [1, 8], strides = [1, 1]} : vector<1x128xf32> to vector<1x8xf32>
    %381 = arith.maximumf %379, %380 : vector<1x8xf32>
    %c0_175 = arith.constant 0 : index
    %c7_176 = arith.constant 7 : index
    %c56_177 = arith.constant 56 : index
    %382 = vector.load %arg4[%c0_175, %c7_176, %c56_177] : memref<1x10x80xf32, #tpu.memory_space<vmem>>, vector<1x1x8xf32>
    %383 = vector.shape_cast %382 : vector<1x1x8xf32> to vector<1x8xf32>
    %384 = vector.shape_cast %381 : vector<1x8xf32> to vector<1x1x8xf32>
    tpu.vector_store %arg4[%c0_175, %c7_176, %c56_177], %384 {strides = array<i32>} : memref<1x10x80xf32, #tpu.memory_space<vmem>>, vector<1x1x8xf32>,
    %385 = vector.extract_strided_slice %342 {offsets = [0, 112], sizes = [1, 8], strides = [1, 1]} : vector<1x128xf32> to vector<1x8xf32>
    %386 = vector.extract_strided_slice %342 {offsets = [0, 120], sizes = [1, 8], strides = [1, 1]} : vector<1x128xf32> to vector<1x8xf32>
    %387 = arith.maximumf %385, %386 : vector<1x8xf32>
    %c0_178 = arith.constant 0 : index
    %c7_179 = arith.constant 7 : index
    %c64_180 = arith.constant 64 : index
    %388 = vector.load %arg4[%c0_178, %c7_179, %c64_180] : memref<1x10x80xf32, #tpu.memory_space<vmem>>, vector<1x1x8xf32>
    %389 = vector.shape_cast %388 : vector<1x1x8xf32> to vector<1x8xf32>
    %390 = vector.shape_cast %387 : vector<1x8xf32> to vector<1x1x8xf32>
    tpu.vector_store %arg4[%c0_178, %c7_179, %c64_180], %390 {strides = array<i32>} : memref<1x10x80xf32, #tpu.memory_space<vmem>>, vector<1x1x8xf32>,
    %391 = vector.extract_strided_slice %29 {offsets = [14, 0], sizes = [1, 128], strides = [1, 1]} : vector<16x128xf32> to vector<1x128xf32>
    %392 = vector.extract_strided_slice %29 {offsets = [15, 0], sizes = [1, 128], strides = [1, 1]} : vector<16x128xf32> to vector<1x128xf32>
    %393 = arith.maximumf %391, %392 : vector<1x128xf32>
    %394 = vector.extract_strided_slice %393 {offsets = [0, 0], sizes = [1, 8], strides = [1, 1]} : vector<1x128xf32> to vector<1x8xf32>
    %395 = vector.extract_strided_slice %393 {offsets = [0, 8], sizes = [1, 8], strides = [1, 1]} : vector<1x128xf32> to vector<1x8xf32>
    %396 = arith.maximumf %394, %395 : vector<1x8xf32>
    %c0_181 = arith.constant 0 : index
    %c8_182 = arith.constant 8 : index
    %c8_183 = arith.constant 8 : index
    %397 = vector.load %arg4[%c0_181, %c8_182, %c8_183] : memref<1x10x80xf32, #tpu.memory_space<vmem>>, vector<1x1x8xf32>
    %398 = vector.shape_cast %397 : vector<1x1x8xf32> to vector<1x8xf32>
    %399 = vector.shape_cast %396 : vector<1x8xf32> to vector<1x1x8xf32>
    tpu.vector_store %arg4[%c0_181, %c8_182, %c8_183], %399 {strides = array<i32>} : memref<1x10x80xf32, #tpu.memory_space<vmem>>, vector<1x1x8xf32>,
    %400 = vector.extract_strided_slice %393 {offsets = [0, 16], sizes = [1, 8], strides = [1, 1]} : vector<1x128xf32> to vector<1x8xf32>
    %401 = vector.extract_strided_slice %393 {offsets = [0, 24], sizes = [1, 8], strides = [1, 1]} : vector<1x128xf32> to vector<1x8xf32>
    %402 = arith.maximumf %400, %401 : vector<1x8xf32>
    %c0_184 = arith.constant 0 : index
    %c8_185 = arith.constant 8 : index
    %c16_186 = arith.constant 16 : index
    %403 = vector.load %arg4[%c0_184, %c8_185, %c16_186] : memref<1x10x80xf32, #tpu.memory_space<vmem>>, vector<1x1x8xf32>
    %404 = vector.shape_cast %403 : vector<1x1x8xf32> to vector<1x8xf32>
    %405 = vector.shape_cast %402 : vector<1x8xf32> to vector<1x1x8xf32>
    tpu.vector_store %arg4[%c0_184, %c8_185, %c16_186], %405 {strides = array<i32>} : memref<1x10x80xf32, #tpu.memory_space<vmem>>, vector<1x1x8xf32>,
    %406 = vector.extract_strided_slice %393 {offsets = [0, 32], sizes = [1, 8], strides = [1, 1]} : vector<1x128xf32> to vector<1x8xf32>
    %407 = vector.extract_strided_slice %393 {offsets = [0, 40], sizes = [1, 8], strides = [1, 1]} : vector<1x128xf32> to vector<1x8xf32>
    %408 = arith.maximumf %406, %407 : vector<1x8xf32>
    %c0_187 = arith.constant 0 : index
    %c8_188 = arith.constant 8 : index
    %c24_189 = arith.constant 24 : index
    %409 = vector.load %arg4[%c0_187, %c8_188, %c24_189] : memref<1x10x80xf32, #tpu.memory_space<vmem>>, vector<1x1x8xf32>
    %410 = vector.shape_cast %409 : vector<1x1x8xf32> to vector<1x8xf32>
    %411 = vector.shape_cast %408 : vector<1x8xf32> to vector<1x1x8xf32>
    tpu.vector_store %arg4[%c0_187, %c8_188, %c24_189], %411 {strides = array<i32>} : memref<1x10x80xf32, #tpu.memory_space<vmem>>, vector<1x1x8xf32>,
    %412 = vector.extract_strided_slice %393 {offsets = [0, 48], sizes = [1, 8], strides = [1, 1]} : vector<1x128xf32> to vector<1x8xf32>
    %413 = vector.extract_strided_slice %393 {offsets = [0, 56], sizes = [1, 8], strides = [1, 1]} : vector<1x128xf32> to vector<1x8xf32>
    %414 = arith.maximumf %412, %413 : vector<1x8xf32>
    %c0_190 = arith.constant 0 : index
    %c8_191 = arith.constant 8 : index
    %c32_192 = arith.constant 32 : index
    %415 = vector.load %arg4[%c0_190, %c8_191, %c32_192] : memref<1x10x80xf32, #tpu.memory_space<vmem>>, vector<1x1x8xf32>
    %416 = vector.shape_cast %415 : vector<1x1x8xf32> to vector<1x8xf32>
    %417 = vector.shape_cast %414 : vector<1x8xf32> to vector<1x1x8xf32>
    tpu.vector_store %arg4[%c0_190, %c8_191, %c32_192], %417 {strides = array<i32>} : memref<1x10x80xf32, #tpu.memory_space<vmem>>, vector<1x1x8xf32>,
    %418 = vector.extract_strided_slice %393 {offsets = [0, 64], sizes = [1, 8], strides = [1, 1]} : vector<1x128xf32> to vector<1x8xf32>
    %419 = vector.extract_strided_slice %393 {offsets = [0, 72], sizes = [1, 8], strides = [1, 1]} : vector<1x128xf32> to vector<1x8xf32>
    %420 = arith.maximumf %418, %419 : vector<1x8xf32>
    %c0_193 = arith.constant 0 : index
    %c8_194 = arith.constant 8 : index
    %c40_195 = arith.constant 40 : index
    %421 = vector.load %arg4[%c0_193, %c8_194, %c40_195] : memref<1x10x80xf32, #tpu.memory_space<vmem>>, vector<1x1x8xf32>
    %422 = vector.shape_cast %421 : vector<1x1x8xf32> to vector<1x8xf32>
    %423 = vector.shape_cast %420 : vector<1x8xf32> to vector<1x1x8xf32>
    tpu.vector_store %arg4[%c0_193, %c8_194, %c40_195], %423 {strides = array<i32>} : memref<1x10x80xf32, #tpu.memory_space<vmem>>, vector<1x1x8xf32>,
    %424 = vector.extract_strided_slice %393 {offsets = [0, 80], sizes = [1, 8], strides = [1, 1]} : vector<1x128xf32> to vector<1x8xf32>
    %425 = vector.extract_strided_slice %393 {offsets = [0, 88], sizes = [1, 8], strides = [1, 1]} : vector<1x128xf32> to vector<1x8xf32>
    %426 = arith.maximumf %424, %425 : vector<1x8xf32>
    %c0_196 = arith.constant 0 : index
    %c8_197 = arith.constant 8 : index
    %c48_198 = arith.constant 48 : index
    %427 = vector.load %arg4[%c0_196, %c8_197, %c48_198] : memref<1x10x80xf32, #tpu.memory_space<vmem>>, vector<1x1x8xf32>
    %428 = vector.shape_cast %427 : vector<1x1x8xf32> to vector<1x8xf32>
    %429 = vector.shape_cast %426 : vector<1x8xf32> to vector<1x1x8xf32>
    tpu.vector_store %arg4[%c0_196, %c8_197, %c48_198], %429 {strides = array<i32>} : memref<1x10x80xf32, #tpu.memory_space<vmem>>, vector<1x1x8xf32>,
    %430 = vector.extract_strided_slice %393 {offsets = [0, 96], sizes = [1, 8], strides = [1, 1]} : vector<1x128xf32> to vector<1x8xf32>
    %431 = vector.extract_strided_slice %393 {offsets = [0, 104], sizes = [1, 8], strides = [1, 1]} : vector<1x128xf32> to vector<1x8xf32>
    %432 = arith.maximumf %430, %431 : vector<1x8xf32>
    %c0_199 = arith.constant 0 : index
    %c8_200 = arith.constant 8 : index
    %c56_201 = arith.constant 56 : index
    %433 = vector.load %arg4[%c0_199, %c8_200, %c56_201] : memref<1x10x80xf32, #tpu.memory_space<vmem>>, vector<1x1x8xf32>
    %434 = vector.shape_cast %433 : vector<1x1x8xf32> to vector<1x8xf32>
    %435 = vector.shape_cast %432 : vector<1x8xf32> to vector<1x1x8xf32>
    tpu.vector_store %arg4[%c0_199, %c8_200, %c56_201], %435 {strides = array<i32>} : memref<1x10x80xf32, #tpu.memory_space<vmem>>, vector<1x1x8xf32>,
    %436 = vector.extract_strided_slice %393 {offsets = [0, 112], sizes = [1, 8], strides = [1, 1]} : vector<1x128xf32> to vector<1x8xf32>
    %437 = vector.extract_strided_slice %393 {offsets = [0, 120], sizes = [1, 8], strides = [1, 1]} : vector<1x128xf32> to vector<1x8xf32>
    %438 = arith.maximumf %436, %437 : vector<1x8xf32>
    %c0_202 = arith.constant 0 : index
    %c8_203 = arith.constant 8 : index
    %c64_204 = arith.constant 64 : index
    %439 = vector.load %arg4[%c0_202, %c8_203, %c64_204] : memref<1x10x80xf32, #tpu.memory_space<vmem>>, vector<1x1x8xf32>
    %440 = vector.shape_cast %439 : vector<1x1x8xf32> to vector<1x8xf32>
    %441 = vector.shape_cast %438 : vector<1x8xf32> to vector<1x1x8xf32>
    tpu.vector_store %arg4[%c0_202, %c8_203, %c64_204], %441 {strides = array<i32>} : memref<1x10x80xf32, #tpu.memory_space<vmem>>, vector<1x1x8xf32>,
    return
  }
  func.func @transform_0(%arg0: i32) -> (i32, i32, i32) {
    %c0_i32 = arith.constant 0 : i32
    %c0_i32_0 = arith.constant 0 : i32
    %c0_i32_1 = arith.constant 0 : i32
    return %arg0, %c0_i32, %c0_i32_0 : i32, i32, i32
  }
  func.func @transform_1(%arg0: i32) -> (i32, i32, i32) {
    %c0_i32 = arith.constant 0 : i32
    %c0_i32_0 = arith.constant 0 : i32
    %c0_i32_1 = arith.constant 0 : i32
    %c0_i32_2 = arith.constant 0 : i32
    return %c0_i32, %c0_i32_0, %c0_i32_1 : i32, i32, i32
  }
  func.func @transform_2(%arg0: i32) -> (i32, i32) {
    %c0_i32 = arith.constant 0 : i32
    %c0_i32_0 = arith.constant 0 : i32
    %c0_i32_1 = arith.constant 0 : i32
    return %c0_i32, %c0_i32_0 : i32, i32
  }
  func.func @transform_3(%arg0: i32) -> (i32, i32, i32) {
    %c0_i32 = arith.constant 0 : i32
    %c0_i32_0 = arith.constant 0 : i32
    %c0_i32_1 = arith.constant 0 : i32
    return %arg0, %c0_i32, %c0_i32_0 : i32, i32, i32
  }
}

module attributes {stable_mosaic.version = 11 : i64} {
  func.func @_conv_lrelu_pool_kernel(%arg0: i32, %arg1: memref<1x6x96xf32, #tpu.memory_space<vmem>>, %arg2: memref<3x96x128xbf16, #tpu.memory_space<vmem>>, %arg3: memref<1x128xf32, #tpu.memory_space<vmem>>, %arg4: memref<1x4x128xf32, #tpu.memory_space<vmem>>) attributes {dimension_semantics = [#tpu.dimension_semantics<parallel>], iteration_bounds = array<i64: 2>, scalar_prefetch = 0 : i64, scratch_operands = 0 : i64, tpu.core_type = #tpu.core_type<tc>, window_params = [{transform_indices = @transform_0, window_bounds = array<i64: 1, 6, 96>}, {pipeline_mode = #tpu.pipeline_mode<synchronous>, transform_indices = @transform_1, window_bounds = array<i64: 3, 96, 128>}, {pipeline_mode = #tpu.pipeline_mode<synchronous>, transform_indices = @transform_2, window_bounds = array<i64: 1, 128>}, {transform_indices = @transform_3, window_bounds = array<i64: 1, 4, 128>}]} {
    %cst = arith.constant 0.000000e+00 : f32
    %0 = vector.broadcast %cst : f32 to vector<4x128xf32>
    %c0 = arith.constant 0 : index
    %c0_0 = arith.constant 0 : index
    %c0_1 = arith.constant 0 : index
    %1 = vector.load %arg1[%c0, %c0_0, %c0_1] : memref<1x6x96xf32, #tpu.memory_space<vmem>>, vector<1x4x96xf32>
    %2 = vector.shape_cast %1 : vector<1x4x96xf32> to vector<4x96xf32>
    %3 = arith.truncf %2 : vector<4x96xf32> to vector<4x96xbf16>
    %c0_2 = arith.constant 0 : index
    %c0_3 = arith.constant 0 : index
    %c0_4 = arith.constant 0 : index
    %4 = vector.load %arg2[%c0_2, %c0_3, %c0_4] : memref<3x96x128xbf16, #tpu.memory_space<vmem>>, vector<1x96x128xbf16>
    %5 = vector.shape_cast %4 : vector<1x96x128xbf16> to vector<96x128xbf16>
    %cst_5 = arith.constant dense<0.000000e+00> : vector<4x128xf32>
    %6 = tpu.matmul %3, %5, %cst_5 {dimension_numbers = #tpu.dot_dimension_numbers<[1], [0], [0], [1], [0, 0, 1, 1], [], []>} : vector<4x96xbf16>, vector<96x128xbf16>, vector<4x128xf32> -> vector<4x128xf32>
    %7 = arith.addf %0, %6 : vector<4x128xf32>
    %c0_6 = arith.constant 0 : index
    %c1 = arith.constant 1 : index
    %c0_7 = arith.constant 0 : index
    %8 = vector.load %arg1[%c0_6, %c1, %c0_7] : memref<1x6x96xf32, #tpu.memory_space<vmem>>, vector<1x4x96xf32>
    %9 = vector.shape_cast %8 : vector<1x4x96xf32> to vector<4x96xf32>
    %10 = arith.truncf %9 : vector<4x96xf32> to vector<4x96xbf16>
    %c1_8 = arith.constant 1 : index
    %c0_9 = arith.constant 0 : index
    %c0_10 = arith.constant 0 : index
    %11 = vector.load %arg2[%c1_8, %c0_9, %c0_10] : memref<3x96x128xbf16, #tpu.memory_space<vmem>>, vector<1x96x128xbf16>
    %12 = vector.shape_cast %11 : vector<1x96x128xbf16> to vector<96x128xbf16>
    %cst_11 = arith.constant dense<0.000000e+00> : vector<4x128xf32>
    %13 = tpu.matmul %10, %12, %cst_11 {dimension_numbers = #tpu.dot_dimension_numbers<[1], [0], [0], [1], [0, 0, 1, 1], [], []>} : vector<4x96xbf16>, vector<96x128xbf16>, vector<4x128xf32> -> vector<4x128xf32>
    %14 = arith.addf %7, %13 : vector<4x128xf32>
    %c0_12 = arith.constant 0 : index
    %c2 = arith.constant 2 : index
    %c0_13 = arith.constant 0 : index
    %15 = vector.load %arg1[%c0_12, %c2, %c0_13] : memref<1x6x96xf32, #tpu.memory_space<vmem>>, vector<1x4x96xf32>
    %16 = vector.shape_cast %15 : vector<1x4x96xf32> to vector<4x96xf32>
    %17 = arith.truncf %16 : vector<4x96xf32> to vector<4x96xbf16>
    %c2_14 = arith.constant 2 : index
    %c0_15 = arith.constant 0 : index
    %c0_16 = arith.constant 0 : index
    %18 = vector.load %arg2[%c2_14, %c0_15, %c0_16] : memref<3x96x128xbf16, #tpu.memory_space<vmem>>, vector<1x96x128xbf16>
    %19 = vector.shape_cast %18 : vector<1x96x128xbf16> to vector<96x128xbf16>
    %cst_17 = arith.constant dense<0.000000e+00> : vector<4x128xf32>
    %20 = tpu.matmul %17, %19, %cst_17 {dimension_numbers = #tpu.dot_dimension_numbers<[1], [0], [0], [1], [0, 0, 1, 1], [], []>} : vector<4x96xbf16>, vector<96x128xbf16>, vector<4x128xf32> -> vector<4x128xf32>
    %21 = arith.addf %14, %20 : vector<4x128xf32>
    %c0_18 = arith.constant 0 : index
    %c0_19 = arith.constant 0 : index
    %22 = vector.load %arg3[%c0_18, %c0_19] : memref<1x128xf32, #tpu.memory_space<vmem>>, vector<1x128xf32>
    %23 = vector.broadcast %22 : vector<1x128xf32> to vector<4x128xf32>
    %24 = arith.addf %21, %23 : vector<4x128xf32>
    %cst_20 = arith.constant 0.000000e+00 : f32
    %25 = vector.broadcast %cst_20 : f32 to vector<4x128xf32>
    %26 = arith.cmpf oge, %24, %25 : vector<4x128xf32>
    %cst_21 = arith.constant 0.00999999977 : f32
    %27 = vector.broadcast %cst_21 : f32 to vector<4x128xf32>
    %28 = arith.mulf %27, %24 : vector<4x128xf32>
    %29 = arith.select %26, %24, %28 : vector<4x128xi1>, vector<4x128xf32>
    %cst_22 = arith.constant 0.000000e+00 : f32
    %30 = vector.broadcast %cst_22 : f32 to vector<4x128xf32>
    %c0_23 = arith.constant 0 : index
    %c0_24 = arith.constant 0 : index
    %c0_25 = arith.constant 0 : index
    %31 = vector.load %arg4[%c0_23, %c0_24, %c0_25] : memref<1x4x128xf32, #tpu.memory_space<vmem>>, vector<1x4x128xf32>
    %32 = vector.shape_cast %31 : vector<1x4x128xf32> to vector<4x128xf32>
    %33 = vector.shape_cast %30 : vector<4x128xf32> to vector<1x4x128xf32>
    tpu.vector_store %arg4[%c0_23, %c0_24, %c0_25], %33 {strides = array<i32>} : memref<1x4x128xf32, #tpu.memory_space<vmem>>, vector<1x4x128xf32>,
    %34 = vector.extract_strided_slice %29 {offsets = [0, 0], sizes = [1, 128], strides = [1, 1]} : vector<4x128xf32> to vector<1x128xf32>
    %35 = vector.extract_strided_slice %29 {offsets = [1, 0], sizes = [1, 128], strides = [1, 1]} : vector<4x128xf32> to vector<1x128xf32>
    %36 = arith.maximumf %34, %35 : vector<1x128xf32>
    %37 = vector.extract_strided_slice %36 {offsets = [0, 0], sizes = [1, 32], strides = [1, 1]} : vector<1x128xf32> to vector<1x32xf32>
    %38 = vector.extract_strided_slice %36 {offsets = [0, 32], sizes = [1, 32], strides = [1, 1]} : vector<1x128xf32> to vector<1x32xf32>
    %39 = arith.maximumf %37, %38 : vector<1x32xf32>
    %c0_26 = arith.constant 0 : index
    %c1_27 = arith.constant 1 : index
    %c32 = arith.constant 32 : index
    %40 = vector.load %arg4[%c0_26, %c1_27, %c32] : memref<1x4x128xf32, #tpu.memory_space<vmem>>, vector<1x1x32xf32>
    %41 = vector.shape_cast %40 : vector<1x1x32xf32> to vector<1x32xf32>
    %42 = vector.shape_cast %39 : vector<1x32xf32> to vector<1x1x32xf32>
    tpu.vector_store %arg4[%c0_26, %c1_27, %c32], %42 {strides = array<i32>} : memref<1x4x128xf32, #tpu.memory_space<vmem>>, vector<1x1x32xf32>,
    %43 = vector.extract_strided_slice %36 {offsets = [0, 64], sizes = [1, 32], strides = [1, 1]} : vector<1x128xf32> to vector<1x32xf32>
    %44 = vector.extract_strided_slice %36 {offsets = [0, 96], sizes = [1, 32], strides = [1, 1]} : vector<1x128xf32> to vector<1x32xf32>
    %45 = arith.maximumf %43, %44 : vector<1x32xf32>
    %c0_28 = arith.constant 0 : index
    %c1_29 = arith.constant 1 : index
    %c64 = arith.constant 64 : index
    %46 = vector.load %arg4[%c0_28, %c1_29, %c64] : memref<1x4x128xf32, #tpu.memory_space<vmem>>, vector<1x1x32xf32>
    %47 = vector.shape_cast %46 : vector<1x1x32xf32> to vector<1x32xf32>
    %48 = vector.shape_cast %45 : vector<1x32xf32> to vector<1x1x32xf32>
    tpu.vector_store %arg4[%c0_28, %c1_29, %c64], %48 {strides = array<i32>} : memref<1x4x128xf32, #tpu.memory_space<vmem>>, vector<1x1x32xf32>,
    %49 = vector.extract_strided_slice %29 {offsets = [2, 0], sizes = [1, 128], strides = [1, 1]} : vector<4x128xf32> to vector<1x128xf32>
    %50 = vector.extract_strided_slice %29 {offsets = [3, 0], sizes = [1, 128], strides = [1, 1]} : vector<4x128xf32> to vector<1x128xf32>
    %51 = arith.maximumf %49, %50 : vector<1x128xf32>
    %52 = vector.extract_strided_slice %51 {offsets = [0, 0], sizes = [1, 32], strides = [1, 1]} : vector<1x128xf32> to vector<1x32xf32>
    %53 = vector.extract_strided_slice %51 {offsets = [0, 32], sizes = [1, 32], strides = [1, 1]} : vector<1x128xf32> to vector<1x32xf32>
    %54 = arith.maximumf %52, %53 : vector<1x32xf32>
    %c0_30 = arith.constant 0 : index
    %c2_31 = arith.constant 2 : index
    %c32_32 = arith.constant 32 : index
    %55 = vector.load %arg4[%c0_30, %c2_31, %c32_32] : memref<1x4x128xf32, #tpu.memory_space<vmem>>, vector<1x1x32xf32>
    %56 = vector.shape_cast %55 : vector<1x1x32xf32> to vector<1x32xf32>
    %57 = vector.shape_cast %54 : vector<1x32xf32> to vector<1x1x32xf32>
    tpu.vector_store %arg4[%c0_30, %c2_31, %c32_32], %57 {strides = array<i32>} : memref<1x4x128xf32, #tpu.memory_space<vmem>>, vector<1x1x32xf32>,
    %58 = vector.extract_strided_slice %51 {offsets = [0, 64], sizes = [1, 32], strides = [1, 1]} : vector<1x128xf32> to vector<1x32xf32>
    %59 = vector.extract_strided_slice %51 {offsets = [0, 96], sizes = [1, 32], strides = [1, 1]} : vector<1x128xf32> to vector<1x32xf32>
    %60 = arith.maximumf %58, %59 : vector<1x32xf32>
    %c0_33 = arith.constant 0 : index
    %c2_34 = arith.constant 2 : index
    %c64_35 = arith.constant 64 : index
    %61 = vector.load %arg4[%c0_33, %c2_34, %c64_35] : memref<1x4x128xf32, #tpu.memory_space<vmem>>, vector<1x1x32xf32>
    %62 = vector.shape_cast %61 : vector<1x1x32xf32> to vector<1x32xf32>
    %63 = vector.shape_cast %60 : vector<1x32xf32> to vector<1x1x32xf32>
    tpu.vector_store %arg4[%c0_33, %c2_34, %c64_35], %63 {strides = array<i32>} : memref<1x4x128xf32, #tpu.memory_space<vmem>>, vector<1x1x32xf32>,
    return
  }
  func.func @transform_0(%arg0: i32) -> (i32, i32, i32) {
    %c0_i32 = arith.constant 0 : i32
    %c0_i32_0 = arith.constant 0 : i32
    %c0_i32_1 = arith.constant 0 : i32
    return %arg0, %c0_i32, %c0_i32_0 : i32, i32, i32
  }
  func.func @transform_1(%arg0: i32) -> (i32, i32, i32) {
    %c0_i32 = arith.constant 0 : i32
    %c0_i32_0 = arith.constant 0 : i32
    %c0_i32_1 = arith.constant 0 : i32
    %c0_i32_2 = arith.constant 0 : i32
    return %c0_i32, %c0_i32_0, %c0_i32_1 : i32, i32, i32
  }
  func.func @transform_2(%arg0: i32) -> (i32, i32) {
    %c0_i32 = arith.constant 0 : i32
    %c0_i32_0 = arith.constant 0 : i32
    %c0_i32_1 = arith.constant 0 : i32
    return %c0_i32, %c0_i32_0 : i32, i32
  }
  func.func @transform_3(%arg0: i32) -> (i32, i32, i32) {
    %c0_i32 = arith.constant 0 : i32
    %c0_i32_0 = arith.constant 0 : i32
    %c0_i32_1 = arith.constant 0 : i32
    return %arg0, %c0_i32, %c0_i32_0 : i32, i32, i32
  }
}

module attributes {stable_mosaic.version = 11 : i64} {
  func.func @_conv_lrelu_pool_kernel(%arg0: i32, %arg1: memref<1x4x128xf32, #tpu.memory_space<vmem>>, %arg2: memref<3x128x128xbf16, #tpu.memory_space<vmem>>, %arg3: memref<1x128xf32, #tpu.memory_space<vmem>>, %arg4: memref<1x3x192xf32, #tpu.memory_space<vmem>>) attributes {dimension_semantics = [#tpu.dimension_semantics<parallel>], iteration_bounds = array<i64: 2>, scalar_prefetch = 0 : i64, scratch_operands = 0 : i64, tpu.core_type = #tpu.core_type<tc>, window_params = [{transform_indices = @transform_0, window_bounds = array<i64: 1, 4, 128>}, {pipeline_mode = #tpu.pipeline_mode<synchronous>, transform_indices = @transform_1, window_bounds = array<i64: 3, 128, 128>}, {pipeline_mode = #tpu.pipeline_mode<synchronous>, transform_indices = @transform_2, window_bounds = array<i64: 1, 128>}, {transform_indices = @transform_3, window_bounds = array<i64: 1, 3, 192>}]} {
    %cst = arith.constant 0.000000e+00 : f32
    %0 = vector.broadcast %cst : f32 to vector<2x128xf32>
    %c0 = arith.constant 0 : index
    %c0_0 = arith.constant 0 : index
    %c0_1 = arith.constant 0 : index
    %1 = vector.load %arg1[%c0, %c0_0, %c0_1] : memref<1x4x128xf32, #tpu.memory_space<vmem>>, vector<1x2x128xf32>
    %2 = vector.shape_cast %1 : vector<1x2x128xf32> to vector<2x128xf32>
    %3 = arith.truncf %2 : vector<2x128xf32> to vector<2x128xbf16>
    %c0_2 = arith.constant 0 : index
    %c0_3 = arith.constant 0 : index
    %c0_4 = arith.constant 0 : index
    %4 = vector.load %arg2[%c0_2, %c0_3, %c0_4] : memref<3x128x128xbf16, #tpu.memory_space<vmem>>, vector<1x128x128xbf16>
    %5 = vector.shape_cast %4 : vector<1x128x128xbf16> to vector<128x128xbf16>
    %cst_5 = arith.constant dense<0.000000e+00> : vector<2x128xf32>
    %6 = tpu.matmul %3, %5, %cst_5 {dimension_numbers = #tpu.dot_dimension_numbers<[1], [0], [0], [1], [0, 0, 1, 1], [], []>} : vector<2x128xbf16>, vector<128x128xbf16>, vector<2x128xf32> -> vector<2x128xf32>
    %7 = arith.addf %0, %6 : vector<2x128xf32>
    %c0_6 = arith.constant 0 : index
    %c1 = arith.constant 1 : index
    %c0_7 = arith.constant 0 : index
    %8 = vector.load %arg1[%c0_6, %c1, %c0_7] : memref<1x4x128xf32, #tpu.memory_space<vmem>>, vector<1x2x128xf32>
    %9 = vector.shape_cast %8 : vector<1x2x128xf32> to vector<2x128xf32>
    %10 = arith.truncf %9 : vector<2x128xf32> to vector<2x128xbf16>
    %c1_8 = arith.constant 1 : index
    %c0_9 = arith.constant 0 : index
    %c0_10 = arith.constant 0 : index
    %11 = vector.load %arg2[%c1_8, %c0_9, %c0_10] : memref<3x128x128xbf16, #tpu.memory_space<vmem>>, vector<1x128x128xbf16>
    %12 = vector.shape_cast %11 : vector<1x128x128xbf16> to vector<128x128xbf16>
    %cst_11 = arith.constant dense<0.000000e+00> : vector<2x128xf32>
    %13 = tpu.matmul %10, %12, %cst_11 {dimension_numbers = #tpu.dot_dimension_numbers<[1], [0], [0], [1], [0, 0, 1, 1], [], []>} : vector<2x128xbf16>, vector<128x128xbf16>, vector<2x128xf32> -> vector<2x128xf32>
    %14 = arith.addf %7, %13 : vector<2x128xf32>
    %c0_12 = arith.constant 0 : index
    %c2 = arith.constant 2 : index
    %c0_13 = arith.constant 0 : index
    %15 = vector.load %arg1[%c0_12, %c2, %c0_13] : memref<1x4x128xf32, #tpu.memory_space<vmem>>, vector<1x2x128xf32>
    %16 = vector.shape_cast %15 : vector<1x2x128xf32> to vector<2x128xf32>
    %17 = arith.truncf %16 : vector<2x128xf32> to vector<2x128xbf16>
    %c2_14 = arith.constant 2 : index
    %c0_15 = arith.constant 0 : index
    %c0_16 = arith.constant 0 : index
    %18 = vector.load %arg2[%c2_14, %c0_15, %c0_16] : memref<3x128x128xbf16, #tpu.memory_space<vmem>>, vector<1x128x128xbf16>
    %19 = vector.shape_cast %18 : vector<1x128x128xbf16> to vector<128x128xbf16>
    %cst_17 = arith.constant dense<0.000000e+00> : vector<2x128xf32>
    %20 = tpu.matmul %17, %19, %cst_17 {dimension_numbers = #tpu.dot_dimension_numbers<[1], [0], [0], [1], [0, 0, 1, 1], [], []>} : vector<2x128xbf16>, vector<128x128xbf16>, vector<2x128xf32> -> vector<2x128xf32>
    %21 = arith.addf %14, %20 : vector<2x128xf32>
    %c0_18 = arith.constant 0 : index
    %c0_19 = arith.constant 0 : index
    %22 = vector.load %arg3[%c0_18, %c0_19] : memref<1x128xf32, #tpu.memory_space<vmem>>, vector<1x128xf32>
    %23 = vector.broadcast %22 : vector<1x128xf32> to vector<2x128xf32>
    %24 = arith.addf %21, %23 : vector<2x128xf32>
    %cst_20 = arith.constant 0.000000e+00 : f32
    %25 = vector.broadcast %cst_20 : f32 to vector<2x128xf32>
    %26 = arith.cmpf oge, %24, %25 : vector<2x128xf32>
    %cst_21 = arith.constant 0.00999999977 : f32
    %27 = vector.broadcast %cst_21 : f32 to vector<2x128xf32>
    %28 = arith.mulf %27, %24 : vector<2x128xf32>
    %29 = arith.select %26, %24, %28 : vector<2x128xi1>, vector<2x128xf32>
    %cst_22 = arith.constant 0.000000e+00 : f32
    %30 = vector.broadcast %cst_22 : f32 to vector<3x192xf32>
    %c0_23 = arith.constant 0 : index
    %c0_24 = arith.constant 0 : index
    %c0_25 = arith.constant 0 : index
    %31 = vector.load %arg4[%c0_23, %c0_24, %c0_25] : memref<1x3x192xf32, #tpu.memory_space<vmem>>, vector<1x3x192xf32>
    %32 = vector.shape_cast %31 : vector<1x3x192xf32> to vector<3x192xf32>
    %33 = vector.shape_cast %30 : vector<3x192xf32> to vector<1x3x192xf32>
    tpu.vector_store %arg4[%c0_23, %c0_24, %c0_25], %33 {strides = array<i32>} : memref<1x3x192xf32, #tpu.memory_space<vmem>>, vector<1x3x192xf32>,
    %34 = vector.extract_strided_slice %29 {offsets = [0, 0], sizes = [1, 128], strides = [1, 1]} : vector<2x128xf32> to vector<1x128xf32>
    %35 = vector.extract_strided_slice %29 {offsets = [1, 0], sizes = [1, 128], strides = [1, 1]} : vector<2x128xf32> to vector<1x128xf32>
    %36 = arith.maximumf %34, %35 : vector<1x128xf32>
    %37 = vector.extract_strided_slice %36 {offsets = [0, 0], sizes = [1, 64], strides = [1, 1]} : vector<1x128xf32> to vector<1x64xf32>
    %38 = vector.extract_strided_slice %36 {offsets = [0, 64], sizes = [1, 64], strides = [1, 1]} : vector<1x128xf32> to vector<1x64xf32>
    %39 = arith.maximumf %37, %38 : vector<1x64xf32>
    %c0_26 = arith.constant 0 : index
    %c1_27 = arith.constant 1 : index
    %c64 = arith.constant 64 : index
    %40 = vector.load %arg4[%c0_26, %c1_27, %c64] : memref<1x3x192xf32, #tpu.memory_space<vmem>>, vector<1x1x64xf32>
    %41 = vector.shape_cast %40 : vector<1x1x64xf32> to vector<1x64xf32>
    %42 = vector.shape_cast %39 : vector<1x64xf32> to vector<1x1x64xf32>
    tpu.vector_store %arg4[%c0_26, %c1_27, %c64], %42 {strides = array<i32>} : memref<1x3x192xf32, #tpu.memory_space<vmem>>, vector<1x1x64xf32>,
    return
  }
  func.func @transform_0(%arg0: i32) -> (i32, i32, i32) {
    %c0_i32 = arith.constant 0 : i32
    %c0_i32_0 = arith.constant 0 : i32
    %c0_i32_1 = arith.constant 0 : i32
    return %arg0, %c0_i32, %c0_i32_0 : i32, i32, i32
  }
  func.func @transform_1(%arg0: i32) -> (i32, i32, i32) {
    %c0_i32 = arith.constant 0 : i32
    %c0_i32_0 = arith.constant 0 : i32
    %c0_i32_1 = arith.constant 0 : i32
    %c0_i32_2 = arith.constant 0 : i32
    return %c0_i32, %c0_i32_0, %c0_i32_1 : i32, i32, i32
  }
  func.func @transform_2(%arg0: i32) -> (i32, i32) {
    %c0_i32 = arith.constant 0 : i32
    %c0_i32_0 = arith.constant 0 : i32
    %c0_i32_1 = arith.constant 0 : i32
    return %c0_i32, %c0_i32_0 : i32, i32
  }
  func.func @transform_3(%arg0: i32) -> (i32, i32, i32) {
    %c0_i32 = arith.constant 0 : i32
    %c0_i32_0 = arith.constant 0 : i32
    %c0_i32_1 = arith.constant 0 : i32
    return %arg0, %c0_i32, %c0_i32_0 : i32, i32, i32
  }
}

module attributes {stable_mosaic.version = 11 : i64} {
  func.func @_conv_lrelu_pool_kernel(%arg0: i32, %arg1: memref<1x10x80xf32, #tpu.memory_space<vmem>>, %arg2: memref<3x80x128xbf16, #tpu.memory_space<vmem>>, %arg3: memref<1x128xf32, #tpu.memory_space<vmem>>, %arg4: memref<1x6x96xf32, #tpu.memory_space<vmem>>) attributes {dimension_semantics = [#tpu.dimension_semantics<parallel>], iteration_bounds = array<i64: 2>, scalar_prefetch = 0 : i64, scratch_operands = 0 : i64, tpu.core_type = #tpu.core_type<tc>, window_params = [{transform_indices = @transform_0, window_bounds = array<i64: 1, 10, 80>}, {pipeline_mode = #tpu.pipeline_mode<synchronous>, transform_indices = @transform_1, window_bounds = array<i64: 3, 80, 128>}, {pipeline_mode = #tpu.pipeline_mode<synchronous>, transform_indices = @transform_2, window_bounds = array<i64: 1, 128>}, {transform_indices = @transform_3, window_bounds = array<i64: 1, 6, 96>}]} {
    %cst = arith.constant 0.000000e+00 : f32
    %0 = vector.broadcast %cst : f32 to vector<8x128xf32>
    %c0 = arith.constant 0 : index
    %c0_0 = arith.constant 0 : index
    %c0_1 = arith.constant 0 : index
    %1 = vector.load %arg1[%c0, %c0_0, %c0_1] : memref<1x10x80xf32, #tpu.memory_space<vmem>>, vector<1x8x80xf32>
    %2 = vector.shape_cast %1 : vector<1x8x80xf32> to vector<8x80xf32>
    %3 = arith.truncf %2 : vector<8x80xf32> to vector<8x80xbf16>
    %c0_2 = arith.constant 0 : index
    %c0_3 = arith.constant 0 : index
    %c0_4 = arith.constant 0 : index
    %4 = vector.load %arg2[%c0_2, %c0_3, %c0_4] : memref<3x80x128xbf16, #tpu.memory_space<vmem>>, vector<1x80x128xbf16>
    %5 = vector.shape_cast %4 : vector<1x80x128xbf16> to vector<80x128xbf16>
    %cst_5 = arith.constant dense<0.000000e+00> : vector<8x128xf32>
    %6 = tpu.matmul %3, %5, %cst_5 {dimension_numbers = #tpu.dot_dimension_numbers<[1], [0], [0], [1], [0, 0, 1, 1], [], []>} : vector<8x80xbf16>, vector<80x128xbf16>, vector<8x128xf32> -> vector<8x128xf32>
    %7 = arith.addf %0, %6 : vector<8x128xf32>
    %c0_6 = arith.constant 0 : index
    %c1 = arith.constant 1 : index
    %c0_7 = arith.constant 0 : index
    %8 = vector.load %arg1[%c0_6, %c1, %c0_7] : memref<1x10x80xf32, #tpu.memory_space<vmem>>, vector<1x8x80xf32>
    %9 = vector.shape_cast %8 : vector<1x8x80xf32> to vector<8x80xf32>
    %10 = arith.truncf %9 : vector<8x80xf32> to vector<8x80xbf16>
    %c1_8 = arith.constant 1 : index
    %c0_9 = arith.constant 0 : index
    %c0_10 = arith.constant 0 : index
    %11 = vector.load %arg2[%c1_8, %c0_9, %c0_10] : memref<3x80x128xbf16, #tpu.memory_space<vmem>>, vector<1x80x128xbf16>
    %12 = vector.shape_cast %11 : vector<1x80x128xbf16> to vector<80x128xbf16>
    %cst_11 = arith.constant dense<0.000000e+00> : vector<8x128xf32>
    %13 = tpu.matmul %10, %12, %cst_11 {dimension_numbers = #tpu.dot_dimension_numbers<[1], [0], [0], [1], [0, 0, 1, 1], [], []>} : vector<8x80xbf16>, vector<80x128xbf16>, vector<8x128xf32> -> vector<8x128xf32>
    %14 = arith.addf %7, %13 : vector<8x128xf32>
    %c0_12 = arith.constant 0 : index
    %c2 = arith.constant 2 : index
    %c0_13 = arith.constant 0 : index
    %15 = vector.load %arg1[%c0_12, %c2, %c0_13] : memref<1x10x80xf32, #tpu.memory_space<vmem>>, vector<1x8x80xf32>
    %16 = vector.shape_cast %15 : vector<1x8x80xf32> to vector<8x80xf32>
    %17 = arith.truncf %16 : vector<8x80xf32> to vector<8x80xbf16>
    %c2_14 = arith.constant 2 : index
    %c0_15 = arith.constant 0 : index
    %c0_16 = arith.constant 0 : index
    %18 = vector.load %arg2[%c2_14, %c0_15, %c0_16] : memref<3x80x128xbf16, #tpu.memory_space<vmem>>, vector<1x80x128xbf16>
    %19 = vector.shape_cast %18 : vector<1x80x128xbf16> to vector<80x128xbf16>
    %cst_17 = arith.constant dense<0.000000e+00> : vector<8x128xf32>
    %20 = tpu.matmul %17, %19, %cst_17 {dimension_numbers = #tpu.dot_dimension_numbers<[1], [0], [0], [1], [0, 0, 1, 1], [], []>} : vector<8x80xbf16>, vector<80x128xbf16>, vector<8x128xf32> -> vector<8x128xf32>
    %21 = arith.addf %14, %20 : vector<8x128xf32>
    %c0_18 = arith.constant 0 : index
    %c0_19 = arith.constant 0 : index
    %22 = vector.load %arg3[%c0_18, %c0_19] : memref<1x128xf32, #tpu.memory_space<vmem>>, vector<1x128xf32>
    %23 = vector.broadcast %22 : vector<1x128xf32> to vector<8x128xf32>
    %24 = arith.addf %21, %23 : vector<8x128xf32>
    %cst_20 = arith.constant 0.000000e+00 : f32
    %25 = vector.broadcast %cst_20 : f32 to vector<8x128xf32>
    %26 = arith.cmpf oge, %24, %25 : vector<8x128xf32>
    %cst_21 = arith.constant 0.00999999977 : f32
    %27 = vector.broadcast %cst_21 : f32 to vector<8x128xf32>
    %28 = arith.mulf %27, %24 : vector<8x128xf32>
    %29 = arith.select %26, %24, %28 : vector<8x128xi1>, vector<8x128xf32>
    %cst_22 = arith.constant 0.000000e+00 : f32
    %30 = vector.broadcast %cst_22 : f32 to vector<6x96xf32>
    %c0_23 = arith.constant 0 : index
    %c0_24 = arith.constant 0 : index
    %c0_25 = arith.constant 0 : index
    %31 = vector.load %arg4[%c0_23, %c0_24, %c0_25] : memref<1x6x96xf32, #tpu.memory_space<vmem>>, vector<1x6x96xf32>
    %32 = vector.shape_cast %31 : vector<1x6x96xf32> to vector<6x96xf32>
    %33 = vector.shape_cast %30 : vector<6x96xf32> to vector<1x6x96xf32>
    tpu.vector_store %arg4[%c0_23, %c0_24, %c0_25], %33 {strides = array<i32>} : memref<1x6x96xf32, #tpu.memory_space<vmem>>, vector<1x6x96xf32>,
    %34 = vector.extract_strided_slice %29 {offsets = [0, 0], sizes = [1, 128], strides = [1, 1]} : vector<8x128xf32> to vector<1x128xf32>
    %35 = vector.extract_strided_slice %29 {offsets = [1, 0], sizes = [1, 128], strides = [1, 1]} : vector<8x128xf32> to vector<1x128xf32>
    %36 = arith.maximumf %34, %35 : vector<1x128xf32>
    %37 = vector.extract_strided_slice %36 {offsets = [0, 0], sizes = [1, 16], strides = [1, 1]} : vector<1x128xf32> to vector<1x16xf32>
    %38 = vector.extract_strided_slice %36 {offsets = [0, 16], sizes = [1, 16], strides = [1, 1]} : vector<1x128xf32> to vector<1x16xf32>
    %39 = arith.maximumf %37, %38 : vector<1x16xf32>
    %c0_26 = arith.constant 0 : index
    %c1_27 = arith.constant 1 : index
    %c16 = arith.constant 16 : index
    %40 = vector.load %arg4[%c0_26, %c1_27, %c16] : memref<1x6x96xf32, #tpu.memory_space<vmem>>, vector<1x1x16xf32>
    %41 = vector.shape_cast %40 : vector<1x1x16xf32> to vector<1x16xf32>
    %42 = vector.shape_cast %39 : vector<1x16xf32> to vector<1x1x16xf32>
    tpu.vector_store %arg4[%c0_26, %c1_27, %c16], %42 {strides = array<i32>} : memref<1x6x96xf32, #tpu.memory_space<vmem>>, vector<1x1x16xf32>,
    %43 = vector.extract_strided_slice %36 {offsets = [0, 32], sizes = [1, 16], strides = [1, 1]} : vector<1x128xf32> to vector<1x16xf32>
    %44 = vector.extract_strided_slice %36 {offsets = [0, 48], sizes = [1, 16], strides = [1, 1]} : vector<1x128xf32> to vector<1x16xf32>
    %45 = arith.maximumf %43, %44 : vector<1x16xf32>
    %c0_28 = arith.constant 0 : index
    %c1_29 = arith.constant 1 : index
    %c32 = arith.constant 32 : index
    %46 = vector.load %arg4[%c0_28, %c1_29, %c32] : memref<1x6x96xf32, #tpu.memory_space<vmem>>, vector<1x1x16xf32>
    %47 = vector.shape_cast %46 : vector<1x1x16xf32> to vector<1x16xf32>
    %48 = vector.shape_cast %45 : vector<1x16xf32> to vector<1x1x16xf32>
    tpu.vector_store %arg4[%c0_28, %c1_29, %c32], %48 {strides = array<i32>} : memref<1x6x96xf32, #tpu.memory_space<vmem>>, vector<1x1x16xf32>,
    %49 = vector.extract_strided_slice %36 {offsets = [0, 64], sizes = [1, 16], strides = [1, 1]} : vector<1x128xf32> to vector<1x16xf32>
    %50 = vector.extract_strided_slice %36 {offsets = [0, 80], sizes = [1, 16], strides = [1, 1]} : vector<1x128xf32> to vector<1x16xf32>
    %51 = arith.maximumf %49, %50 : vector<1x16xf32>
    %c0_30 = arith.constant 0 : index
    %c1_31 = arith.constant 1 : index
    %c48 = arith.constant 48 : index
    %52 = vector.load %arg4[%c0_30, %c1_31, %c48] : memref<1x6x96xf32, #tpu.memory_space<vmem>>, vector<1x1x16xf32>
    %53 = vector.shape_cast %52 : vector<1x1x16xf32> to vector<1x16xf32>
    %54 = vector.shape_cast %51 : vector<1x16xf32> to vector<1x1x16xf32>
    tpu.vector_store %arg4[%c0_30, %c1_31, %c48], %54 {strides = array<i32>} : memref<1x6x96xf32, #tpu.memory_space<vmem>>, vector<1x1x16xf32>,
    %55 = vector.extract_strided_slice %36 {offsets = [0, 96], sizes = [1, 16], strides = [1, 1]} : vector<1x128xf32> to vector<1x16xf32>
    %56 = vector.extract_strided_slice %36 {offsets = [0, 112], sizes = [1, 16], strides = [1, 1]} : vector<1x128xf32> to vector<1x16xf32>
    %57 = arith.maximumf %55, %56 : vector<1x16xf32>
    %c0_32 = arith.constant 0 : index
    %c1_33 = arith.constant 1 : index
    %c64 = arith.constant 64 : index
    %58 = vector.load %arg4[%c0_32, %c1_33, %c64] : memref<1x6x96xf32, #tpu.memory_space<vmem>>, vector<1x1x16xf32>
    %59 = vector.shape_cast %58 : vector<1x1x16xf32> to vector<1x16xf32>
    %60 = vector.shape_cast %57 : vector<1x16xf32> to vector<1x1x16xf32>
    tpu.vector_store %arg4[%c0_32, %c1_33, %c64], %60 {strides = array<i32>} : memref<1x6x96xf32, #tpu.memory_space<vmem>>, vector<1x1x16xf32>,
    %61 = vector.extract_strided_slice %29 {offsets = [2, 0], sizes = [1, 128], strides = [1, 1]} : vector<8x128xf32> to vector<1x128xf32>
    %62 = vector.extract_strided_slice %29 {offsets = [3, 0], sizes = [1, 128], strides = [1, 1]} : vector<8x128xf32> to vector<1x128xf32>
    %63 = arith.maximumf %61, %62 : vector<1x128xf32>
    %64 = vector.extract_strided_slice %63 {offsets = [0, 0], sizes = [1, 16], strides = [1, 1]} : vector<1x128xf32> to vector<1x16xf32>
    %65 = vector.extract_strided_slice %63 {offsets = [0, 16], sizes = [1, 16], strides = [1, 1]} : vector<1x128xf32> to vector<1x16xf32>
    %66 = arith.maximumf %64, %65 : vector<1x16xf32>
    %c0_34 = arith.constant 0 : index
    %c2_35 = arith.constant 2 : index
    %c16_36 = arith.constant 16 : index
    %67 = vector.load %arg4[%c0_34, %c2_35, %c16_36] : memref<1x6x96xf32, #tpu.memory_space<vmem>>, vector<1x1x16xf32>
    %68 = vector.shape_cast %67 : vector<1x1x16xf32> to vector<1x16xf32>
    %69 = vector.shape_cast %66 : vector<1x16xf32> to vector<1x1x16xf32>
    tpu.vector_store %arg4[%c0_34, %c2_35, %c16_36], %69 {strides = array<i32>} : memref<1x6x96xf32, #tpu.memory_space<vmem>>, vector<1x1x16xf32>,
    %70 = vector.extract_strided_slice %63 {offsets = [0, 32], sizes = [1, 16], strides = [1, 1]} : vector<1x128xf32> to vector<1x16xf32>
    %71 = vector.extract_strided_slice %63 {offsets = [0, 48], sizes = [1, 16], strides = [1, 1]} : vector<1x128xf32> to vector<1x16xf32>
    %72 = arith.maximumf %70, %71 : vector<1x16xf32>
    %c0_37 = arith.constant 0 : index
    %c2_38 = arith.constant 2 : index
    %c32_39 = arith.constant 32 : index
    %73 = vector.load %arg4[%c0_37, %c2_38, %c32_39] : memref<1x6x96xf32, #tpu.memory_space<vmem>>, vector<1x1x16xf32>
    %74 = vector.shape_cast %73 : vector<1x1x16xf32> to vector<1x16xf32>
    %75 = vector.shape_cast %72 : vector<1x16xf32> to vector<1x1x16xf32>
    tpu.vector_store %arg4[%c0_37, %c2_38, %c32_39], %75 {strides = array<i32>} : memref<1x6x96xf32, #tpu.memory_space<vmem>>, vector<1x1x16xf32>,
    %76 = vector.extract_strided_slice %63 {offsets = [0, 64], sizes = [1, 16], strides = [1, 1]} : vector<1x128xf32> to vector<1x16xf32>
    %77 = vector.extract_strided_slice %63 {offsets = [0, 80], sizes = [1, 16], strides = [1, 1]} : vector<1x128xf32> to vector<1x16xf32>
    %78 = arith.maximumf %76, %77 : vector<1x16xf32>
    %c0_40 = arith.constant 0 : index
    %c2_41 = arith.constant 2 : index
    %c48_42 = arith.constant 48 : index
    %79 = vector.load %arg4[%c0_40, %c2_41, %c48_42] : memref<1x6x96xf32, #tpu.memory_space<vmem>>, vector<1x1x16xf32>
    %80 = vector.shape_cast %79 : vector<1x1x16xf32> to vector<1x16xf32>
    %81 = vector.shape_cast %78 : vector<1x16xf32> to vector<1x1x16xf32>
    tpu.vector_store %arg4[%c0_40, %c2_41, %c48_42], %81 {strides = array<i32>} : memref<1x6x96xf32, #tpu.memory_space<vmem>>, vector<1x1x16xf32>,
    %82 = vector.extract_strided_slice %63 {offsets = [0, 96], sizes = [1, 16], strides = [1, 1]} : vector<1x128xf32> to vector<1x16xf32>
    %83 = vector.extract_strided_slice %63 {offsets = [0, 112], sizes = [1, 16], strides = [1, 1]} : vector<1x128xf32> to vector<1x16xf32>
    %84 = arith.maximumf %82, %83 : vector<1x16xf32>
    %c0_43 = arith.constant 0 : index
    %c2_44 = arith.constant 2 : index
    %c64_45 = arith.constant 64 : index
    %85 = vector.load %arg4[%c0_43, %c2_44, %c64_45] : memref<1x6x96xf32, #tpu.memory_space<vmem>>, vector<1x1x16xf32>
    %86 = vector.shape_cast %85 : vector<1x1x16xf32> to vector<1x16xf32>
    %87 = vector.shape_cast %84 : vector<1x16xf32> to vector<1x1x16xf32>
    tpu.vector_store %arg4[%c0_43, %c2_44, %c64_45], %87 {strides = array<i32>} : memref<1x6x96xf32, #tpu.memory_space<vmem>>, vector<1x1x16xf32>,
    %88 = vector.extract_strided_slice %29 {offsets = [4, 0], sizes = [1, 128], strides = [1, 1]} : vector<8x128xf32> to vector<1x128xf32>
    %89 = vector.extract_strided_slice %29 {offsets = [5, 0], sizes = [1, 128], strides = [1, 1]} : vector<8x128xf32> to vector<1x128xf32>
    %90 = arith.maximumf %88, %89 : vector<1x128xf32>
    %91 = vector.extract_strided_slice %90 {offsets = [0, 0], sizes = [1, 16], strides = [1, 1]} : vector<1x128xf32> to vector<1x16xf32>
    %92 = vector.extract_strided_slice %90 {offsets = [0, 16], sizes = [1, 16], strides = [1, 1]} : vector<1x128xf32> to vector<1x16xf32>
    %93 = arith.maximumf %91, %92 : vector<1x16xf32>
    %c0_46 = arith.constant 0 : index
    %c3 = arith.constant 3 : index
    %c16_47 = arith.constant 16 : index
    %94 = vector.load %arg4[%c0_46, %c3, %c16_47] : memref<1x6x96xf32, #tpu.memory_space<vmem>>, vector<1x1x16xf32>
    %95 = vector.shape_cast %94 : vector<1x1x16xf32> to vector<1x16xf32>
    %96 = vector.shape_cast %93 : vector<1x16xf32> to vector<1x1x16xf32>
    tpu.vector_store %arg4[%c0_46, %c3, %c16_47], %96 {strides = array<i32>} : memref<1x6x96xf32, #tpu.memory_space<vmem>>, vector<1x1x16xf32>,
    %97 = vector.extract_strided_slice %90 {offsets = [0, 32], sizes = [1, 16], strides = [1, 1]} : vector<1x128xf32> to vector<1x16xf32>
    %98 = vector.extract_strided_slice %90 {offsets = [0, 48], sizes = [1, 16], strides = [1, 1]} : vector<1x128xf32> to vector<1x16xf32>
    %99 = arith.maximumf %97, %98 : vector<1x16xf32>
    %c0_48 = arith.constant 0 : index
    %c3_49 = arith.constant 3 : index
    %c32_50 = arith.constant 32 : index
    %100 = vector.load %arg4[%c0_48, %c3_49, %c32_50] : memref<1x6x96xf32, #tpu.memory_space<vmem>>, vector<1x1x16xf32>
    %101 = vector.shape_cast %100 : vector<1x1x16xf32> to vector<1x16xf32>
    %102 = vector.shape_cast %99 : vector<1x16xf32> to vector<1x1x16xf32>
    tpu.vector_store %arg4[%c0_48, %c3_49, %c32_50], %102 {strides = array<i32>} : memref<1x6x96xf32, #tpu.memory_space<vmem>>, vector<1x1x16xf32>,
    %103 = vector.extract_strided_slice %90 {offsets = [0, 64], sizes = [1, 16], strides = [1, 1]} : vector<1x128xf32> to vector<1x16xf32>
    %104 = vector.extract_strided_slice %90 {offsets = [0, 80], sizes = [1, 16], strides = [1, 1]} : vector<1x128xf32> to vector<1x16xf32>
    %105 = arith.maximumf %103, %104 : vector<1x16xf32>
    %c0_51 = arith.constant 0 : index
    %c3_52 = arith.constant 3 : index
    %c48_53 = arith.constant 48 : index
    %106 = vector.load %arg4[%c0_51, %c3_52, %c48_53] : memref<1x6x96xf32, #tpu.memory_space<vmem>>, vector<1x1x16xf32>
    %107 = vector.shape_cast %106 : vector<1x1x16xf32> to vector<1x16xf32>
    %108 = vector.shape_cast %105 : vector<1x16xf32> to vector<1x1x16xf32>
    tpu.vector_store %arg4[%c0_51, %c3_52, %c48_53], %108 {strides = array<i32>} : memref<1x6x96xf32, #tpu.memory_space<vmem>>, vector<1x1x16xf32>,
    %109 = vector.extract_strided_slice %90 {offsets = [0, 96], sizes = [1, 16], strides = [1, 1]} : vector<1x128xf32> to vector<1x16xf32>
    %110 = vector.extract_strided_slice %90 {offsets = [0, 112], sizes = [1, 16], strides = [1, 1]} : vector<1x128xf32> to vector<1x16xf32>
    %111 = arith.maximumf %109, %110 : vector<1x16xf32>
    %c0_54 = arith.constant 0 : index
    %c3_55 = arith.constant 3 : index
    %c64_56 = arith.constant 64 : index
    %112 = vector.load %arg4[%c0_54, %c3_55, %c64_56] : memref<1x6x96xf32, #tpu.memory_space<vmem>>, vector<1x1x16xf32>
    %113 = vector.shape_cast %112 : vector<1x1x16xf32> to vector<1x16xf32>
    %114 = vector.shape_cast %111 : vector<1x16xf32> to vector<1x1x16xf32>
    tpu.vector_store %arg4[%c0_54, %c3_55, %c64_56], %114 {strides = array<i32>} : memref<1x6x96xf32, #tpu.memory_space<vmem>>, vector<1x1x16xf32>,
    %115 = vector.extract_strided_slice %29 {offsets = [6, 0], sizes = [1, 128], strides = [1, 1]} : vector<8x128xf32> to vector<1x128xf32>
    %116 = vector.extract_strided_slice %29 {offsets = [7, 0], sizes = [1, 128], strides = [1, 1]} : vector<8x128xf32> to vector<1x128xf32>
    %117 = arith.maximumf %115, %116 : vector<1x128xf32>
    %118 = vector.extract_strided_slice %117 {offsets = [0, 0], sizes = [1, 16], strides = [1, 1]} : vector<1x128xf32> to vector<1x16xf32>
    %119 = vector.extract_strided_slice %117 {offsets = [0, 16], sizes = [1, 16], strides = [1, 1]} : vector<1x128xf32> to vector<1x16xf32>
    %120 = arith.maximumf %118, %119 : vector<1x16xf32>
    %c0_57 = arith.constant 0 : index
    %c4 = arith.constant 4 : index
    %c16_58 = arith.constant 16 : index
    %121 = vector.load %arg4[%c0_57, %c4, %c16_58] : memref<1x6x96xf32, #tpu.memory_space<vmem>>, vector<1x1x16xf32>
    %122 = vector.shape_cast %121 : vector<1x1x16xf32> to vector<1x16xf32>
    %123 = vector.shape_cast %120 : vector<1x16xf32> to vector<1x1x16xf32>
    tpu.vector_store %arg4[%c0_57, %c4, %c16_58], %123 {strides = array<i32>} : memref<1x6x96xf32, #tpu.memory_space<vmem>>, vector<1x1x16xf32>,
    %124 = vector.extract_strided_slice %117 {offsets = [0, 32], sizes = [1, 16], strides = [1, 1]} : vector<1x128xf32> to vector<1x16xf32>
    %125 = vector.extract_strided_slice %117 {offsets = [0, 48], sizes = [1, 16], strides = [1, 1]} : vector<1x128xf32> to vector<1x16xf32>
    %126 = arith.maximumf %124, %125 : vector<1x16xf32>
    %c0_59 = arith.constant 0 : index
    %c4_60 = arith.constant 4 : index
    %c32_61 = arith.constant 32 : index
    %127 = vector.load %arg4[%c0_59, %c4_60, %c32_61] : memref<1x6x96xf32, #tpu.memory_space<vmem>>, vector<1x1x16xf32>
    %128 = vector.shape_cast %127 : vector<1x1x16xf32> to vector<1x16xf32>
    %129 = vector.shape_cast %126 : vector<1x16xf32> to vector<1x1x16xf32>
    tpu.vector_store %arg4[%c0_59, %c4_60, %c32_61], %129 {strides = array<i32>} : memref<1x6x96xf32, #tpu.memory_space<vmem>>, vector<1x1x16xf32>,
    %130 = vector.extract_strided_slice %117 {offsets = [0, 64], sizes = [1, 16], strides = [1, 1]} : vector<1x128xf32> to vector<1x16xf32>
    %131 = vector.extract_strided_slice %117 {offsets = [0, 80], sizes = [1, 16], strides = [1, 1]} : vector<1x128xf32> to vector<1x16xf32>
    %132 = arith.maximumf %130, %131 : vector<1x16xf32>
    %c0_62 = arith.constant 0 : index
    %c4_63 = arith.constant 4 : index
    %c48_64 = arith.constant 48 : index
    %133 = vector.load %arg4[%c0_62, %c4_63, %c48_64] : memref<1x6x96xf32, #tpu.memory_space<vmem>>, vector<1x1x16xf32>
    %134 = vector.shape_cast %133 : vector<1x1x16xf32> to vector<1x16xf32>
    %135 = vector.shape_cast %132 : vector<1x16xf32> to vector<1x1x16xf32>
    tpu.vector_store %arg4[%c0_62, %c4_63, %c48_64], %135 {strides = array<i32>} : memref<1x6x96xf32, #tpu.memory_space<vmem>>, vector<1x1x16xf32>,
    %136 = vector.extract_strided_slice %117 {offsets = [0, 96], sizes = [1, 16], strides = [1, 1]} : vector<1x128xf32> to vector<1x16xf32>
    %137 = vector.extract_strided_slice %117 {offsets = [0, 112], sizes = [1, 16], strides = [1, 1]} : vector<1x128xf32> to vector<1x16xf32>
    %138 = arith.maximumf %136, %137 : vector<1x16xf32>
    %c0_65 = arith.constant 0 : index
    %c4_66 = arith.constant 4 : index
    %c64_67 = arith.constant 64 : index
    %139 = vector.load %arg4[%c0_65, %c4_66, %c64_67] : memref<1x6x96xf32, #tpu.memory_space<vmem>>, vector<1x1x16xf32>
    %140 = vector.shape_cast %139 : vector<1x1x16xf32> to vector<1x16xf32>
    %141 = vector.shape_cast %138 : vector<1x16xf32> to vector<1x1x16xf32>
    tpu.vector_store %arg4[%c0_65, %c4_66, %c64_67], %141 {strides = array<i32>} : memref<1x6x96xf32, #tpu.memory_space<vmem>>, vector<1x1x16xf32>,
    return
  }
  func.func @transform_0(%arg0: i32) -> (i32, i32, i32) {
    %c0_i32 = arith.constant 0 : i32
    %c0_i32_0 = arith.constant 0 : i32
    %c0_i32_1 = arith.constant 0 : i32
    return %arg0, %c0_i32, %c0_i32_0 : i32, i32, i32
  }
  func.func @transform_1(%arg0: i32) -> (i32, i32, i32) {
    %c0_i32 = arith.constant 0 : i32
    %c0_i32_0 = arith.constant 0 : i32
    %c0_i32_1 = arith.constant 0 : i32
    %c0_i32_2 = arith.constant 0 : i32
    return %c0_i32, %c0_i32_0, %c0_i32_1 : i32, i32, i32
  }
  func.func @transform_2(%arg0: i32) -> (i32, i32) {
    %c0_i32 = arith.constant 0 : i32
    %c0_i32_0 = arith.constant 0 : i32
    %c0_i32_1 = arith.constant 0 : i32
    return %c0_i32, %c0_i32_0 : i32, i32
  }
  func.func @transform_3(%arg0: i32) -> (i32, i32, i32) {
    %c0_i32 = arith.constant 0 : i32
    %c0_i32_0 = arith.constant 0 : i32
    %c0_i32_1 = arith.constant 0 : i32
    return %arg0, %c0_i32, %c0_i32_0 : i32, i32, i32
  }
}

module attributes {stable_mosaic.version = 11 : i64} {
  func.func @_tail_kernel(%arg0: i32, %arg1: memref<2x64xf32, #tpu.memory_space<vmem>>, %arg2: memref<64x32xbf16, #tpu.memory_space<vmem>>, %arg3: memref<1x32xf32, #tpu.memory_space<vmem>>, %arg4: memref<32x32xbf16, #tpu.memory_space<vmem>>, %arg5: memref<1x32xf32, #tpu.memory_space<vmem>>, %arg6: memref<32x16xbf16, #tpu.memory_space<vmem>>, %arg7: memref<1x16xf32, #tpu.memory_space<vmem>>, %arg8: memref<2x32xf32, #tpu.memory_space<vmem>>, %arg9: memref<2x16xf32, #tpu.memory_space<vmem>>) attributes {dimension_semantics = [#tpu.dimension_semantics<parallel>], iteration_bounds = array<i64: 1>, scalar_prefetch = 0 : i64, scratch_operands = 0 : i64, tpu.core_type = #tpu.core_type<tc>, window_params = [{transform_indices = @transform_0, window_bounds = array<i64: 2, 64>}, {pipeline_mode = #tpu.pipeline_mode<synchronous>, transform_indices = @transform_1, window_bounds = array<i64: 64, 32>}, {pipeline_mode = #tpu.pipeline_mode<synchronous>, transform_indices = @transform_2, window_bounds = array<i64: 1, 32>}, {pipeline_mode = #tpu.pipeline_mode<synchronous>, transform_indices = @transform_3, window_bounds = array<i64: 32, 32>}, {pipeline_mode = #tpu.pipeline_mode<synchronous>, transform_indices = @transform_4, window_bounds = array<i64: 1, 32>}, {pipeline_mode = #tpu.pipeline_mode<synchronous>, transform_indices = @transform_5, window_bounds = array<i64: 32, 16>}, {pipeline_mode = #tpu.pipeline_mode<synchronous>, transform_indices = @transform_6, window_bounds = array<i64: 1, 16>}, {transform_indices = @transform_7, window_bounds = array<i64: 2, 32>}, {transform_indices = @transform_8, window_bounds = array<i64: 2, 16>}]} {
    %c0 = arith.constant 0 : index
    %c0_0 = arith.constant 0 : index
    %0 = vector.load %arg1[%c0, %c0_0] : memref<2x64xf32, #tpu.memory_space<vmem>>, vector<2x64xf32>
    %1 = arith.truncf %0 : vector<2x64xf32> to vector<2x64xbf16>
    %c0_1 = arith.constant 0 : index
    %c0_2 = arith.constant 0 : index
    %2 = vector.load %arg2[%c0_1, %c0_2] : memref<64x32xbf16, #tpu.memory_space<vmem>>, vector<64x32xbf16>
    %cst = arith.constant dense<0.000000e+00> : vector<2x32xf32>
    %3 = tpu.matmul %1, %2, %cst {dimension_numbers = #tpu.dot_dimension_numbers<[1], [0], [0], [1], [0, 0, 1, 1], [], []>} : vector<2x64xbf16>, vector<64x32xbf16>, vector<2x32xf32> -> vector<2x32xf32>
    %c0_3 = arith.constant 0 : index
    %c0_4 = arith.constant 0 : index
    %4 = vector.load %arg3[%c0_3, %c0_4] : memref<1x32xf32, #tpu.memory_space<vmem>>, vector<1x32xf32>
    %5 = vector.broadcast %4 : vector<1x32xf32> to vector<2x32xf32>
    %6 = arith.addf %3, %5 : vector<2x32xf32>
    %7 = arith.mulf %6, %6 : vector<2x32xf32>
    %cst_5 = arith.constant dense<0.000000e+00> : vector<2xf32>
    %8 = vector.multi_reduction <add>, %7, %cst_5 [1] : vector<2x32xf32> to vector<2xf32>
    %9 = vector.shape_cast %8 : vector<2xf32> to vector<2x1xf32>
    %cst_6 = arith.constant 1.000000e-24 : f32
    %10 = vector.broadcast %cst_6 : f32 to vector<2x1xf32>
    %11 = arith.maximumf %9, %10 : vector<2x1xf32>
    %12 = math.rsqrt %11 : vector<2x1xf32>
    %13 = vector.broadcast %12 : vector<2x1xf32> to vector<2x32xf32>
    %14 = arith.mulf %6, %13 : vector<2x32xf32>
    %c0_7 = arith.constant 0 : index
    %c0_8 = arith.constant 0 : index
    %15 = vector.load %arg8[%c0_7, %c0_8] : memref<2x32xf32, #tpu.memory_space<vmem>>, vector<2x32xf32>
    tpu.vector_store %arg8[%c0_7, %c0_8], %14 {strides = array<i32>} : memref<2x32xf32, #tpu.memory_space<vmem>>, vector<2x32xf32>,
    %16 = arith.truncf %14 : vector<2x32xf32> to vector<2x32xbf16>
    %c0_9 = arith.constant 0 : index
    %c0_10 = arith.constant 0 : index
    %17 = vector.load %arg4[%c0_9, %c0_10] : memref<32x32xbf16, #tpu.memory_space<vmem>>, vector<32x32xbf16>
    %cst_11 = arith.constant dense<0.000000e+00> : vector<2x32xf32>
    %18 = tpu.matmul %16, %17, %cst_11 {dimension_numbers = #tpu.dot_dimension_numbers<[1], [0], [0], [1], [0, 0, 1, 1], [], []>} : vector<2x32xbf16>, vector<32x32xbf16>, vector<2x32xf32> -> vector<2x32xf32>
    %c0_12 = arith.constant 0 : index
    %c0_13 = arith.constant 0 : index
    %19 = vector.load %arg5[%c0_12, %c0_13] : memref<1x32xf32, #tpu.memory_space<vmem>>, vector<1x32xf32>
    %20 = vector.broadcast %19 : vector<1x32xf32> to vector<2x32xf32>
    %21 = arith.addf %18, %20 : vector<2x32xf32>
    %cst_14 = arith.constant 0.000000e+00 : f32
    %22 = vector.broadcast %cst_14 : f32 to vector<2x32xf32>
    %23 = arith.maximumf %21, %22 : vector<2x32xf32>
    %24 = arith.truncf %23 : vector<2x32xf32> to vector<2x32xbf16>
    %c0_15 = arith.constant 0 : index
    %c0_16 = arith.constant 0 : index
    %25 = vector.load %arg6[%c0_15, %c0_16] : memref<32x16xbf16, #tpu.memory_space<vmem>>, vector<32x16xbf16>
    %cst_17 = arith.constant dense<0.000000e+00> : vector<2x16xf32>
    %26 = tpu.matmul %24, %25, %cst_17 {dimension_numbers = #tpu.dot_dimension_numbers<[1], [0], [0], [1], [0, 0, 1, 1], [], []>} : vector<2x32xbf16>, vector<32x16xbf16>, vector<2x16xf32> -> vector<2x16xf32>
    %c0_18 = arith.constant 0 : index
    %c0_19 = arith.constant 0 : index
    %27 = vector.load %arg7[%c0_18, %c0_19] : memref<1x16xf32, #tpu.memory_space<vmem>>, vector<1x16xf32>
    %28 = vector.broadcast %27 : vector<1x16xf32> to vector<2x16xf32>
    %29 = arith.addf %26, %28 : vector<2x16xf32>
    %c0_20 = arith.constant 0 : index
    %c0_21 = arith.constant 0 : index
    %30 = vector.load %arg9[%c0_20, %c0_21] : memref<2x16xf32, #tpu.memory_space<vmem>>, vector<2x16xf32>
    tpu.vector_store %arg9[%c0_20, %c0_21], %29 {strides = array<i32>} : memref<2x16xf32, #tpu.memory_space<vmem>>, vector<2x16xf32>,
    return
  }
  func.func @transform_0(%arg0: i32) -> (i32, i32) {
    %c0_i32 = arith.constant 0 : i32
    %c0_i32_0 = arith.constant 0 : i32
    return %arg0, %c0_i32 : i32, i32
  }
  func.func @transform_1(%arg0: i32) -> (i32, i32) {
    %c0_i32 = arith.constant 0 : i32
    %c0_i32_0 = arith.constant 0 : i32
    %c0_i32_1 = arith.constant 0 : i32
    return %c0_i32, %c0_i32_0 : i32, i32
  }
  func.func @transform_2(%arg0: i32) -> (i32, i32) {
    %c0_i32 = arith.constant 0 : i32
    %c0_i32_0 = arith.constant 0 : i32
    %c0_i32_1 = arith.constant 0 : i32
    return %c0_i32, %c0_i32_0 : i32, i32
  }
  func.func @transform_3(%arg0: i32) -> (i32, i32) {
    %c0_i32 = arith.constant 0 : i32
    %c0_i32_0 = arith.constant 0 : i32
    %c0_i32_1 = arith.constant 0 : i32
    return %c0_i32, %c0_i32_0 : i32, i32
  }
  func.func @transform_4(%arg0: i32) -> (i32, i32) {
    %c0_i32 = arith.constant 0 : i32
    %c0_i32_0 = arith.constant 0 : i32
    %c0_i32_1 = arith.constant 0 : i32
    return %c0_i32, %c0_i32_0 : i32, i32
  }
  func.func @transform_5(%arg0: i32) -> (i32, i32) {
    %c0_i32 = arith.constant 0 : i32
    %c0_i32_0 = arith.constant 0 : i32
    %c0_i32_1 = arith.constant 0 : i32
    return %c0_i32, %c0_i32_0 : i32, i32
  }
  func.func @transform_6(%arg0: i32) -> (i32, i32) {
    %c0_i32 = arith.constant 0 : i32
    %c0_i32_0 = arith.constant 0 : i32
    %c0_i32_1 = arith.constant 0 : i32
    return %c0_i32, %c0_i32_0 : i32, i32
  }
  func.func @transform_7(%arg0: i32) -> (i32, i32) {
    %c0_i32 = arith.constant 0 : i32
    %c0_i32_0 = arith.constant 0 : i32
    return %arg0, %c0_i32 : i32, i32
  }
  func.func @transform_8(%arg0: i32) -> (i32, i32) {
    %c0_i32 = arith.constant 0 : i32
    %c0_i32_0 = arith.constant 0 : i32
    return %arg0, %c0_i32 : i32, i32
  }
}

</mosaic_0001>

<llo_original>
// kernel: simclr_forward.6
$region0: #{simclr_forward.6}
  #allocation0 [shape = 'u32[]', space=smem, size = 0x4, offset = 0x4, fixed_abs, tag = 'smem constant byte address 0x4 - core index']
  #allocation1 [shape = 'u32[144,128]{1,0:T(1,128)}', space=vmem, size = 0x12000, scoped, tag = 'internal scratch']
  %s0 = inlined_call_operand.vmem [shape: f32[2,10,80], index: 0, kind: input, shape index: {}]
  %s1 = inlined_call_operand.vmem [shape: bf16[3,80,128], index: 1, kind: input, shape index: {}]
  %s2 = inlined_call_operand.vmem [shape: f32[1,128], index: 2, kind: input, shape index: {}]
  %s3 = inlined_call_operand.vmem [shape: f32[2,6,96], index: 3, kind: output, shape index: {}]
  %s4 = sld [smem:[#allocation0]]
  $region45: #{simclr_forward.6} parent=0
    _
  %s6 = ssub.s32 1, %s4
  %s7 = scalar_select 0, %s6, %s4
  loop: start=0, step=1, limit=4
  $region2: #{simclr_forward.6} parent=0 // loop_pre_header
    _
  $region3: #{simclr_forward.6} parent=0 // loop_header
    %s9 = sphi 0, %s13
    %p10 = scmp.ge.s32.totalorder %s9, 4
    %s19 = sphi 0, %s21
    %s22 = sphi 0, %s19
    %s23 = sphi 0, %s22
    %s39 = sphi 0, %s23
    %s43 = sphi 0, %s43
    %s45 = sphi 0, %s43
    %s46 = sphi 0, %s45
    %s60 = sphi 0, %s46
    %s64 = sphi 0, %s64
    %s66 = sphi 0, %s64
    %s67 = sphi 0, %s66
    %s81 = sphi 0, %s67
    %s87 = sphi 0, %s89
    %s90 = sphi 0, %s87
    %s91 = sphi 0, %s90
    %s107 = sphi 0, %s91
  $region4: #{simclr_forward.6} parent=0 // loop_header_branch
    %12 = sbr.rel (%p10) target = $region8
  $region5: #{simclr_forward.6} parent=0 // loop_body
    %s14 = ssub.s32 %s9, 1
    %s15 = ssub.s32 %s9, 2
    %s16 = sadd.s32 %s9, 1
    %s17 = ssub.s32 %s9, %s16
    %p18 = scmp.eq.s32.totalorder %s17, 0
    %s20 = sadd.s32 %s19, 1
    %s21 = scalar_select %p18, %s19, %s20
    %p24 = pneg %p18
    %p25 = scmp.eq.s32.totalorder %s9, 1
    %p26 = por %p24, %p25
    %p27 = scmp.ne.s32.totalorder %s19, %s22
    %p28 = scmp.eq.s32.totalorder %s9, 0
    %p29 = por %p27, %p28
    %p30 = scmp.ne.s32.totalorder %s19, %s22
    %p31 = scmp.eq.s32.totalorder %s14, 1
    %p32 = por %p30, %p31
    %p33 = scmp.ne.s32.totalorder %s22, %s23
    %p34 = scmp.eq.s32.totalorder %s14, 0
    %p35 = por %p33, %p34
    %p36 = scmp.ne.s32.totalorder %s22, %s23
    %p37 = scmp.eq.s32.totalorder %s15, 1
    %p38 = por %p36, %p37
    %p40 = scmp.ne.s32.totalorder %s23, %s39
    %p41 = scmp.eq.s32.totalorder %s15, 0
    %p42 = por %p40, %p41
    %s44 = sadd.s32 %s43, 1
    %p47 = scmp.eq.s32.totalorder %s9, 1
    %p48 = scmp.ne.s32.totalorder %s43, %s45
    %p49 = scmp.eq.s32.totalorder %s9, 0
    %p50 = por %p48, %p49
    %p51 = scmp.ne.s32.totalorder %s43, %s45
    %p52 = scmp.eq.s32.totalorder %s14, 1
    %p53 = por %p51, %p52
    %p54 = scmp.ne.s32.totalorder %s45, %s46
    %p55 = scmp.eq.s32.totalorder %s14, 0
    %p56 = por %p54, %p55
    %p57 = scmp.ne.s32.totalorder %s45, %s46
    %p58 = scmp.eq.s32.totalorder %s15, 1
    %p59 = por %p57, %p58
    %p61 = scmp.ne.s32.totalorder %s46, %s60
    %p62 = scmp.eq.s32.totalorder %s15, 0
    %p63 = por %p61, %p62
    %s65 = sadd.s32 %s64, 1
    %p68 = scmp.eq.s32.totalorder %s9, 1
    %p69 = scmp.ne.s32.totalorder %s64, %s66
    %p70 = scmp.eq.s32.totalorder %s9, 0
    %p71 = por %p69, %p70
    %p72 = scmp.ne.s32.totalorder %s64, %s66
    %p73 = scmp.eq.s32.totalorder %s14, 1
    %p74 = por %p72, %p73
    %p75 = scmp.ne.s32.totalorder %s66, %s67
    %p76 = scmp.eq.s32.totalorder %s14, 0
    %p77 = por %p75, %p76
    %p78 = scmp.ne.s32.totalorder %s66, %s67
    %p79 = scmp.eq.s32.totalorder %s15, 1
    %p80 = por %p78, %p79
    %p82 = scmp.ne.s32.totalorder %s67, %s81
    %p83 = scmp.eq.s32.totalorder %s15, 0
    %p84 = por %p82, %p83
    %s85 = ssub.s32 %s9, %s16
    %p86 = scmp.eq.s32.totalorder %s85, 0
    %s88 = sadd.s32 %s87, 1
    %s89 = scalar_select %p86, %s87, %s88
    %p92 = pneg %p86
    %p93 = scmp.eq.s32.totalorder %s9, 1
    %p94 = por %p92, %p93
    %p95 = scmp.ne.s32.totalorder %s87, %s90
    %p96 = scmp.eq.s32.totalorder %s9, 0
    %p97 = por %p95, %p96
    %p98 = scmp.ne.s32.totalorder %s87, %s90
    %p99 = scmp.eq.s32.totalorder %s14, 1
    %p100 = por %p98, %p99
    %p101 = scmp.ne.s32.totalorder %s90, %s91
    %p102 = scmp.eq.s32.totalorder %s14, 0
    %p103 = por %p101, %p102
    %p104 = scmp.ne.s32.totalorder %s90, %s91
    %p105 = scmp.eq.s32.totalorder %s15, 1
    %p106 = por %p104, %p105
    %p108 = scmp.ne.s32.totalorder %s91, %s107
    %p109 = scmp.eq.s32.totalorder %s15, 0
    %p110 = por %p108, %p109
    %p111 = scmp.le.s32.totalorder 1, %s9
    %p112 = scmp.lt.s32.totalorder %s9, 3
    %p113 = pnand %p111, %p112
    %p114 = pneg %p113
    // Predicated region
    $region9: #{simclr_forward.6} parent=5 // pred_check
      _
    $region10: #{simclr_forward.6} parent=5 // pred_check_branch
      %116 = sbr.rel (%p113) target = $region12
    $region11: #{simclr_forward.6} parent=5 // pred_region
      %s117 = ssub.s32 %s9, 1
      // Predicated region
      $region13: #{simclr_forward.6} parent=11 // pred_check
        %p118 = pneg %p56
      $region14: #{simclr_forward.6} parent=11 // pred_check_branch
        %120 = sbr.rel (%p118) target = $region16
      $region15: #{simclr_forward.6} parent=11 // pred_region
        _
      $region16: #{simclr_forward.6} parent=11 // pred_fallthru
        _
      // Predicated region
      $region17: #{simclr_forward.6} parent=11 // pred_check
        %p121 = pneg %p77
      $region18: #{simclr_forward.6} parent=11 // pred_check_branch
        %123 = sbr.rel (%p121) target = $region20
      $region19: #{simclr_forward.6} parent=11 // pred_region
        _
      $region20: #{simclr_forward.6} parent=11 // pred_fallthru
        _
    $region12: #{simclr_forward.6} parent=5 // pred_fallthru
      _
    %p124 = scmp.lt.s32.totalorder %s9, 2
    // Predicated region
    $region21: #{simclr_forward.6} parent=5 // pred_check
      %p125 = pneg %p124
    $region22: #{simclr_forward.6} parent=5 // pred_check_branch
      %127 = sbr.rel (%p125) target = $region24
    $region23: #{simclr_forward.6} parent=5 // pred_region
      // Predicated region
      $region25: #{simclr_forward.6} parent=23 // pred_check
        %p128 = pneg %p29
      $region26: #{simclr_forward.6} parent=23 // pred_check_branch
        %130 = sbr.rel (%p128) target = $region28
      $region27: #{simclr_forward.6} parent=23 // pred_region
        %p131 = scmp.lt.s32.totalorder %s9, 1
        %s132 = scalar_select %p131, %s9, 1
        %s133 = smul.addr %s132, 2
        %s134 = smul.addr %s133, 8
        %s135 = scalar_lea.vmem %s0, %s134
      $region28: #{simclr_forward.6} parent=23 // pred_fallthru
        _
    $region24: #{simclr_forward.6} parent=5 // pred_fallthru
      _
    %p136 = scmp.le.s32.totalorder 1, %s9
    %p137 = scmp.lt.s32.totalorder %s9, 3
    %p138 = pnand %p136, %p137
    %p139 = pneg %p138
    // Predicated region
    $region29: #{simclr_forward.6} parent=5 // pred_check
      _
    $region30: #{simclr_forward.6} parent=5 // pred_check_branch
      %141 = sbr.rel (%p138) target = $region32
    $region31: #{simclr_forward.6} parent=5 // pred_region
      %s142 = ssub.s32 %s9, 1
      %p143 = scmp.lt.s32.totalorder %s14, 1
      %s144 = scalar_select %p143, %s14, 1
      %s145 = smul.addr %s144, 2
      %s146 = smul.addr %s145, 8
      %s147 = scalar_lea.vmem %s0, %s146
      %p148 = pneg %p35
      %p149 = pneg %p32
      %p150 = pneg %p56
      %p151 = pneg %p53
      %p152 = pneg %p77
      %p153 = pneg %p74
      %p154 = pneg %p103
      %p155 = pneg %p100
      %p156 = scmp.lt.s32.totalorder %s14, 1
      %s157 = scalar_select %p156, %s14, 1
      %s158 = smul.addr %s157, 8
      %s159 = scalar_lea.vmem %s3, %s158
      %p160 = scmp.lt.s32.totalorder %s14, 1
      %s161 = scalar_select %p160, %s14, 1
      %s162 = smul.addr %s161, 2
      %s163 = smul.addr %s162, 8
      %s164 = scalar_lea.vmem %s0, %s163
      %p165 = scmp.lt.s32.totalorder %s14, 1
      %s166 = scalar_select %p165, %s14, 1
      %s167 = smul.addr %s166, 8
      %s168 = scalar_lea.vmem %s3, %s167
      %v170 = vld [vmem:[%s164] sm:$0xff]
      %v171 = vpack.c.bf16 %v170, %v170
      %v172 = vld [vmem:[%s1] sm:$0xf]
      %v173 = vld [vmem:[%s1 + $0x4] sm:$0xf]
      %v174 = vld [vmem:[%s1 + $0x8] sm:$0xf]
      %v175 = vld [vmem:[%s1 + $0xc] sm:$0xf]
      %v176 = vld [vmem:[%s1 + $0x10] sm:$0xf]
      %v177 = vld [vmem:[%s1 + $0x14] sm:$0xf]
      %v178 = vld [vmem:[%s1 + $0x18] sm:$0xf]
      %v179 = vld [vmem:[%s1 + $0x1c] sm:$0xf]
      %v180 = vld [vmem:[%s1 + $0x20] sm:$0xf]
      %v181 = vld [vmem:[%s1 + $0x24] sm:$0xf]
      %v182 = vld [vmem:[%s164 + $0x1] sm:$0xff]
      %v183 = vpack.c.bf16 %v182, %v182
      %s184 = scalar_lea.vmem %s1, 40
      %v185 = vld [vmem:[%s184] sm:$0xf]
      %v186 = vld [vmem:[%s184 + $0x4] sm:$0xf]
      %v187 = vld [vmem:[%s184 + $0x8] sm:$0xf]
      %v188 = vld [vmem:[%s184 + $0xc] sm:$0xf]
      %v189 = vld [vmem:[%s184 + $0x10] sm:$0xf]
      %v190 = vld [vmem:[%s184 + $0x14] sm:$0xf]
      %v191 = vld [vmem:[%s184 + $0x18] sm:$0xf]
      %v192 = vld [vmem:[%s184 + $0x1c] sm:$0xf]
      %v193 = vld [vmem:[%s184 + $0x20] sm:$0xf]
      %v194 = vld [vmem:[%s184 + $0x24] sm:$0xf]
      %v205 = vunpack.c.l.b16 %v185
      %v206 = vunpack.c.l.b16 %v186
      %v207 = vunpack.c.l.b16 %v187
      %v208 = vunpack.c.l.b16 %v188
      %v209 = vunpack.c.l.b16 %v189
      %v210 = vunpack.c.l.b16 %v190
      %v211 = vunpack.c.l.b16 %v191
      %v212 = vunpack.c.l.b16 %v192
      %v213 = vunpack.c.l.b16 %v193
      %v214 = vunpack.c.l.b16 %v194
      %v215 = vpack.c.b16 %v206, %v205
      %v216 = vpack.c.b16 %v208, %v207
      %v217 = vpack.c.b16 %v210, %v209
      %v218 = vpack.c.b16 %v212, %v211
      %v219 = vpack.c.b16 %v214, %v213
      %vm225 = vcmask 654336
      %v227 = vsel %vm225, %v183, 0
      %229 = vmatprep.subr.bf16.mxu0 0
      %230 = vmatpush1.bf16.msra.mxu0 0
      %231 = vmatprep.subr.bf16.mxu0 0
      %232 = vmatpush1.bf16.msra.mxu0 0
      %233 = vmatprep.subr.bf16.mxu0 0
      %234 = vmatpush1.bf16.msra.mxu0 0
      %235 = vmatprep.subr.bf16.mxu0 0
      %236 = vmatpush1.bf16.msra.mxu0 %v219
      %237 = vmatprep.subr.bf16.mxu0 0
      %238 = vmatpush1.bf16.msra.mxu0 %v218
      %239 = vmatprep.subr.bf16.mxu0 0
      %240 = vmatpush1.bf16.msra.mxu0 %v217
      %241 = vmatprep.subr.bf16.mxu0 0
      %242 = vmatpush1.bf16.msra.mxu0 %v216
      %243 = vmatprep.subr.bf16.mxu0 0
      %244 = vmatpush1.bf16.msra.mxu0 %v215
      %245 = vmatprep.subr.bf16.mxu0 0
      %246 = vmatpush2.bf16.msra.mxu0 0
      %247 = vmatprep.subr.bf16.mxu0 0
      %248 = vmatpush2.bf16.msra.mxu0 0
      %249 = vmatprep.subr.bf16.mxu0 0
      %250 = vmatpush2.bf16.msra.mxu0 0
      %251 = vmatprep.subr.bf16.mxu0 0
      %252 = vmatpush2.bf16.msra.mxu0 0
      %253 = vmatprep.subr.bf16.mxu0 0
      %254 = vmatpush2.bf16.msra.mxu0 0
      %255 = vmatprep.subr.bf16.mxu0 0
      %256 = vmatpush2.bf16.msra.mxu0 0
      %257 = vmatprep.subr.bf16.mxu0 0
      %258 = vmatpush2.bf16.msra.mxu0 0
      %259 = vmatprep.subr.bf16.mxu0 0
      %260 = vmatpush2.bf16.msra.mxu0 0
      %261 = vmatprep.mubr.bf16.mxu0 0
      %262 = vmatmul.mubr.bf16.gmra.mxu0 %v227
      %v263 = vpop.f32.mrf.mxu0
      %v264 = vadd.f32 0.0, %v263
      %v265 = vpop.f32.mrf.mxu0
      %v266 = vpop.f32.mrf.mxu0
      %v267 = vpop.f32.mrf.mxu0
      %268 = vdwg.mxu0
      %v279 = vunpack.c.l.b16 %v172
      %v280 = vunpack.c.l.b16 %v173
      %v281 = vunpack.c.l.b16 %v174
      %v282 = vunpack.c.l.b16 %v175
      %v283 = vunpack.c.l.b16 %v176
      %v284 = vunpack.c.l.b16 %v177
      %v285 = vunpack.c.l.b16 %v178
      %v286 = vunpack.c.l.b16 %v179
      %v287 = vunpack.c.l.b16 %v180
      %v288 = vunpack.c.l.b16 %v181
      %v289 = vpack.c.b16 %v280, %v279
      %v290 = vpack.c.b16 %v282, %v281
      %v291 = vpack.c.b16 %v284, %v283
      %v292 = vpack.c.b16 %v286, %v285
      %v293 = vpack.c.b16 %v288, %v287
      %v300 = vsel %vm225, %v171, 0
      %302 = vmatprep.subr.bf16.mxu0 0
      %303 = vmatpush1.bf16.msra.mxu0 0
      %304 = vmatprep.subr.bf16.mxu0 0
      %305 = vmatpush1.bf16.msra.mxu0 0
      %306 = vmatprep.subr.bf16.mxu0 0
      %307 = vmatpush1.bf16.msra.mxu0 0
      %308 = vmatprep.subr.bf16.mxu0 0
      %309 = vmatpush1.bf16.msra.mxu0 %v293
      %310 = vmatprep.subr.bf16.mxu0 0
      %311 = vmatpush1.bf16.msra.mxu0 %v292
      %312 = vmatprep.subr.bf16.mxu0 0
      %313 = vmatpush1.bf16.msra.mxu0 %v291
      %314 = vmatprep.subr.bf16.mxu0 0
      %315 = vmatpush1.bf16.msra.mxu0 %v290
      %316 = vmatprep.subr.bf16.mxu0 0
      %317 = vmatpush1.bf16.msra.mxu0 %v289
      %318 = vmatprep.subr.bf16.mxu0 0
      %319 = vmatpush2.bf16.msra.mxu0 0
      %320 = vmatprep.subr.bf16.mxu0 0
      %321 = vmatpush2.bf16.msra.mxu0 0
      %322 = vmatprep.subr.bf16.mxu0 0
      %323 = vmatpush2.bf16.msra.mxu0 0
      %324 = vmatprep.subr.bf16.mxu0 0
      %325 = vmatpush2.bf16.msra.mxu0 0
      %326 = vmatprep.subr.bf16.mxu0 0
      %327 = vmatpush2.bf16.msra.mxu0 0
      %328 = vmatprep.subr.bf16.mxu0 0
      %329 = vmatpush2.bf16.msra.mxu0 0
      %330 = vmatprep.subr.bf16.mxu0 0
      %331 = vmatpush2.bf16.msra.mxu0 0
      %332 = vmatprep.subr.bf16.mxu0 0
      %333 = vmatpush2.bf16.msra.mxu0 0
      %334 = vmatprep.mubr.bf16.mxu0 0
      %335 = vmatmul.mubr.bf16.gmra.mxu0 %v300
      %v336 = vpop.f32.mrf.mxu0
      %v337 = vadd.f32 %v264, %v336
      %v338 = vpop.f32.mrf.mxu0
      %v339 = vpop.f32.mrf.mxu0
      %v340 = vpop.f32.mrf.mxu0
      %341 = vdwg.mxu0
      %v342 = vld [vmem:[%s164 + $0x2] sm:$0xff]
      %v343 = vpack.c.bf16 %v342, %v342
      %s344 = scalar_lea.vmem %s1, 80
      %v345 = vld [vmem:[%s344] sm:$0xf]
      %v346 = vld [vmem:[%s344 + $0x4] sm:$0xf]
      %v347 = vld [vmem:[%s344 + $0x8] sm:$0xf]
      %v348 = vld [vmem:[%s344 + $0xc] sm:$0xf]
      %v349 = vld [vmem:[%s344 + $0x10] sm:$0xf]
      %v350 = vld [vmem:[%s344 + $0x14] sm:$0xf]
      %v351 = vld [vmem:[%s344 + $0x18] sm:$0xf]
      %v352 = vld [vmem:[%s344 + $0x1c] sm:$0xf]
      %v353 = vld [vmem:[%s344 + $0x20] sm:$0xf]
      %v354 = vld [vmem:[%s344 + $0x24] sm:$0xf]
      %v365 = vunpack.c.l.b16 %v345
      %v366 = vunpack.c.l.b16 %v346
      %v367 = vunpack.c.l.b16 %v347
      %v368 = vunpack.c.l.b16 %v348
      %v369 = vunpack.c.l.b16 %v349
      %v370 = vunpack.c.l.b16 %v350
      %v371 = vunpack.c.l.b16 %v351
      %v372 = vunpack.c.l.b16 %v352
      %v373 = vunpack.c.l.b16 %v353
      %v374 = vunpack.c.l.b16 %v354
      %v375 = vpack.c.b16 %v366, %v365
      %v376 = vpack.c.b16 %v368, %v367
      %v377 = vpack.c.b16 %v370, %v369
      %v378 = vpack.c.b16 %v372, %v371
      %v379 = vpack.c.b16 %v374, %v373
      %v386 = vsel %vm225, %v343, 0
      %388 = vmatprep.subr.bf16.mxu0 0
      %389 = vmatpush1.bf16.msra.mxu0 0
      %390 = vmatprep.subr.bf16.mxu0 0
      %391 = vmatpush1.bf16.msra.mxu0 0
      %392 = vmatprep.subr.bf16.mxu0 0
      %393 = vmatpush1.bf16.msra.mxu0 0
      %394 = vmatprep.subr.bf16.mxu0 0
      %395 = vmatpush1.bf16.msra.mxu0 %v379
      %396 = vmatprep.subr.bf16.mxu0 0
      %397 = vmatpush1.bf16.msra.mxu0 %v378
      %398 = vmatprep.subr.bf16.mxu0 0
      %399 = vmatpush1.bf16.msra.mxu0 %v377
      %400 = vmatprep.subr.bf16.mxu0 0
      %401 = vmatpush1.bf16.msra.mxu0 %v376
      %402 = vmatprep.subr.bf16.mxu0 0
      %403 = vmatpush1.bf16.msra.mxu0 %v375
      %404 = vmatprep.subr.bf16.mxu0 0
      %405 = vmatpush2.bf16.msra.mxu0 0
      %406 = vmatprep.subr.bf16.mxu0 0
      %407 = vmatpush2.bf16.msra.mxu0 0
      %408 = vmatprep.subr.bf16.mxu0 0
      %409 = vmatpush2.bf16.msra.mxu0 0
      %410 = vmatprep.subr.bf16.mxu0 0
      %411 = vmatpush2.bf16.msra.mxu0 0
      %412 = vmatprep.subr.bf16.mxu0 0
      %413 = vmatpush2.bf16.msra.mxu0 0
      %414 = vmatprep.subr.bf16.mxu0 0
      %415 = vmatpush2.bf16.msra.mxu0 0
      %416 = vmatprep.subr.bf16.mxu0 0
      %417 = vmatpush2.bf16.msra.mxu0 0
      %418 = vmatprep.subr.bf16.mxu0 0
      %419 = vmatpush2.bf16.msra.mxu0 0
      %420 = vmatprep.mubr.bf16.mxu0 0
      %421 = vmatmul.mubr.bf16.gmra.mxu0 %v386
      %v422 = vpop.f32.mrf.mxu0
      %v423 = vadd.f32 0.0, %v422
      %v424 = vpop.f32.mrf.mxu0
      %v425 = vpop.f32.mrf.mxu0
      %v426 = vpop.f32.mrf.mxu0
      %427 = vdwg.mxu0
      %v428 = vadd.f32 %v337, %v423
      %v429 = vld [vmem:[%s2] sm:$0x1]
      %v431 = vlaneseq
      %v432 = vshrl.u32 %v431, 7
      %v433 = vsub.s32 0, %v432
      %v434 = vrot.slane %v429, %v433
      %v436 = vadd.f32 %v428, %v434
      %vm437 = vcmp.ge.f32.partialorder %v436, 0.0
      %v438 = vmul.f32 %v436, 0.01
      %v439 = vsel %vm437, %v436, %v438
      %vm440 = vcmask 783360
      %441 = vst.msk [vmem:[%s168] sm:$0x3f] %vm440, 0.0
      %v443 = vrot.slane %v439, 1
      %v445 = vmax.f32 %v439, %v443
      %447 = vrot.lane.b32.xlu0 %v445, 112
      %v448 = vpop.permute.xlu0 %447
      %v450 = vmax.f32 %v445, %v448
      %452 = vrot.lane.b32.xlu0 %v450, 16
      %v453 = vpop.permute.xlu0 %452
      %vm455 = vcmask 254080
      %456 = vst.msk [vmem:[%s168 + $0x1] sm:$0x1] %vm455, %v453
      %vm457 = vcmask 385280
      %458 = vst.msk [vmem:[%s168 + $0x1] sm:$0x1] %vm457, %v450
      %459 = vrot.lane.b32.xlu0 %v450, 112
      %v460 = vpop.permute.xlu0 %459
      %vm462 = vcmask 516480
      %463 = vst.msk [vmem:[%s168 + $0x1] sm:$0x1] %vm462, %v460
      %464 = vrot.lane.b32.xlu0 %v450, 96
      %v465 = vpop.permute.xlu0 %464
      %vm467 = vcmask 647680
      %468 = vst.msk [vmem:[%s168 + $0x1] sm:$0x1] %vm467, %v465
      %vm469 = vcmask 256130
      %470 = vst.msk [vmem:[%s168] sm:$0x4] %vm469, %v453
      %vm471 = vcmask 387330
      %472 = vst.msk [vmem:[%s168] sm:$0x4] %vm471, %v450
      %vm473 = vcmask 518530
      %474 = vst.msk [vmem:[%s168] sm:$0x4] %vm473, %v460
      %vm475 = vcmask 649730
      %476 = vst.msk [vmem:[%s168] sm:$0x4] %vm475, %v465
      %vm477 = vcmask 258180
      %478 = vst.msk [vmem:[%s168 - $0x1] sm:$0x10] %vm477, %v453
      %vm479 = vcmask 389380
      %480 = vst.msk [vmem:[%s168 - $0x1] sm:$0x10] %vm479, %v450
      %vm481 = vcmask 520580
      %482 = vst.msk [vmem:[%s168 - $0x1] sm:$0x10] %vm481, %v460
      %vm483 = vcmask 651780
      %484 = vst.msk [vmem:[%s168 - $0x1] sm:$0x10] %vm483, %v465
      %vm485 = vcmask 260230
      %486 = vst.msk [vmem:[%s168 - $0x2] sm:$0x40] %vm485, %v453
      %vm487 = vcmask 391430
      %488 = vst.msk [vmem:[%s168 - $0x2] sm:$0x40] %vm487, %v450
      %vm489 = vcmask 522630
      %490 = vst.msk [vmem:[%s168 - $0x2] sm:$0x40] %vm489, %v460
      %vm491 = vcmask 653830
      %492 = vst.msk [vmem:[%s168 - $0x2] sm:$0x40] %vm491, %v465
      %p493 = scmp.lt.s32.totalorder %s14, 1
      %s494 = scalar_select %p493, %s14, 1
      %s495 = smul.addr %s494, 8
      %s496 = scalar_lea.vmem %s3, %s495
      // Predicated region
      $region33: #{simclr_forward.6} parent=31 // pred_check
        %p497 = pneg %p100
      $region34: #{simclr_forward.6} parent=31 // pred_check_branch
        %499 = sbr.rel (%p497) target = $region36
      $region35: #{simclr_forward.6} parent=31 // pred_region
        _
      $region36: #{simclr_forward.6} parent=31 // pred_fallthru
        _
    $region32: #{simclr_forward.6} parent=5 // pred_fallthru
      _
    %p500 = scmp.le.s32.totalorder 2, %s9
    // Predicated region
    $region37: #{simclr_forward.6} parent=5 // pred_check
      %p501 = pneg %p500
    $region38: #{simclr_forward.6} parent=5 // pred_check_branch
      %503 = sbr.rel (%p501) target = $region40
    $region39: #{simclr_forward.6} parent=5 // pred_region
      %s504 = ssub.s32 %s9, 2
      // Predicated region
      $region41: #{simclr_forward.6} parent=39 // pred_check
        %p505 = pneg %p106
      $region42: #{simclr_forward.6} parent=39 // pred_check_branch
        %507 = sbr.rel (%p505) target = $region44
      $region43: #{simclr_forward.6} parent=39 // pred_region
        %p508 = scmp.lt.s32.totalorder %s15, 1
        %s509 = scalar_select %p508, %s15, 1
        %s510 = smul.addr %s509, 8
        %s511 = scalar_lea.vmem %s3, %s510
      $region44: #{simclr_forward.6} parent=39 // pred_fallthru
        _
    $region40: #{simclr_forward.6} parent=5 // pred_fallthru
      _
  $region6: #{simclr_forward.6} parent=0 // loop_footer
    %s13 = sadd.s32 1, %s9
  $region7: #{simclr_forward.6} parent=0 // loop_footer_branch
    %8 = sbr.rel target = $region3
  $region8: #{simclr_forward.6} parent=0 // loop_exit
    _

// kernel: simclr_forward.7
$region0: #{simclr_forward.7}
  #allocation0 [shape = 'u32[]', space=smem, size = 0x4, offset = 0x4, fixed_abs, tag = 'smem constant byte address 0x4 - core index']
  #allocation1 [shape = 'u32[144,128]{1,0:T(1,128)}', space=vmem, size = 0x12000, scoped, tag = 'internal scratch']
  %s0 = inlined_call_operand.vmem [shape: f32[2,6,96], index: 0, kind: input, shape index: {}]
  %s1 = inlined_call_operand.vmem [shape: bf16[3,96,128], index: 1, kind: input, shape index: {}]
  %s2 = inlined_call_operand.vmem [shape: f32[1,128], index: 2, kind: input, shape index: {}]
  %s3 = inlined_call_operand.vmem [shape: f32[2,4,128], index: 3, kind: output, shape index: {}]
  %s4 = sld [smem:[#allocation0]]
  $region45: #{simclr_forward.7} parent=0
    _
  %s6 = ssub.s32 1, %s4
  %s7 = scalar_select 0, %s6, %s4
  loop: start=0, step=1, limit=4
  $region2: #{simclr_forward.7} parent=0 // loop_pre_header
    _
  $region3: #{simclr_forward.7} parent=0 // loop_header
    %s9 = sphi 0, %s13
    %p10 = scmp.ge.s32.totalorder %s9, 4
    %s19 = sphi 0, %s21
    %s22 = sphi 0, %s19
    %s23 = sphi 0, %s22
    %s39 = sphi 0, %s23
    %s43 = sphi 0, %s43
    %s45 = sphi 0, %s43
    %s46 = sphi 0, %s45
    %s60 = sphi 0, %s46
    %s64 = sphi 0, %s64
    %s66 = sphi 0, %s64
    %s67 = sphi 0, %s66
    %s81 = sphi 0, %s67
    %s87 = sphi 0, %s89
    %s90 = sphi 0, %s87
    %s91 = sphi 0, %s90
    %s107 = sphi 0, %s91
  $region4: #{simclr_forward.7} parent=0 // loop_header_branch
    %12 = sbr.rel (%p10) target = $region8
  $region5: #{simclr_forward.7} parent=0 // loop_body
    %s14 = ssub.s32 %s9, 1
    %s15 = ssub.s32 %s9, 2
    %s16 = sadd.s32 %s9, 1
    %s17 = ssub.s32 %s9, %s16
    %p18 = scmp.eq.s32.totalorder %s17, 0
    %s20 = sadd.s32 %s19, 1
    %s21 = scalar_select %p18, %s19, %s20
    %p24 = pneg %p18
    %p25 = scmp.eq.s32.totalorder %s9, 1
    %p26 = por %p24, %p25
    %p27 = scmp.ne.s32.totalorder %s19, %s22
    %p28 = scmp.eq.s32.totalorder %s9, 0
    %p29 = por %p27, %p28
    %p30 = scmp.ne.s32.totalorder %s19, %s22
    %p31 = scmp.eq.s32.totalorder %s14, 1
    %p32 = por %p30, %p31
    %p33 = scmp.ne.s32.totalorder %s22, %s23
    %p34 = scmp.eq.s32.totalorder %s14, 0
    %p35 = por %p33, %p34
    %p36 = scmp.ne.s32.totalorder %s22, %s23
    %p37 = scmp.eq.s32.totalorder %s15, 1
    %p38 = por %p36, %p37
    %p40 = scmp.ne.s32.totalorder %s23, %s39
    %p41 = scmp.eq.s32.totalorder %s15, 0
    %p42 = por %p40, %p41
    %s44 = sadd.s32 %s43, 1
    %p47 = scmp.eq.s32.totalorder %s9, 1
    %p48 = scmp.ne.s32.totalorder %s43, %s45
    %p49 = scmp.eq.s32.totalorder %s9, 0
    %p50 = por %p48, %p49
    %p51 = scmp.ne.s32.totalorder %s43, %s45
    %p52 = scmp.eq.s32.totalorder %s14, 1
    %p53 = por %p51, %p52
    %p54 = scmp.ne.s32.totalorder %s45, %s46
    %p55 = scmp.eq.s32.totalorder %s14, 0
    %p56 = por %p54, %p55
    %p57 = scmp.ne.s32.totalorder %s45, %s46
    %p58 = scmp.eq.s32.totalorder %s15, 1
    %p59 = por %p57, %p58
    %p61 = scmp.ne.s32.totalorder %s46, %s60
    %p62 = scmp.eq.s32.totalorder %s15, 0
    %p63 = por %p61, %p62
    %s65 = sadd.s32 %s64, 1
    %p68 = scmp.eq.s32.totalorder %s9, 1
    %p69 = scmp.ne.s32.totalorder %s64, %s66
    %p70 = scmp.eq.s32.totalorder %s9, 0
    %p71 = por %p69, %p70
    %p72 = scmp.ne.s32.totalorder %s64, %s66
    %p73 = scmp.eq.s32.totalorder %s14, 1
    %p74 = por %p72, %p73
    %p75 = scmp.ne.s32.totalorder %s66, %s67
    %p76 = scmp.eq.s32.totalorder %s14, 0
    %p77 = por %p75, %p76
    %p78 = scmp.ne.s32.totalorder %s66, %s67
    %p79 = scmp.eq.s32.totalorder %s15, 1
    %p80 = por %p78, %p79
    %p82 = scmp.ne.s32.totalorder %s67, %s81
    %p83 = scmp.eq.s32.totalorder %s15, 0
    %p84 = por %p82, %p83
    %s85 = ssub.s32 %s9, %s16
    %p86 = scmp.eq.s32.totalorder %s85, 0
    %s88 = sadd.s32 %s87, 1
    %s89 = scalar_select %p86, %s87, %s88
    %p92 = pneg %p86
    %p93 = scmp.eq.s32.totalorder %s9, 1
    %p94 = por %p92, %p93
    %p95 = scmp.ne.s32.totalorder %s87, %s90
    %p96 = scmp.eq.s32.totalorder %s9, 0
    %p97 = por %p95, %p96
    %p98 = scmp.ne.s32.totalorder %s87, %s90
    %p99 = scmp.eq.s32.totalorder %s14, 1
    %p100 = por %p98, %p99
    %p101 = scmp.ne.s32.totalorder %s90, %s91
    %p102 = scmp.eq.s32.totalorder %s14, 0
    %p103 = por %p101, %p102
    %p104 = scmp.ne.s32.totalorder %s90, %s91
    %p105 = scmp.eq.s32.totalorder %s15, 1
    %p106 = por %p104, %p105
    %p108 = scmp.ne.s32.totalorder %s91, %s107
    %p109 = scmp.eq.s32.totalorder %s15, 0
    %p110 = por %p108, %p109
    %p111 = scmp.le.s32.totalorder 1, %s9
    %p112 = scmp.lt.s32.totalorder %s9, 3
    %p113 = pnand %p111, %p112
    %p114 = pneg %p113
    // Predicated region
    $region9: #{simclr_forward.7} parent=5 // pred_check
      _
    $region10: #{simclr_forward.7} parent=5 // pred_check_branch
      %116 = sbr.rel (%p113) target = $region12
    $region11: #{simclr_forward.7} parent=5 // pred_region
      %s117 = ssub.s32 %s9, 1
      // Predicated region
      $region13: #{simclr_forward.7} parent=11 // pred_check
        %p118 = pneg %p56
      $region14: #{simclr_forward.7} parent=11 // pred_check_branch
        %120 = sbr.rel (%p118) target = $region16
      $region15: #{simclr_forward.7} parent=11 // pred_region
        _
      $region16: #{simclr_forward.7} parent=11 // pred_fallthru
        _
      // Predicated region
      $region17: #{simclr_forward.7} parent=11 // pred_check
        %p121 = pneg %p77
      $region18: #{simclr_forward.7} parent=11 // pred_check_branch
        %123 = sbr.rel (%p121) target = $region20
      $region19: #{simclr_forward.7} parent=11 // pred_region
        _
      $region20: #{simclr_forward.7} parent=11 // pred_fallthru
        _
    $region12: #{simclr_forward.7} parent=5 // pred_fallthru
      _
    %p124 = scmp.lt.s32.totalorder %s9, 2
    // Predicated region
    $region21: #{simclr_forward.7} parent=5 // pred_check
      %p125 = pneg %p124
    $region22: #{simclr_forward.7} parent=5 // pred_check_branch
      %127 = sbr.rel (%p125) target = $region24
    $region23: #{simclr_forward.7} parent=5 // pred_region
      // Predicated region
      $region25: #{simclr_forward.7} parent=23 // pred_check
        %p128 = pneg %p29
      $region26: #{simclr_forward.7} parent=23 // pred_check_branch
        %130 = sbr.rel (%p128) target = $region28
      $region27: #{simclr_forward.7} parent=23 // pred_region
        %p131 = scmp.lt.s32.totalorder %s9, 1
        %s132 = scalar_select %p131, %s9, 1
        %s133 = smul.addr %s132, 8
        %s134 = scalar_lea.vmem %s0, %s133
      $region28: #{simclr_forward.7} parent=23 // pred_fallthru
        _
    $region24: #{simclr_forward.7} parent=5 // pred_fallthru
      _
    %p135 = scmp.le.s32.totalorder 1, %s9
    %p136 = scmp.lt.s32.totalorder %s9, 3
    %p137 = pnand %p135, %p136
    %p138 = pneg %p137
    // Predicated region
    $region29: #{simclr_forward.7} parent=5 // pred_check
      _
    $region30: #{simclr_forward.7} parent=5 // pred_check_branch
      %140 = sbr.rel (%p137) target = $region32
    $region31: #{simclr_forward.7} parent=5 // pred_region
      %s141 = ssub.s32 %s9, 1
      %p142 = scmp.lt.s32.totalorder %s14, 1
      %s143 = scalar_select %p142, %s14, 1
      %s144 = smul.addr %s143, 8
      %s145 = scalar_lea.vmem %s0, %s144
      %p146 = pneg %p35
      %p147 = pneg %p32
      %p148 = pneg %p56
      %p149 = pneg %p53
      %p150 = pneg %p77
      %p151 = pneg %p74
      %p152 = pneg %p103
      %p153 = pneg %p100
      %p154 = scmp.lt.s32.totalorder %s14, 1
      %s155 = scalar_select %p154, %s14, 1
      %s156 = smul.addr %s155, 4
      %s157 = scalar_lea.vmem %s3, %s156
      %p158 = scmp.lt.s32.totalorder %s14, 1
      %s159 = scalar_select %p158, %s14, 1
      %s160 = smul.addr %s159, 8
      %s161 = scalar_lea.vmem %s0, %s160
      %p162 = scmp.lt.s32.totalorder %s14, 1
      %s163 = scalar_select %p162, %s14, 1
      %s164 = smul.addr %s163, 4
      %s165 = scalar_lea.vmem %s3, %s164
      %v167 = vld [vmem:[%s161] sm:$0xf]
      %v168 = vpack.c.bf16 %v167, %v167
      %v169 = vld [vmem:[%s1] sm:$0xf]
      %v170 = vld [vmem:[%s1 + $0x4] sm:$0xf]
      %v171 = vld [vmem:[%s1 + $0x8] sm:$0xf]
      %v172 = vld [vmem:[%s1 + $0xc] sm:$0xf]
      %v173 = vld [vmem:[%s1 + $0x10] sm:$0xf]
      %v174 = vld [vmem:[%s1 + $0x14] sm:$0xf]
      %v175 = vld [vmem:[%s1 + $0x18] sm:$0xf]
      %v176 = vld [vmem:[%s1 + $0x1c] sm:$0xf]
      %v177 = vld [vmem:[%s1 + $0x20] sm:$0xf]
      %v178 = vld [vmem:[%s1 + $0x24] sm:$0xf]
      %v179 = vld [vmem:[%s1 + $0x28] sm:$0xf]
      %v180 = vld [vmem:[%s1 + $0x2c] sm:$0xf]
      %v181 = vld [vmem:[%s161 + $0x1] sm:$0xf]
      %v182 = vpack.c.bf16 %v181, %v181
      %s183 = scalar_lea.vmem %s1, 48
      %v184 = vld [vmem:[%s183] sm:$0xf]
      %v185 = vld [vmem:[%s183 + $0x4] sm:$0xf]
      %v186 = vld [vmem:[%s183 + $0x8] sm:$0xf]
      %v187 = vld [vmem:[%s183 + $0xc] sm:$0xf]
      %v188 = vld [vmem:[%s183 + $0x10] sm:$0xf]
      %v189 = vld [vmem:[%s183 + $0x14] sm:$0xf]
      %v190 = vld [vmem:[%s183 + $0x18] sm:$0xf]
      %v191 = vld [vmem:[%s183 + $0x1c] sm:$0xf]
      %v192 = vld [vmem:[%s183 + $0x20] sm:$0xf]
      %v193 = vld [vmem:[%s183 + $0x24] sm:$0xf]
      %v194 = vld [vmem:[%s183 + $0x28] sm:$0xf]
      %v195 = vld [vmem:[%s183 + $0x2c] sm:$0xf]
      %v208 = vunpack.c.l.b16 %v184
      %v209 = vunpack.c.l.b16 %v185
      %v210 = vunpack.c.l.b16 %v186
      %v211 = vunpack.c.l.b16 %v187
      %v212 = vunpack.c.l.b16 %v188
      %v213 = vunpack.c.l.b16 %v189
      %v214 = vunpack.c.l.b16 %v190
      %v215 = vunpack.c.l.b16 %v191
      %v216 = vunpack.c.l.b16 %v192
      %v217 = vunpack.c.l.b16 %v193
      %v218 = vunpack.c.l.b16 %v194
      %v219 = vunpack.c.l.b16 %v195
      %v220 = vpack.c.b16 %v209, %v208
      %v221 = vpack.c.b16 %v211, %v210
      %v222 = vpack.c.b16 %v213, %v212
      %v223 = vpack.c.b16 %v215, %v214
      %v224 = vpack.c.b16 %v217, %v216
      %v225 = vpack.c.b16 %v219, %v218
      %vm232 = vcmask 785408
      %v234 = vsel %vm232, %v182, 0
      %236 = vmatprep.subr.bf16.mxu0 0
      %237 = vmatpush1.bf16.msra.mxu0 0
      %238 = vmatprep.subr.bf16.mxu0 0
      %239 = vmatpush1.bf16.msra.mxu0 0
      %240 = vmatprep.subr.bf16.mxu0 0
      %241 = vmatpush1.bf16.msra.mxu0 %v225
      %242 = vmatprep.subr.bf16.mxu0 0
      %243 = vmatpush1.bf16.msra.mxu0 %v224
      %244 = vmatprep.subr.bf16.mxu0 0
      %245 = vmatpush1.bf16.msra.mxu0 %v223
      %246 = vmatprep.subr.bf16.mxu0 0
      %247 = vmatpush1.bf16.msra.mxu0 %v222
      %248 = vmatprep.subr.bf16.mxu0 0
      %249 = vmatpush1.bf16.msra.mxu0 %v221
      %250 = vmatprep.subr.bf16.mxu0 0
      %251 = vmatpush1.bf16.msra.mxu0 %v220
      %252 = vmatprep.subr.bf16.mxu0 0
      %253 = vmatpush2.bf16.msra.mxu0 0
      %254 = vmatprep.subr.bf16.mxu0 0
      %255 = vmatpush2.bf16.msra.mxu0 0
      %256 = vmatprep.subr.bf16.mxu0 0
      %257 = vmatpush2.bf16.msra.mxu0 0
      %258 = vmatprep.subr.bf16.mxu0 0
      %259 = vmatpush2.bf16.msra.mxu0 0
      %260 = vmatprep.subr.bf16.mxu0 0
      %261 = vmatpush2.bf16.msra.mxu0 0
      %262 = vmatprep.subr.bf16.mxu0 0
      %263 = vmatpush2.bf16.msra.mxu0 0
      %264 = vmatprep.subr.bf16.mxu0 0
      %265 = vmatpush2.bf16.msra.mxu0 0
      %266 = vmatprep.subr.bf16.mxu0 0
      %267 = vmatpush2.bf16.msra.mxu0 0
      %268 = vmatprep.mubr.bf16.mxu0 0
      %269 = vmatmul.mubr.bf16.gmra.mxu0 %v234
      %v270 = vpop.f32.mrf.mxu0
      %v271 = vadd.f32 0.0, %v270
      %v272 = vpop.f32.mrf.mxu0
      %v273 = vpop.f32.mrf.mxu0
      %v274 = vpop.f32.mrf.mxu0
      %275 = vdwg.mxu0
      %v288 = vunpack.c.l.b16 %v169
      %v289 = vunpack.c.l.b16 %v170
      %v290 = vunpack.c.l.b16 %v171
      %v291 = vunpack.c.l.b16 %v172
      %v292 = vunpack.c.l.b16 %v173
      %v293 = vunpack.c.l.b16 %v174
      %v294 = vunpack.c.l.b16 %v175
      %v295 = vunpack.c.l.b16 %v176
      %v296 = vunpack.c.l.b16 %v177
      %v297 = vunpack.c.l.b16 %v178
      %v298 = vunpack.c.l.b16 %v179
      %v299 = vunpack.c.l.b16 %v180
      %v300 = vpack.c.b16 %v289, %v288
      %v301 = vpack.c.b16 %v291, %v290
      %v302 = vpack.c.b16 %v293, %v292
      %v303 = vpack.c.b16 %v295, %v294
      %v304 = vpack.c.b16 %v297, %v296
      %v305 = vpack.c.b16 %v299, %v298
      %v313 = vsel %vm232, %v168, 0
      %315 = vmatprep.subr.bf16.mxu0 0
      %316 = vmatpush1.bf16.msra.mxu0 0
      %317 = vmatprep.subr.bf16.mxu0 0
      %318 = vmatpush1.bf16.msra.mxu0 0
      %319 = vmatprep.subr.bf16.mxu0 0
      %320 = vmatpush1.bf16.msra.mxu0 %v305
      %321 = vmatprep.subr.bf16.mxu0 0
      %322 = vmatpush1.bf16.msra.mxu0 %v304
      %323 = vmatprep.subr.bf16.mxu0 0
      %324 = vmatpush1.bf16.msra.mxu0 %v303
      %325 = vmatprep.subr.bf16.mxu0 0
      %326 = vmatpush1.bf16.msra.mxu0 %v302
      %327 = vmatprep.subr.bf16.mxu0 0
      %328 = vmatpush1.bf16.msra.mxu0 %v301
      %329 = vmatprep.subr.bf16.mxu0 0
      %330 = vmatpush1.bf16.msra.mxu0 %v300
      %331 = vmatprep.subr.bf16.mxu0 0
      %332 = vmatpush2.bf16.msra.mxu0 0
      %333 = vmatprep.subr.bf16.mxu0 0
      %334 = vmatpush2.bf16.msra.mxu0 0
      %335 = vmatprep.subr.bf16.mxu0 0
      %336 = vmatpush2.bf16.msra.mxu0 0
      %337 = vmatprep.subr.bf16.mxu0 0
      %338 = vmatpush2.bf16.msra.mxu0 0
      %339 = vmatprep.subr.bf16.mxu0 0
      %340 = vmatpush2.bf16.msra.mxu0 0
      %341 = vmatprep.subr.bf16.mxu0 0
      %342 = vmatpush2.bf16.msra.mxu0 0
      %343 = vmatprep.subr.bf16.mxu0 0
      %344 = vmatpush2.bf16.msra.mxu0 0
      %345 = vmatprep.subr.bf16.mxu0 0
      %346 = vmatpush2.bf16.msra.mxu0 0
      %347 = vmatprep.mubr.bf16.mxu0 0
      %348 = vmatmul.mubr.bf16.gmra.mxu0 %v313
      %v349 = vpop.f32.mrf.mxu0
      %v350 = vadd.f32 %v271, %v349
      %v351 = vpop.f32.mrf.mxu0
      %v352 = vpop.f32.mrf.mxu0
      %v353 = vpop.f32.mrf.mxu0
      %354 = vdwg.mxu0
      %v355 = vld [vmem:[%s161 + $0x2] sm:$0xf]
      %v356 = vpack.c.bf16 %v355, %v355
      %s357 = scalar_lea.vmem %s1, 96
      %v358 = vld [vmem:[%s357] sm:$0xf]
      %v359 = vld [vmem:[%s357 + $0x4] sm:$0xf]
      %v360 = vld [vmem:[%s357 + $0x8] sm:$0xf]
      %v361 = vld [vmem:[%s357 + $0xc] sm:$0xf]
      %v362 = vld [vmem:[%s357 + $0x10] sm:$0xf]
      %v363 = vld [vmem:[%s357 + $0x14] sm:$0xf]
      %v364 = vld [vmem:[%s357 + $0x18] sm:$0xf]
      %v365 = vld [vmem:[%s357 + $0x1c] sm:$0xf]
      %v366 = vld [vmem:[%s357 + $0x20] sm:$0xf]
      %v367 = vld [vmem:[%s357 + $0x24] sm:$0xf]
      %v368 = vld [vmem:[%s357 + $0x28] sm:$0xf]
      %v369 = vld [vmem:[%s357 + $0x2c] sm:$0xf]
      %v382 = vunpack.c.l.b16 %v358
      %v383 = vunpack.c.l.b16 %v359
      %v384 = vunpack.c.l.b16 %v360
      %v385 = vunpack.c.l.b16 %v361
      %v386 = vunpack.c.l.b16 %v362
      %v387 = vunpack.c.l.b16 %v363
      %v388 = vunpack.c.l.b16 %v364
      %v389 = vunpack.c.l.b16 %v365
      %v390 = vunpack.c.l.b16 %v366
      %v391 = vunpack.c.l.b16 %v367
      %v392 = vunpack.c.l.b16 %v368
      %v393 = vunpack.c.l.b16 %v369
      %v394 = vpack.c.b16 %v383, %v382
      %v395 = vpack.c.b16 %v385, %v384
      %v396 = vpack.c.b16 %v387, %v386
      %v397 = vpack.c.b16 %v389, %v388
      %v398 = vpack.c.b16 %v391, %v390
      %v399 = vpack.c.b16 %v393, %v392
      %v407 = vsel %vm232, %v356, 0
      %409 = vmatprep.subr.bf16.mxu0 0
      %410 = vmatpush1.bf16.msra.mxu0 0
      %411 = vmatprep.subr.bf16.mxu0 0
      %412 = vmatpush1.bf16.msra.mxu0 0
      %413 = vmatprep.subr.bf16.mxu0 0
      %414 = vmatpush1.bf16.msra.mxu0 %v399
      %415 = vmatprep.subr.bf16.mxu0 0
      %416 = vmatpush1.bf16.msra.mxu0 %v398
      %417 = vmatprep.subr.bf16.mxu0 0
      %418 = vmatpush1.bf16.msra.mxu0 %v397
      %419 = vmatprep.subr.bf16.mxu0 0
      %420 = vmatpush1.bf16.msra.mxu0 %v396
      %421 = vmatprep.subr.bf16.mxu0 0
      %422 = vmatpush1.bf16.msra.mxu0 %v395
      %423 = vmatprep.subr.bf16.mxu0 0
      %424 = vmatpush1.bf16.msra.mxu0 %v394
      %425 = vmatprep.subr.bf16.mxu0 0
      %426 = vmatpush2.bf16.msra.mxu0 0
      %427 = vmatprep.subr.bf16.mxu0 0
      %428 = vmatpush2.bf16.msra.mxu0 0
      %429 = vmatprep.subr.bf16.mxu0 0
      %430 = vmatpush2.bf16.msra.mxu0 0
      %431 = vmatprep.subr.bf16.mxu0 0
      %432 = vmatpush2.bf16.msra.mxu0 0
      %433 = vmatprep.subr.bf16.mxu0 0
      %434 = vmatpush2.bf16.msra.mxu0 0
      %435 = vmatprep.subr.bf16.mxu0 0
      %436 = vmatpush2.bf16.msra.mxu0 0
      %437 = vmatprep.subr.bf16.mxu0 0
      %438 = vmatpush2.bf16.msra.mxu0 0
      %439 = vmatprep.subr.bf16.mxu0 0
      %440 = vmatpush2.bf16.msra.mxu0 0
      %441 = vmatprep.mubr.bf16.mxu0 0
      %442 = vmatmul.mubr.bf16.gmra.mxu0 %v407
      %v443 = vpop.f32.mrf.mxu0
      %v444 = vadd.f32 0.0, %v443
      %v445 = vpop.f32.mrf.mxu0
      %v446 = vpop.f32.mrf.mxu0
      %v447 = vpop.f32.mrf.mxu0
      %448 = vdwg.mxu0
      %v449 = vadd.f32 %v350, %v444
      %v450 = vld [vmem:[%s2] sm:$0x1]
      %v452 = vlaneseq
      %v453 = vshrl.u32 %v452, 7
      %v454 = vsub.s32 0, %v453
      %v455 = vrot.slane %v450, %v454
      %v457 = vadd.f32 %v449, %v455
      %vm458 = vcmp.ge.f32.partialorder %v457, 0.0
      %v459 = vmul.f32 %v457, 0.01
      %v460 = vsel %vm458, %v457, %v459
      %461 = vst [vmem:[%s165] sm:$0xf] 0.0
      %v463 = vrot.slane %v460, 1
      %v465 = vmax.f32 %v460, %v463
      %467 = vrot.lane.b32.xlu0 %v465, 96
      %v468 = vpop.permute.xlu0 %467
      %v470 = vmax.f32 %v465, %v468
      %472 = vrot.lane.b32.xlu0 %v470, 32
      %v473 = vpop.permute.xlu0 %472
      %vm475 = vcmask 516352
      %476 = vst.msk [vmem:[%s165 + $0x1] sm:$0x1] %vm475, %v473
      %vm477 = vcmask 778752
      %478 = vst.msk [vmem:[%s165 + $0x1] sm:$0x1] %vm477, %v470
      %vm479 = vcmask 518402
      %480 = vst.msk [vmem:[%s165] sm:$0x4] %vm479, %v473
      %vm481 = vcmask 780802
      %482 = vst.msk [vmem:[%s165] sm:$0x4] %vm481, %v470
      %p483 = scmp.lt.s32.totalorder %s14, 1
      %s484 = scalar_select %p483, %s14, 1
      %s485 = smul.addr %s484, 4
      %s486 = scalar_lea.vmem %s3, %s485
      // Predicated region
      $region33: #{simclr_forward.7} parent=31 // pred_check
        %p487 = pneg %p100
      $region34: #{simclr_forward.7} parent=31 // pred_check_branch
        %489 = sbr.rel (%p487) target = $region36
      $region35: #{simclr_forward.7} parent=31 // pred_region
        _
      $region36: #{simclr_forward.7} parent=31 // pred_fallthru
        _
    $region32: #{simclr_forward.7} parent=5 // pred_fallthru
      _
    %p490 = scmp.le.s32.totalorder 2, %s9
    // Predicated region
    $region37: #{simclr_forward.7} parent=5 // pred_check
      %p491 = pneg %p490
    $region38: #{simclr_forward.7} parent=5 // pred_check_branch
      %493 = sbr.rel (%p491) target = $region40
    $region39: #{simclr_forward.7} parent=5 // pred_region
      %s494 = ssub.s32 %s9, 2
      // Predicated region
      $region41: #{simclr_forward.7} parent=39 // pred_check
        %p495 = pneg %p106
      $region42: #{simclr_forward.7} parent=39 // pred_check_branch
        %497 = sbr.rel (%p495) target = $region44
      $region43: #{simclr_forward.7} parent=39 // pred_region
        %p498 = scmp.lt.s32.totalorder %s15, 1
        %s499 = scalar_select %p498, %s15, 1
        %s500 = smul.addr %s499, 4
        %s501 = scalar_lea.vmem %s3, %s500
      $region44: #{simclr_forward.7} parent=39 // pred_fallthru
        _
    $region40: #{simclr_forward.7} parent=5 // pred_fallthru
      _
  $region6: #{simclr_forward.7} parent=0 // loop_footer
    %s13 = sadd.s32 1, %s9
  $region7: #{simclr_forward.7} parent=0 // loop_footer_branch
    %8 = sbr.rel target = $region3
  $region8: #{simclr_forward.7} parent=0 // loop_exit
    _

// kernel: simclr_forward.8
$region0: #{simclr_forward.8}
  #allocation0 [shape = 'u32[]', space=smem, size = 0x4, offset = 0x4, fixed_abs, tag = 'smem constant byte address 0x4 - core index']
  #allocation1 [shape = 'u32[144,128]{1,0:T(1,128)}', space=vmem, size = 0x12000, scoped, tag = 'internal scratch']
  %s0 = inlined_call_operand.vmem [shape: f32[2,4,128], index: 0, kind: input, shape index: {}]
  %s1 = inlined_call_operand.vmem [shape: bf16[3,128,128], index: 1, kind: input, shape index: {}]
  %s2 = inlined_call_operand.vmem [shape: f32[1,128], index: 2, kind: input, shape index: {}]
  %s3 = inlined_call_operand.vmem [shape: f32[2,3,192], index: 3, kind: output, shape index: {}]
  %s4 = sld [smem:[#allocation0]]
  $region45: #{simclr_forward.8} parent=0
    _
  %s6 = ssub.s32 1, %s4
  %s7 = scalar_select 0, %s6, %s4
  loop: start=0, step=1, limit=4
  $region2: #{simclr_forward.8} parent=0 // loop_pre_header
    _
  $region3: #{simclr_forward.8} parent=0 // loop_header
    %s9 = sphi 0, %s13
    %p10 = scmp.ge.s32.totalorder %s9, 4
    %s19 = sphi 0, %s21
    %s22 = sphi 0, %s19
    %s23 = sphi 0, %s22
    %s39 = sphi 0, %s23
    %s43 = sphi 0, %s43
    %s45 = sphi 0, %s43
    %s46 = sphi 0, %s45
    %s60 = sphi 0, %s46
    %s64 = sphi 0, %s64
    %s66 = sphi 0, %s64
    %s67 = sphi 0, %s66
    %s81 = sphi 0, %s67
    %s87 = sphi 0, %s89
    %s90 = sphi 0, %s87
    %s91 = sphi 0, %s90
    %s107 = sphi 0, %s91
  $region4: #{simclr_forward.8} parent=0 // loop_header_branch
    %12 = sbr.rel (%p10) target = $region8
  $region5: #{simclr_forward.8} parent=0 // loop_body
    %s14 = ssub.s32 %s9, 1
    %s15 = ssub.s32 %s9, 2
    %s16 = sadd.s32 %s9, 1
    %s17 = ssub.s32 %s9, %s16
    %p18 = scmp.eq.s32.totalorder %s17, 0
    %s20 = sadd.s32 %s19, 1
    %s21 = scalar_select %p18, %s19, %s20
    %p24 = pneg %p18
    %p25 = scmp.eq.s32.totalorder %s9, 1
    %p26 = por %p24, %p25
    %p27 = scmp.ne.s32.totalorder %s19, %s22
    %p28 = scmp.eq.s32.totalorder %s9, 0
    %p29 = por %p27, %p28
    %p30 = scmp.ne.s32.totalorder %s19, %s22
    %p31 = scmp.eq.s32.totalorder %s14, 1
    %p32 = por %p30, %p31
    %p33 = scmp.ne.s32.totalorder %s22, %s23
    %p34 = scmp.eq.s32.totalorder %s14, 0
    %p35 = por %p33, %p34
    %p36 = scmp.ne.s32.totalorder %s22, %s23
    %p37 = scmp.eq.s32.totalorder %s15, 1
    %p38 = por %p36, %p37
    %p40 = scmp.ne.s32.totalorder %s23, %s39
    %p41 = scmp.eq.s32.totalorder %s15, 0
    %p42 = por %p40, %p41
    %s44 = sadd.s32 %s43, 1
    %p47 = scmp.eq.s32.totalorder %s9, 1
    %p48 = scmp.ne.s32.totalorder %s43, %s45
    %p49 = scmp.eq.s32.totalorder %s9, 0
    %p50 = por %p48, %p49
    %p51 = scmp.ne.s32.totalorder %s43, %s45
    %p52 = scmp.eq.s32.totalorder %s14, 1
    %p53 = por %p51, %p52
    %p54 = scmp.ne.s32.totalorder %s45, %s46
    %p55 = scmp.eq.s32.totalorder %s14, 0
    %p56 = por %p54, %p55
    %p57 = scmp.ne.s32.totalorder %s45, %s46
    %p58 = scmp.eq.s32.totalorder %s15, 1
    %p59 = por %p57, %p58
    %p61 = scmp.ne.s32.totalorder %s46, %s60
    %p62 = scmp.eq.s32.totalorder %s15, 0
    %p63 = por %p61, %p62
    %s65 = sadd.s32 %s64, 1
    %p68 = scmp.eq.s32.totalorder %s9, 1
    %p69 = scmp.ne.s32.totalorder %s64, %s66
    %p70 = scmp.eq.s32.totalorder %s9, 0
    %p71 = por %p69, %p70
    %p72 = scmp.ne.s32.totalorder %s64, %s66
    %p73 = scmp.eq.s32.totalorder %s14, 1
    %p74 = por %p72, %p73
    %p75 = scmp.ne.s32.totalorder %s66, %s67
    %p76 = scmp.eq.s32.totalorder %s14, 0
    %p77 = por %p75, %p76
    %p78 = scmp.ne.s32.totalorder %s66, %s67
    %p79 = scmp.eq.s32.totalorder %s15, 1
    %p80 = por %p78, %p79
    %p82 = scmp.ne.s32.totalorder %s67, %s81
    %p83 = scmp.eq.s32.totalorder %s15, 0
    %p84 = por %p82, %p83
    %s85 = ssub.s32 %s9, %s16
    %p86 = scmp.eq.s32.totalorder %s85, 0
    %s88 = sadd.s32 %s87, 1
    %s89 = scalar_select %p86, %s87, %s88
    %p92 = pneg %p86
    %p93 = scmp.eq.s32.totalorder %s9, 1
    %p94 = por %p92, %p93
    %p95 = scmp.ne.s32.totalorder %s87, %s90
    %p96 = scmp.eq.s32.totalorder %s9, 0
    %p97 = por %p95, %p96
    %p98 = scmp.ne.s32.totalorder %s87, %s90
    %p99 = scmp.eq.s32.totalorder %s14, 1
    %p100 = por %p98, %p99
    %p101 = scmp.ne.s32.totalorder %s90, %s91
    %p102 = scmp.eq.s32.totalorder %s14, 0
    %p103 = por %p101, %p102
    %p104 = scmp.ne.s32.totalorder %s90, %s91
    %p105 = scmp.eq.s32.totalorder %s15, 1
    %p106 = por %p104, %p105
    %p108 = scmp.ne.s32.totalorder %s91, %s107
    %p109 = scmp.eq.s32.totalorder %s15, 0
    %p110 = por %p108, %p109
    %p111 = scmp.le.s32.totalorder 1, %s9
    %p112 = scmp.lt.s32.totalorder %s9, 3
    %p113 = pnand %p111, %p112
    %p114 = pneg %p113
    // Predicated region
    $region9: #{simclr_forward.8} parent=5 // pred_check
      _
    $region10: #{simclr_forward.8} parent=5 // pred_check_branch
      %116 = sbr.rel (%p113) target = $region12
    $region11: #{simclr_forward.8} parent=5 // pred_region
      %s117 = ssub.s32 %s9, 1
      // Predicated region
      $region13: #{simclr_forward.8} parent=11 // pred_check
        %p118 = pneg %p56
      $region14: #{simclr_forward.8} parent=11 // pred_check_branch
        %120 = sbr.rel (%p118) target = $region16
      $region15: #{simclr_forward.8} parent=11 // pred_region
        _
      $region16: #{simclr_forward.8} parent=11 // pred_fallthru
        _
      // Predicated region
      $region17: #{simclr_forward.8} parent=11 // pred_check
        %p121 = pneg %p77
      $region18: #{simclr_forward.8} parent=11 // pred_check_branch
        %123 = sbr.rel (%p121) target = $region20
      $region19: #{simclr_forward.8} parent=11 // pred_region
        _
      $region20: #{simclr_forward.8} parent=11 // pred_fallthru
        _
    $region12: #{simclr_forward.8} parent=5 // pred_fallthru
      _
    %p124 = scmp.lt.s32.totalorder %s9, 2
    // Predicated region
    $region21: #{simclr_forward.8} parent=5 // pred_check
      %p125 = pneg %p124
    $region22: #{simclr_forward.8} parent=5 // pred_check_branch
      %127 = sbr.rel (%p125) target = $region24
    $region23: #{simclr_forward.8} parent=5 // pred_region
      // Predicated region
      $region25: #{simclr_forward.8} parent=23 // pred_check
        %p128 = pneg %p29
      $region26: #{simclr_forward.8} parent=23 // pred_check_branch
        %130 = sbr.rel (%p128) target = $region28
      $region27: #{simclr_forward.8} parent=23 // pred_region
        %p131 = scmp.lt.s32.totalorder %s9, 1
        %s132 = scalar_select %p131, %s9, 1
        %s133 = smul.addr %s132, 4
        %s134 = scalar_lea.vmem %s0, %s133
      $region28: #{simclr_forward.8} parent=23 // pred_fallthru
        _
    $region24: #{simclr_forward.8} parent=5 // pred_fallthru
      _
    %p135 = scmp.le.s32.totalorder 1, %s9
    %p136 = scmp.lt.s32.totalorder %s9, 3
    %p137 = pnand %p135, %p136
    %p138 = pneg %p137
    // Predicated region
    $region29: #{simclr_forward.8} parent=5 // pred_check
      _
    $region30: #{simclr_forward.8} parent=5 // pred_check_branch
      %140 = sbr.rel (%p137) target = $region32
    $region31: #{simclr_forward.8} parent=5 // pred_region
      %s141 = ssub.s32 %s9, 1
      %p142 = scmp.lt.s32.totalorder %s14, 1
      %s143 = scalar_select %p142, %s14, 1
      %s144 = smul.addr %s143, 4
      %s145 = scalar_lea.vmem %s0, %s144
      %p146 = pneg %p35
      %p147 = pneg %p32
      %p148 = pneg %p56
      %p149 = pneg %p53
      %p150 = pneg %p77
      %p151 = pneg %p74
      %p152 = pneg %p103
      %p153 = pneg %p100
      %p154 = scmp.lt.s32.totalorder %s14, 1
      %s155 = scalar_select %p154, %s14, 1
      %s156 = smul.addr %s155, 2
      %s157 = smul.addr %s156, 4
      %s158 = scalar_lea.vmem %s3, %s157
      %p159 = scmp.lt.s32.totalorder %s14, 1
      %s160 = scalar_select %p159, %s14, 1
      %s161 = smul.addr %s160, 4
      %s162 = scalar_lea.vmem %s0, %s161
      %p163 = scmp.lt.s32.totalorder %s14, 1
      %s164 = scalar_select %p163, %s14, 1
      %s165 = smul.addr %s164, 2
      %s166 = smul.addr %s165, 4
      %s167 = scalar_lea.vmem %s3, %s166
      %v169 = vld [vmem:[%s162] sm:$0x3]
      %v170 = vpack.c.bf16 %v169, %v169
      %v171 = vld [vmem:[%s1] sm:$0xf]
      %v172 = vld [vmem:[%s1 + $0x4] sm:$0xf]
      %v173 = vld [vmem:[%s1 + $0x8] sm:$0xf]
      %v174 = vld [vmem:[%s1 + $0xc] sm:$0xf]
      %v175 = vld [vmem:[%s1 + $0x10] sm:$0xf]
      %v176 = vld [vmem:[%s1 + $0x14] sm:$0xf]
      %v177 = vld [vmem:[%s1 + $0x18] sm:$0xf]
      %v178 = vld [vmem:[%s1 + $0x1c] sm:$0xf]
      %v179 = vld [vmem:[%s1 + $0x20] sm:$0xf]
      %v180 = vld [vmem:[%s1 + $0x24] sm:$0xf]
      %v181 = vld [vmem:[%s1 + $0x28] sm:$0xf]
      %v182 = vld [vmem:[%s1 + $0x2c] sm:$0xf]
      %v183 = vld [vmem:[%s1 + $0x30] sm:$0xf]
      %v184 = vld [vmem:[%s1 + $0x34] sm:$0xf]
      %v185 = vld [vmem:[%s1 + $0x38] sm:$0xf]
      %v186 = vld [vmem:[%s1 + $0x3c] sm:$0xf]
      %v187 = vld [vmem:[%s162 + $0x1] sm:$0x3]
      %v188 = vpack.c.bf16 %v187, %v187
      %s189 = scalar_lea.vmem %s1, 64
      %v190 = vld [vmem:[%s189] sm:$0xf]
      %v191 = vld [vmem:[%s189 + $0x4] sm:$0xf]
      %v192 = vld [vmem:[%s189 + $0x8] sm:$0xf]
      %v193 = vld [vmem:[%s189 + $0xc] sm:$0xf]
      %v194 = vld [vmem:[%s189 + $0x10] sm:$0xf]
      %v195 = vld [vmem:[%s189 + $0x14] sm:$0xf]
      %v196 = vld [vmem:[%s189 + $0x18] sm:$0xf]
      %v197 = vld [vmem:[%s189 + $0x1c] sm:$0xf]
      %v198 = vld [vmem:[%s189 + $0x20] sm:$0xf]
      %v199 = vld [vmem:[%s189 + $0x24] sm:$0xf]
      %v200 = vld [vmem:[%s189 + $0x28] sm:$0xf]
      %v201 = vld [vmem:[%s189 + $0x2c] sm:$0xf]
      %v202 = vld [vmem:[%s189 + $0x30] sm:$0xf]
      %v203 = vld [vmem:[%s189 + $0x34] sm:$0xf]
      %v204 = vld [vmem:[%s189 + $0x38] sm:$0xf]
      %v205 = vld [vmem:[%s189 + $0x3c] sm:$0xf]
      %v222 = vunpack.c.l.b16 %v190
      %v223 = vunpack.c.l.b16 %v191
      %v224 = vunpack.c.l.b16 %v192
      %v225 = vunpack.c.l.b16 %v193
      %v226 = vunpack.c.l.b16 %v194
      %v227 = vunpack.c.l.b16 %v195
      %v228 = vunpack.c.l.b16 %v196
      %v229 = vunpack.c.l.b16 %v197
      %v230 = vunpack.c.l.b16 %v198
      %v231 = vunpack.c.l.b16 %v199
      %v232 = vunpack.c.l.b16 %v200
      %v233 = vunpack.c.l.b16 %v201
      %v234 = vunpack.c.l.b16 %v202
      %v235 = vunpack.c.l.b16 %v203
      %v236 = vunpack.c.l.b16 %v204
      %v237 = vunpack.c.l.b16 %v205
      %v238 = vpack.c.b16 %v223, %v222
      %v239 = vpack.c.b16 %v225, %v224
      %v240 = vpack.c.b16 %v227, %v226
      %v241 = vpack.c.b16 %v229, %v228
      %v242 = vpack.c.b16 %v231, %v230
      %v243 = vpack.c.b16 %v233, %v232
      %v244 = vpack.c.b16 %v235, %v234
      %v245 = vpack.c.b16 %v237, %v236
      %254 = vmatprep.subr.bf16.mxu0 0
      %255 = vmatpush1.bf16.msra.mxu0 %v245
      %256 = vmatprep.subr.bf16.mxu0 0
      %257 = vmatpush1.bf16.msra.mxu0 %v244
      %258 = vmatprep.subr.bf16.mxu0 0
      %259 = vmatpush1.bf16.msra.mxu0 %v243
      %260 = vmatprep.subr.bf16.mxu0 0
      %261 = vmatpush1.bf16.msra.mxu0 %v242
      %262 = vmatprep.subr.bf16.mxu0 0
      %263 = vmatpush1.bf16.msra.mxu0 %v241
      %264 = vmatprep.subr.bf16.mxu0 0
      %265 = vmatpush1.bf16.msra.mxu0 %v240
      %266 = vmatprep.subr.bf16.mxu0 0
      %267 = vmatpush1.bf16.msra.mxu0 %v239
      %268 = vmatprep.subr.bf16.mxu0 0
      %269 = vmatpush1.bf16.msra.mxu0 %v238
      %270 = vmatprep.subr.bf16.mxu0 0
      %271 = vmatpush2.bf16.msra.mxu0 0
      %272 = vmatprep.subr.bf16.mxu0 0
      %273 = vmatpush2.bf16.msra.mxu0 0
      %274 = vmatprep.subr.bf16.mxu0 0
      %275 = vmatpush2.bf16.msra.mxu0 0
      %276 = vmatprep.subr.bf16.mxu0 0
      %277 = vmatpush2.bf16.msra.mxu0 0
      %278 = vmatprep.subr.bf16.mxu0 0
      %279 = vmatpush2.bf16.msra.mxu0 0
      %280 = vmatprep.subr.bf16.mxu0 0
      %281 = vmatpush2.bf16.msra.mxu0 0
      %282 = vmatprep.subr.bf16.mxu0 0
      %283 = vmatpush2.bf16.msra.mxu0 0
      %284 = vmatprep.subr.bf16.mxu0 0
      %285 = vmatpush2.bf16.msra.mxu0 0
      %286 = vmatprep.mubr.bf16.mxu0 0
      %287 = vmatmul.mubr.bf16.gmra.mxu0 %v188
      %v288 = vpop.f32.mrf.mxu0
      %v289 = vadd.f32 0.0, %v288
      %v290 = vpop.f32.mrf.mxu0
      %v291 = vpop.f32.mrf.mxu0
      %v292 = vpop.f32.mrf.mxu0
      %293 = vdwg.mxu0
      %v310 = vunpack.c.l.b16 %v171
      %v311 = vunpack.c.l.b16 %v172
      %v312 = vunpack.c.l.b16 %v173
      %v313 = vunpack.c.l.b16 %v174
      %v314 = vunpack.c.l.b16 %v175
      %v315 = vunpack.c.l.b16 %v176
      %v316 = vunpack.c.l.b16 %v177
      %v317 = vunpack.c.l.b16 %v178
      %v318 = vunpack.c.l.b16 %v179
      %v319 = vunpack.c.l.b16 %v180
      %v320 = vunpack.c.l.b16 %v181
      %v321 = vunpack.c.l.b16 %v182
      %v322 = vunpack.c.l.b16 %v183
      %v323 = vunpack.c.l.b16 %v184
      %v324 = vunpack.c.l.b16 %v185
      %v325 = vunpack.c.l.b16 %v186
      %v326 = vpack.c.b16 %v311, %v310
      %v327 = vpack.c.b16 %v313, %v312
      %v328 = vpack.c.b16 %v315, %v314
      %v329 = vpack.c.b16 %v317, %v316
      %v330 = vpack.c.b16 %v319, %v318
      %v331 = vpack.c.b16 %v321, %v320
      %v332 = vpack.c.b16 %v323, %v322
      %v333 = vpack.c.b16 %v325, %v324
      %342 = vmatprep.subr.bf16.mxu0 0
      %343 = vmatpush1.bf16.msra.mxu0 %v333
      %344 = vmatprep.subr.bf16.mxu0 0
      %345 = vmatpush1.bf16.msra.mxu0 %v332
      %346 = vmatprep.subr.bf16.mxu0 0
      %347 = vmatpush1.bf16.msra.mxu0 %v331
      %348 = vmatprep.subr.bf16.mxu0 0
      %349 = vmatpush1.bf16.msra.mxu0 %v330
      %350 = vmatprep.subr.bf16.mxu0 0
      %351 = vmatpush1.bf16.msra.mxu0 %v329
      %352 = vmatprep.subr.bf16.mxu0 0
      %353 = vmatpush1.bf16.msra.mxu0 %v328
      %354 = vmatprep.subr.bf16.mxu0 0
      %355 = vmatpush1.bf16.msra.mxu0 %v327
      %356 = vmatprep.subr.bf16.mxu0 0
      %357 = vmatpush1.bf16.msra.mxu0 %v326
      %358 = vmatprep.subr.bf16.mxu0 0
      %359 = vmatpush2.bf16.msra.mxu0 0
      %360 = vmatprep.subr.bf16.mxu0 0
      %361 = vmatpush2.bf16.msra.mxu0 0
      %362 = vmatprep.subr.bf16.mxu0 0
      %363 = vmatpush2.bf16.msra.mxu0 0
      %364 = vmatprep.subr.bf16.mxu0 0
      %365 = vmatpush2.bf16.msra.mxu0 0
      %366 = vmatprep.subr.bf16.mxu0 0
      %367 = vmatpush2.bf16.msra.mxu0 0
      %368 = vmatprep.subr.bf16.mxu0 0
      %369 = vmatpush2.bf16.msra.mxu0 0
      %370 = vmatprep.subr.bf16.mxu0 0
      %371 = vmatpush2.bf16.msra.mxu0 0
      %372 = vmatprep.subr.bf16.mxu0 0
      %373 = vmatpush2.bf16.msra.mxu0 0
      %374 = vmatprep.mubr.bf16.mxu0 0
      %375 = vmatmul.mubr.bf16.gmra.mxu0 %v170
      %v376 = vpop.f32.mrf.mxu0
      %v377 = vadd.f32 %v289, %v376
      %v378 = vpop.f32.mrf.mxu0
      %v379 = vpop.f32.mrf.mxu0
      %v380 = vpop.f32.mrf.mxu0
      %381 = vdwg.mxu0
      %v382 = vld [vmem:[%s162 + $0x2] sm:$0x3]
      %v383 = vpack.c.bf16 %v382, %v382
      %s384 = scalar_lea.vmem %s1, 128
      %v385 = vld [vmem:[%s384] sm:$0xf]
      %v386 = vld [vmem:[%s384 + $0x4] sm:$0xf]
      %v387 = vld [vmem:[%s384 + $0x8] sm:$0xf]
      %v388 = vld [vmem:[%s384 + $0xc] sm:$0xf]
      %v389 = vld [vmem:[%s384 + $0x10] sm:$0xf]
      %v390 = vld [vmem:[%s384 + $0x14] sm:$0xf]
      %v391 = vld [vmem:[%s384 + $0x18] sm:$0xf]
      %v392 = vld [vmem:[%s384 + $0x1c] sm:$0xf]
      %v393 = vld [vmem:[%s384 + $0x20] sm:$0xf]
      %v394 = vld [vmem:[%s384 + $0x24] sm:$0xf]
      %v395 = vld [vmem:[%s384 + $0x28] sm:$0xf]
      %v396 = vld [vmem:[%s384 + $0x2c] sm:$0xf]
      %v397 = vld [vmem:[%s384 + $0x30] sm:$0xf]
      %v398 = vld [vmem:[%s384 + $0x34] sm:$0xf]
      %v399 = vld [vmem:[%s384 + $0x38] sm:$0xf]
      %v400 = vld [vmem:[%s384 + $0x3c] sm:$0xf]
      %v417 = vunpack.c.l.b16 %v385
      %v418 = vunpack.c.l.b16 %v386
      %v419 = vunpack.c.l.b16 %v387
      %v420 = vunpack.c.l.b16 %v388
      %v421 = vunpack.c.l.b16 %v389
      %v422 = vunpack.c.l.b16 %v390
      %v423 = vunpack.c.l.b16 %v391
      %v424 = vunpack.c.l.b16 %v392
      %v425 = vunpack.c.l.b16 %v393
      %v426 = vunpack.c.l.b16 %v394
      %v427 = vunpack.c.l.b16 %v395
      %v428 = vunpack.c.l.b16 %v396
      %v429 = vunpack.c.l.b16 %v397
      %v430 = vunpack.c.l.b16 %v398
      %v431 = vunpack.c.l.b16 %v399
      %v432 = vunpack.c.l.b16 %v400
      %v433 = vpack.c.b16 %v418, %v417
      %v434 = vpack.c.b16 %v420, %v419
      %v435 = vpack.c.b16 %v422, %v421
      %v436 = vpack.c.b16 %v424, %v423
      %v437 = vpack.c.b16 %v426, %v425
      %v438 = vpack.c.b16 %v428, %v427
      %v439 = vpack.c.b16 %v430, %v429
      %v440 = vpack.c.b16 %v432, %v431
      %449 = vmatprep.subr.bf16.mxu0 0
      %450 = vmatpush1.bf16.msra.mxu0 %v440
      %451 = vmatprep.subr.bf16.mxu0 0
      %452 = vmatpush1.bf16.msra.mxu0 %v439
      %453 = vmatprep.subr.bf16.mxu0 0
      %454 = vmatpush1.bf16.msra.mxu0 %v438
      %455 = vmatprep.subr.bf16.mxu0 0
      %456 = vmatpush1.bf16.msra.mxu0 %v437
      %457 = vmatprep.subr.bf16.mxu0 0
      %458 = vmatpush1.bf16.msra.mxu0 %v436
      %459 = vmatprep.subr.bf16.mxu0 0
      %460 = vmatpush1.bf16.msra.mxu0 %v435
      %461 = vmatprep.subr.bf16.mxu0 0
      %462 = vmatpush1.bf16.msra.mxu0 %v434
      %463 = vmatprep.subr.bf16.mxu0 0
      %464 = vmatpush1.bf16.msra.mxu0 %v433
      %465 = vmatprep.subr.bf16.mxu0 0
      %466 = vmatpush2.bf16.msra.mxu0 0
      %467 = vmatprep.subr.bf16.mxu0 0
      %468 = vmatpush2.bf16.msra.mxu0 0
      %469 = vmatprep.subr.bf16.mxu0 0
      %470 = vmatpush2.bf16.msra.mxu0 0
      %471 = vmatprep.subr.bf16.mxu0 0
      %472 = vmatpush2.bf16.msra.mxu0 0
      %473 = vmatprep.subr.bf16.mxu0 0
      %474 = vmatpush2.bf16.msra.mxu0 0
      %475 = vmatprep.subr.bf16.mxu0 0
      %476 = vmatpush2.bf16.msra.mxu0 0
      %477 = vmatprep.subr.bf16.mxu0 0
      %478 = vmatpush2.bf16.msra.mxu0 0
      %479 = vmatprep.subr.bf16.mxu0 0
      %480 = vmatpush2.bf16.msra.mxu0 0
      %481 = vmatprep.mubr.bf16.mxu0 0
      %482 = vmatmul.mubr.bf16.gmra.mxu0 %v383
      %v483 = vpop.f32.mrf.mxu0
      %v484 = vadd.f32 0.0, %v483
      %v485 = vpop.f32.mrf.mxu0
      %v486 = vpop.f32.mrf.mxu0
      %v487 = vpop.f32.mrf.mxu0
      %488 = vdwg.mxu0
      %v489 = vadd.f32 %v377, %v484
      %v490 = vld [vmem:[%s2] sm:$0x1]
      %v492 = vlaneseq
      %v493 = vshrl.u32 %v492, 7
      %v494 = vsub.s32 0, %v493
      %v495 = vrot.slane %v490, %v494
      %v497 = vadd.f32 %v489, %v495
      %vm498 = vcmp.ge.f32.partialorder %v497, 0.0
      %v499 = vmul.f32 %v497, 0.01
      %v500 = vsel %vm498, %v497, %v499
      %vm501 = vcmask 1042432
      %vm502 = vcmask 522244
      %vm503 = vmor %vm502, %vm501
      %504 = vst.msk [vmem:[%s167] sm:$0x77] %vm503, 0.0
      %v506 = vrot.slane %v500, 1
      %v508 = vmax.f32 %v500, %v506
      %510 = vrot.lane.b32.xlu0 %v508, 64
      %v511 = vpop.permute.xlu0 %510
      %v513 = vmax.f32 %v508, %v511
      %515 = vrot.lane.b32.xlu0 %v513, 64
      %v516 = vpop.permute.xlu0 %515
      %vm518 = vcmask 1040896
      %519 = vst.msk [vmem:[%s167 + $0x1] sm:$0x1] %vm518, %v516
      %p520 = scmp.lt.s32.totalorder %s14, 1
      %s521 = scalar_select %p520, %s14, 1
      %s522 = smul.addr %s521, 2
      %s523 = smul.addr %s522, 4
      %s524 = scalar_lea.vmem %s3, %s523
      // Predicated region
      $region33: #{simclr_forward.8} parent=31 // pred_check
        %p525 = pneg %p100
      $region34: #{simclr_forward.8} parent=31 // pred_check_branch
        %527 = sbr.rel (%p525) target = $region36
      $region35: #{simclr_forward.8} parent=31 // pred_region
        _
      $region36: #{simclr_forward.8} parent=31 // pred_fallthru
        _
    $region32: #{simclr_forward.8} parent=5 // pred_fallthru
      _
    %p528 = scmp.le.s32.totalorder 2, %s9
    // Predicated region
    $region37: #{simclr_forward.8} parent=5 // pred_check
      %p529 = pneg %p528
    $region38: #{simclr_forward.8} parent=5 // pred_check_branch
      %531 = sbr.rel (%p529) target = $region40
    $region39: #{simclr_forward.8} parent=5 // pred_region
      %s532 = ssub.s32 %s9, 2
      // Predicated region
      $region41: #{simclr_forward.8} parent=39 // pred_check
        %p533 = pneg %p106
      $region42: #{simclr_forward.8} parent=39 // pred_check_branch
        %535 = sbr.rel (%p533) target = $region44
      $region43: #{simclr_forward.8} parent=39 // pred_region
        %p536 = scmp.lt.s32.totalorder %s15, 1
        %s537 = scalar_select %p536, %s15, 1
        %s538 = smul.addr %s537, 2
        %s539 = smul.addr %s538, 4
        %s540 = scalar_lea.vmem %s3, %s539
      $region44: #{simclr_forward.8} parent=39 // pred_fallthru
        _
    $region40: #{simclr_forward.8} parent=5 // pred_fallthru
      _
  $region6: #{simclr_forward.8} parent=0 // loop_footer
    %s13 = sadd.s32 1, %s9
  $region7: #{simclr_forward.8} parent=0 // loop_footer_branch
    %8 = sbr.rel target = $region3
  $region8: #{simclr_forward.8} parent=0 // loop_exit
    _

// kernel: simclr_forward.5
$region0: #{simclr_forward.5}
  #allocation0 [shape = 'u32[]', space=smem, size = 0x4, offset = 0x4, fixed_abs, tag = 'smem constant byte address 0x4 - core index']
  #allocation1 [shape = 'u32[144,128]{1,0:T(1,128)}', space=vmem, size = 0x12000, scoped, tag = 'internal scratch']
  %s0 = inlined_call_operand.vmem [shape: f32[2,18,54], index: 0, kind: input, shape index: {}]
  %s1 = inlined_call_operand.vmem [shape: bf16[3,54,128], index: 1, kind: input, shape index: {}]
  %s2 = inlined_call_operand.vmem [shape: f32[1,128], index: 2, kind: input, shape index: {}]
  %s3 = inlined_call_operand.vmem [shape: f32[2,10,80], index: 3, kind: output, shape index: {}]
  %s4 = sld [smem:[#allocation0]]
  $region45: #{simclr_forward.5} parent=0
    _
  %s6 = ssub.s32 1, %s4
  %s7 = scalar_select 0, %s6, %s4
  loop: start=0, step=1, limit=4
  $region2: #{simclr_forward.5} parent=0 // loop_pre_header
    _
  $region3: #{simclr_forward.5} parent=0 // loop_header
    %s9 = sphi 0, %s13
    %p10 = scmp.ge.s32.totalorder %s9, 4
    %s19 = sphi 0, %s21
    %s22 = sphi 0, %s19
    %s23 = sphi 0, %s22
    %s39 = sphi 0, %s23
    %s43 = sphi 0, %s43
    %s45 = sphi 0, %s43
    %s46 = sphi 0, %s45
    %s60 = sphi 0, %s46
    %s64 = sphi 0, %s64
    %s66 = sphi 0, %s64
    %s67 = sphi 0, %s66
    %s81 = sphi 0, %s67
    %s87 = sphi 0, %s89
    %s90 = sphi 0, %s87
    %s91 = sphi 0, %s90
    %s107 = sphi 0, %s91
  $region4: #{simclr_forward.5} parent=0 // loop_header_branch
    %12 = sbr.rel (%p10) target = $region8
  $region5: #{simclr_forward.5} parent=0 // loop_body
    %s14 = ssub.s32 %s9, 1
    %s15 = ssub.s32 %s9, 2
    %s16 = sadd.s32 %s9, 1
    %s17 = ssub.s32 %s9, %s16
    %p18 = scmp.eq.s32.totalorder %s17, 0
    %s20 = sadd.s32 %s19, 1
    %s21 = scalar_select %p18, %s19, %s20
    %p24 = pneg %p18
    %p25 = scmp.eq.s32.totalorder %s9, 1
    %p26 = por %p24, %p25
    %p27 = scmp.ne.s32.totalorder %s19, %s22
    %p28 = scmp.eq.s32.totalorder %s9, 0
    %p29 = por %p27, %p28
    %p30 = scmp.ne.s32.totalorder %s19, %s22
    %p31 = scmp.eq.s32.totalorder %s14, 1
    %p32 = por %p30, %p31
    %p33 = scmp.ne.s32.totalorder %s22, %s23
    %p34 = scmp.eq.s32.totalorder %s14, 0
    %p35 = por %p33, %p34
    %p36 = scmp.ne.s32.totalorder %s22, %s23
    %p37 = scmp.eq.s32.totalorder %s15, 1
    %p38 = por %p36, %p37
    %p40 = scmp.ne.s32.totalorder %s23, %s39
    %p41 = scmp.eq.s32.totalorder %s15, 0
    %p42 = por %p40, %p41
    %s44 = sadd.s32 %s43, 1
    %p47 = scmp.eq.s32.totalorder %s9, 1
    %p48 = scmp.ne.s32.totalorder %s43, %s45
    %p49 = scmp.eq.s32.totalorder %s9, 0
    %p50 = por %p48, %p49
    %p51 = scmp.ne.s32.totalorder %s43, %s45
    %p52 = scmp.eq.s32.totalorder %s14, 1
    %p53 = por %p51, %p52
    %p54 = scmp.ne.s32.totalorder %s45, %s46
    %p55 = scmp.eq.s32.totalorder %s14, 0
    %p56 = por %p54, %p55
    %p57 = scmp.ne.s32.totalorder %s45, %s46
    %p58 = scmp.eq.s32.totalorder %s15, 1
    %p59 = por %p57, %p58
    %p61 = scmp.ne.s32.totalorder %s46, %s60
    %p62 = scmp.eq.s32.totalorder %s15, 0
    %p63 = por %p61, %p62
    %s65 = sadd.s32 %s64, 1
    %p68 = scmp.eq.s32.totalorder %s9, 1
    %p69 = scmp.ne.s32.totalorder %s64, %s66
    %p70 = scmp.eq.s32.totalorder %s9, 0
    %p71 = por %p69, %p70
    %p72 = scmp.ne.s32.totalorder %s64, %s66
    %p73 = scmp.eq.s32.totalorder %s14, 1
    %p74 = por %p72, %p73
    %p75 = scmp.ne.s32.totalorder %s66, %s67
    %p76 = scmp.eq.s32.totalorder %s14, 0
    %p77 = por %p75, %p76
    %p78 = scmp.ne.s32.totalorder %s66, %s67
    %p79 = scmp.eq.s32.totalorder %s15, 1
    %p80 = por %p78, %p79
    %p82 = scmp.ne.s32.totalorder %s67, %s81
    %p83 = scmp.eq.s32.totalorder %s15, 0
    %p84 = por %p82, %p83
    %s85 = ssub.s32 %s9, %s16
    %p86 = scmp.eq.s32.totalorder %s85, 0
    %s88 = sadd.s32 %s87, 1
    %s89 = scalar_select %p86, %s87, %s88
    %p92 = pneg %p86
    %p93 = scmp.eq.s32.totalorder %s9, 1
    %p94 = por %p92, %p93
    %p95 = scmp.ne.s32.totalorder %s87, %s90
    %p96 = scmp.eq.s32.totalorder %s9, 0
    %p97 = por %p95, %p96
    %p98 = scmp.ne.s32.totalorder %s87, %s90
    %p99 = scmp.eq.s32.totalorder %s14, 1
    %p100 = por %p98, %p99
    %p101 = scmp.ne.s32.totalorder %s90, %s91
    %p102 = scmp.eq.s32.totalorder %s14, 0
    %p103 = por %p101, %p102
    %p104 = scmp.ne.s32.totalorder %s90, %s91
    %p105 = scmp.eq.s32.totalorder %s15, 1
    %p106 = por %p104, %p105
    %p108 = scmp.ne.s32.totalorder %s91, %s107
    %p109 = scmp.eq.s32.totalorder %s15, 0
    %p110 = por %p108, %p109
    %p111 = scmp.le.s32.totalorder 1, %s9
    %p112 = scmp.lt.s32.totalorder %s9, 3
    %p113 = pnand %p111, %p112
    %p114 = pneg %p113
    // Predicated region
    $region9: #{simclr_forward.5} parent=5 // pred_check
      _
    $region10: #{simclr_forward.5} parent=5 // pred_check_branch
      %116 = sbr.rel (%p113) target = $region12
    $region11: #{simclr_forward.5} parent=5 // pred_region
      %s117 = ssub.s32 %s9, 1
      // Predicated region
      $region13: #{simclr_forward.5} parent=11 // pred_check
        %p118 = pneg %p56
      $region14: #{simclr_forward.5} parent=11 // pred_check_branch
        %120 = sbr.rel (%p118) target = $region16
      $region15: #{simclr_forward.5} parent=11 // pred_region
        _
      $region16: #{simclr_forward.5} parent=11 // pred_fallthru
        _
      // Predicated region
      $region17: #{simclr_forward.5} parent=11 // pred_check
        %p121 = pneg %p77
      $region18: #{simclr_forward.5} parent=11 // pred_check_branch
        %123 = sbr.rel (%p121) target = $region20
      $region19: #{simclr_forward.5} parent=11 // pred_region
        _
      $region20: #{simclr_forward.5} parent=11 // pred_fallthru
        _
    $region12: #{simclr_forward.5} parent=5 // pred_fallthru
      _
    %p124 = scmp.lt.s32.totalorder %s9, 2
    // Predicated region
    $region21: #{simclr_forward.5} parent=5 // pred_check
      %p125 = pneg %p124
    $region22: #{simclr_forward.5} parent=5 // pred_check_branch
      %127 = sbr.rel (%p125) target = $region24
    $region23: #{simclr_forward.5} parent=5 // pred_region
      // Predicated region
      $region25: #{simclr_forward.5} parent=23 // pred_check
        %p128 = pneg %p29
      $region26: #{simclr_forward.5} parent=23 // pred_check_branch
        %130 = sbr.rel (%p128) target = $region28
      $region27: #{simclr_forward.5} parent=23 // pred_region
        %p131 = scmp.lt.s32.totalorder %s9, 1
        %s132 = scalar_select %p131, %s9, 1
        %s133 = smul.addr %s132, 3
        %s134 = smul.addr %s133, 8
        %s135 = scalar_lea.vmem %s0, %s134
      $region28: #{simclr_forward.5} parent=23 // pred_fallthru
        _
    $region24: #{simclr_forward.5} parent=5 // pred_fallthru
      _
    %p136 = scmp.le.s32.totalorder 1, %s9
    %p137 = scmp.lt.s32.totalorder %s9, 3
    %p138 = pnand %p136, %p137
    %p139 = pneg %p138
    // Predicated region
    $region29: #{simclr_forward.5} parent=5 // pred_check
      _
    $region30: #{simclr_forward.5} parent=5 // pred_check_branch
      %141 = sbr.rel (%p138) target = $region32
    $region31: #{simclr_forward.5} parent=5 // pred_region
      %s142 = ssub.s32 %s9, 1
      %p143 = scmp.lt.s32.totalorder %s14, 1
      %s144 = scalar_select %p143, %s14, 1
      %s145 = smul.addr %s144, 3
      %s146 = smul.addr %s145, 8
      %s147 = scalar_lea.vmem %s0, %s146
      %p148 = pneg %p35
      %p149 = pneg %p32
      %p150 = pneg %p56
      %p151 = pneg %p53
      %p152 = pneg %p77
      %p153 = pneg %p74
      %p154 = pneg %p103
      %p155 = pneg %p100
      %p156 = scmp.lt.s32.totalorder %s14, 1
      %s157 = scalar_select %p156, %s14, 1
      %s158 = smul.addr %s157, 2
      %s159 = smul.addr %s158, 8
      %s160 = scalar_lea.vmem %s3, %s159
      %p161 = scmp.lt.s32.totalorder %s14, 1
      %s162 = scalar_select %p161, %s14, 1
      %s163 = smul.addr %s162, 3
      %s164 = smul.addr %s163, 8
      %s165 = scalar_lea.vmem %s0, %s164
      %p166 = scmp.lt.s32.totalorder %s14, 1
      %s167 = scalar_select %p166, %s14, 1
      %s168 = smul.addr %s167, 2
      %s169 = smul.addr %s168, 8
      %s170 = scalar_lea.vmem %s3, %s169
      %v172 = vld [vmem:[%s165] sm:$0xff]
      %v173 = vld [vmem:[%s165 + $0x8] sm:$0xff]
      %v174 = vpack.c.bf16 %v173, %v172
      %v175 = vld [vmem:[%s1] sm:$0xf]
      %v176 = vld [vmem:[%s1 + $0x4] sm:$0xf]
      %v177 = vld [vmem:[%s1 + $0x8] sm:$0xf]
      %v178 = vld [vmem:[%s1 + $0xc] sm:$0xf]
      %v179 = vld [vmem:[%s1 + $0x10] sm:$0xf]
      %v180 = vld [vmem:[%s1 + $0x14] sm:$0xf]
      %v181 = vld [vmem:[%s1 + $0x18] sm:$0x7]
      %v182 = vld [vmem:[%s165 + $0x1] sm:$0xff]
      %v183 = vld [vmem:[%s165 + $0x9] sm:$0xff]
      %v184 = vpack.c.bf16 %v183, %v182
      %s185 = scalar_lea.vmem %s1, 28
      %v186 = vld [vmem:[%s185] sm:$0xf]
      %v187 = vld [vmem:[%s185 + $0x4] sm:$0xf]
      %v188 = vld [vmem:[%s185 + $0x8] sm:$0xf]
      %v189 = vld [vmem:[%s185 + $0xc] sm:$0xf]
      %v190 = vld [vmem:[%s185 + $0x10] sm:$0xf]
      %v191 = vld [vmem:[%s185 + $0x14] sm:$0xf]
      %v192 = vld [vmem:[%s185 + $0x18] sm:$0x7]
      %v200 = vunpack.c.l.b16 %v186
      %v201 = vunpack.c.l.b16 %v187
      %v202 = vunpack.c.l.b16 %v188
      %v203 = vunpack.c.l.b16 %v189
      %v204 = vunpack.c.l.b16 %v190
      %v205 = vunpack.c.l.b16 %v191
      %v206 = vunpack.c.l.b16 %v192
      %v207 = vpack.c.b16 %v201, %v200
      %v208 = vpack.c.b16 %v203, %v202
      %v209 = vpack.c.b16 %v205, %v204
      %v210 = vpack.c.b16 %v206, %v206
      %vm214 = vcmask 441344
      %v216 = vsel %vm214, %v184, 0
      %vm218 = vcmask 1042432
      %v220 = vsel %vm218, %v210, 0
      %222 = vmatprep.subr.bf16.mxu0 0
      %223 = vmatpush1.bf16.msra.mxu0 0
      %224 = vmatprep.subr.bf16.mxu0 0
      %225 = vmatpush1.bf16.msra.mxu0 0
      %226 = vmatprep.subr.bf16.mxu0 0
      %227 = vmatpush1.bf16.msra.mxu0 0
      %228 = vmatprep.subr.bf16.mxu0 0
      %229 = vmatpush1.bf16.msra.mxu0 0
      %230 = vmatprep.subr.bf16.mxu0 0
      %231 = vmatpush1.bf16.msra.mxu0 %v220
      %232 = vmatprep.subr.bf16.mxu0 0
      %233 = vmatpush1.bf16.msra.mxu0 %v209
      %234 = vmatprep.subr.bf16.mxu0 0
      %235 = vmatpush1.bf16.msra.mxu0 %v208
      %236 = vmatprep.subr.bf16.mxu0 0
      %237 = vmatpush1.bf16.msra.mxu0 %v207
      %238 = vmatprep.subr.bf16.mxu0 0
      %239 = vmatpush2.bf16.msra.mxu0 0
      %240 = vmatprep.subr.bf16.mxu0 0
      %241 = vmatpush2.bf16.msra.mxu0 0
      %242 = vmatprep.subr.bf16.mxu0 0
      %243 = vmatpush2.bf16.msra.mxu0 0
      %244 = vmatprep.subr.bf16.mxu0 0
      %245 = vmatpush2.bf16.msra.mxu0 0
      %246 = vmatprep.subr.bf16.mxu0 0
      %247 = vmatpush2.bf16.msra.mxu0 0
      %248 = vmatprep.subr.bf16.mxu0 0
      %249 = vmatpush2.bf16.msra.mxu0 0
      %250 = vmatprep.subr.bf16.mxu0 0
      %251 = vmatpush2.bf16.msra.mxu0 0
      %252 = vmatprep.subr.bf16.mxu0 0
      %253 = vmatpush2.bf16.msra.mxu0 0
      %254 = vmatprep.mubr.bf16.mxu0 0
      %255 = vmatmul.mubr.bf16.gmra.mxu0 %v216
      %v256 = vpop.f32.mrf.mxu0
      %v257 = vadd.f32 0.0, %v256
      %v258 = vpop.f32.mrf.mxu0
      %v259 = vpop.f32.mrf.mxu0
      %v260 = vadd.f32 0.0, %v259
      %v261 = vpop.f32.mrf.mxu0
      %262 = vdwg.mxu0
      %v270 = vunpack.c.l.b16 %v175
      %v271 = vunpack.c.l.b16 %v176
      %v272 = vunpack.c.l.b16 %v177
      %v273 = vunpack.c.l.b16 %v178
      %v274 = vunpack.c.l.b16 %v179
      %v275 = vunpack.c.l.b16 %v180
      %v276 = vunpack.c.l.b16 %v181
      %v277 = vpack.c.b16 %v271, %v270
      %v278 = vpack.c.b16 %v273, %v272
      %v279 = vpack.c.b16 %v275, %v274
      %v280 = vpack.c.b16 %v276, %v276
      %v285 = vsel %vm214, %v174, 0
      %v288 = vsel %vm218, %v280, 0
      %290 = vmatprep.subr.bf16.mxu0 0
      %291 = vmatpush1.bf16.msra.mxu0 0
      %292 = vmatprep.subr.bf16.mxu0 0
      %293 = vmatpush1.bf16.msra.mxu0 0
      %294 = vmatprep.subr.bf16.mxu0 0
      %295 = vmatpush1.bf16.msra.mxu0 0
      %296 = vmatprep.subr.bf16.mxu0 0
      %297 = vmatpush1.bf16.msra.mxu0 0
      %298 = vmatprep.subr.bf16.mxu0 0
      %299 = vmatpush1.bf16.msra.mxu0 %v288
      %300 = vmatprep.subr.bf16.mxu0 0
      %301 = vmatpush1.bf16.msra.mxu0 %v279
      %302 = vmatprep.subr.bf16.mxu0 0
      %303 = vmatpush1.bf16.msra.mxu0 %v278
      %304 = vmatprep.subr.bf16.mxu0 0
      %305 = vmatpush1.bf16.msra.mxu0 %v277
      %306 = vmatprep.subr.bf16.mxu0 0
      %307 = vmatpush2.bf16.msra.mxu0 0
      %308 = vmatprep.subr.bf16.mxu0 0
      %309 = vmatpush2.bf16.msra.mxu0 0
      %310 = vmatprep.subr.bf16.mxu0 0
      %311 = vmatpush2.bf16.msra.mxu0 0
      %312 = vmatprep.subr.bf16.mxu0 0
      %313 = vmatpush2.bf16.msra.mxu0 0
      %314 = vmatprep.subr.bf16.mxu0 0
      %315 = vmatpush2.bf16.msra.mxu0 0
      %316 = vmatprep.subr.bf16.mxu0 0
      %317 = vmatpush2.bf16.msra.mxu0 0
      %318 = vmatprep.subr.bf16.mxu0 0
      %319 = vmatpush2.bf16.msra.mxu0 0
      %320 = vmatprep.subr.bf16.mxu0 0
      %321 = vmatpush2.bf16.msra.mxu0 0
      %322 = vmatprep.mubr.bf16.mxu0 0
      %323 = vmatmul.mubr.bf16.gmra.mxu0 %v285
      %v324 = vpop.f32.mrf.mxu0
      %v325 = vadd.f32 %v257, %v324
      %v326 = vpop.f32.mrf.mxu0
      %v327 = vpop.f32.mrf.mxu0
      %v328 = vadd.f32 %v260, %v327
      %v329 = vpop.f32.mrf.mxu0
      %330 = vdwg.mxu0
      %v331 = vld [vmem:[%s165 + $0x2] sm:$0xff]
      %v332 = vld [vmem:[%s165 + $0xa] sm:$0xff]
      %v333 = vpack.c.bf16 %v332, %v331
      %s334 = scalar_lea.vmem %s1, 56
      %v335 = vld [vmem:[%s334] sm:$0xf]
      %v336 = vld [vmem:[%s334 + $0x4] sm:$0xf]
      %v337 = vld [vmem:[%s334 + $0x8] sm:$0xf]
      %v338 = vld [vmem:[%s334 + $0xc] sm:$0xf]
      %v339 = vld [vmem:[%s334 + $0x10] sm:$0xf]
      %v340 = vld [vmem:[%s334 + $0x14] sm:$0xf]
      %v341 = vld [vmem:[%s334 + $0x18] sm:$0x7]
      %v349 = vunpack.c.l.b16 %v335
      %v350 = vunpack.c.l.b16 %v336
      %v351 = vunpack.c.l.b16 %v337
      %v352 = vunpack.c.l.b16 %v338
      %v353 = vunpack.c.l.b16 %v339
      %v354 = vunpack.c.l.b16 %v340
      %v355 = vunpack.c.l.b16 %v341
      %v356 = vpack.c.b16 %v350, %v349
      %v357 = vpack.c.b16 %v352, %v351
      %v358 = vpack.c.b16 %v354, %v353
      %v359 = vpack.c.b16 %v355, %v355
      %v364 = vsel %vm214, %v333, 0
      %v367 = vsel %vm218, %v359, 0
      %369 = vmatprep.subr.bf16.mxu0 0
      %370 = vmatpush1.bf16.msra.mxu0 0
      %371 = vmatprep.subr.bf16.mxu0 0
      %372 = vmatpush1.bf16.msra.mxu0 0
      %373 = vmatprep.subr.bf16.mxu0 0
      %374 = vmatpush1.bf16.msra.mxu0 0
      %375 = vmatprep.subr.bf16.mxu0 0
      %376 = vmatpush1.bf16.msra.mxu0 0
      %377 = vmatprep.subr.bf16.mxu0 0
      %378 = vmatpush1.bf16.msra.mxu0 %v367
      %379 = vmatprep.subr.bf16.mxu0 0
      %380 = vmatpush1.bf16.msra.mxu0 %v358
      %381 = vmatprep.subr.bf16.mxu0 0
      %382 = vmatpush1.bf16.msra.mxu0 %v357
      %383 = vmatprep.subr.bf16.mxu0 0
      %384 = vmatpush1.bf16.msra.mxu0 %v356
      %385 = vmatprep.subr.bf16.mxu0 0
      %386 = vmatpush2.bf16.msra.mxu0 0
      %387 = vmatprep.subr.bf16.mxu0 0
      %388 = vmatpush2.bf16.msra.mxu0 0
      %389 = vmatprep.subr.bf16.mxu0 0
      %390 = vmatpush2.bf16.msra.mxu0 0
      %391 = vmatprep.subr.bf16.mxu0 0
      %392 = vmatpush2.bf16.msra.mxu0 0
      %393 = vmatprep.subr.bf16.mxu0 0
      %394 = vmatpush2.bf16.msra.mxu0 0
      %395 = vmatprep.subr.bf16.mxu0 0
      %396 = vmatpush2.bf16.msra.mxu0 0
      %397 = vmatprep.subr.bf16.mxu0 0
      %398 = vmatpush2.bf16.msra.mxu0 0
      %399 = vmatprep.subr.bf16.mxu0 0
      %400 = vmatpush2.bf16.msra.mxu0 0
      %401 = vmatprep.mubr.bf16.mxu0 0
      %402 = vmatmul.mubr.bf16.gmra.mxu0 %v364
      %v403 = vpop.f32.mrf.mxu0
      %v404 = vadd.f32 0.0, %v403
      %v405 = vpop.f32.mrf.mxu0
      %v406 = vpop.f32.mrf.mxu0
      %v407 = vadd.f32 0.0, %v406
      %v408 = vpop.f32.mrf.mxu0
      %409 = vdwg.mxu0
      %v410 = vadd.f32 %v325, %v404
      %v411 = vadd.f32 %v328, %v407
      %v412 = vld [vmem:[%s2] sm:$0x1]
      %v414 = vlaneseq
      %v415 = vshrl.u32 %v414, 7
      %v416 = vsub.s32 0, %v415
      %v417 = vrot.slane %v412, %v416
      %v419 = vadd.f32 %v410, %v417
      %v420 = vadd.f32 %v411, %v417
      %vm421 = vcmp.ge.f32.partialorder %v419, 0.0
      %vm422 = vcmp.ge.f32.partialorder %v420, 0.0
      %v423 = vmul.f32 %v419, 0.01
      %v424 = vmul.f32 %v420, 0.01
      %v425 = vsel %vm421, %v419, %v423
      %v426 = vsel %vm422, %v420, %v424
      %vm427 = vcmask 654336
      %428 = vst.msk [vmem:[%s170] sm:$0xff] %vm427, 0.0
      %vm429 = vcmask 648192
      %430 = vst.msk [vmem:[%s170 + $0x8] sm:$0x3] %vm429, 0.0
      %v432 = vrot.slane %v425, 1
      %v434 = vmax.f32 %v425, %v432
      %436 = vrot.lane.b32.xlu0 %v434, 120
      %v437 = vpop.permute.xlu0 %436
      %v439 = vmax.f32 %v434, %v437
      %441 = vrot.lane.b32.xlu0 %v439, 8
      %v442 = vpop.permute.xlu0 %441
      %vm444 = vcmask 122944
      %445 = vst.msk [vmem:[%s170 + $0x1] sm:$0x1] %vm444, %v442
      %vm446 = vcmask 188544
      %447 = vst.msk [vmem:[%s170 + $0x1] sm:$0x1] %vm446, %v439
      %448 = vrot.lane.b32.xlu0 %v439, 120
      %v449 = vpop.permute.xlu0 %448
      %vm451 = vcmask 254144
      %452 = vst.msk [vmem:[%s170 + $0x1] sm:$0x1] %vm451, %v449
      %453 = vrot.lane.b32.xlu0 %v439, 112
      %v454 = vpop.permute.xlu0 %453
      %vm456 = vcmask 319744
      %457 = vst.msk [vmem:[%s170 + $0x1] sm:$0x1] %vm456, %v454
      %458 = vrot.lane.b32.xlu0 %v439, 104
      %v459 = vpop.permute.xlu0 %458
      %vm461 = vcmask 385344
      %462 = vst.msk [vmem:[%s170 + $0x1] sm:$0x1] %vm461, %v459
      %463 = vrot.lane.b32.xlu0 %v439, 96
      %v464 = vpop.permute.xlu0 %463
      %vm466 = vcmask 450944
      %467 = vst.msk [vmem:[%s170 + $0x1] sm:$0x1] %vm466, %v464
      %468 = vrot.lane.b32.xlu0 %v439, 88
      %v469 = vpop.permute.xlu0 %468
      %vm471 = vcmask 516544
      %472 = vst.msk [vmem:[%s170 + $0x1] sm:$0x1] %vm471, %v469
      %473 = vrot.lane.b32.xlu0 %v439, 80
      %v474 = vpop.permute.xlu0 %473
      %vm476 = vcmask 582144
      %477 = vst.msk [vmem:[%s170 + $0x1] sm:$0x1] %vm476, %v474
      %vm478 = vcmask 124994
      %479 = vst.msk [vmem:[%s170] sm:$0x4] %vm478, %v442
      %vm480 = vcmask 190594
      %481 = vst.msk [vmem:[%s170] sm:$0x4] %vm480, %v439
      %vm482 = vcmask 256194
      %483 = vst.msk [vmem:[%s170] sm:$0x4] %vm482, %v449
      %vm484 = vcmask 321794
      %485 = vst.msk [vmem:[%s170] sm:$0x4] %vm484, %v454
      %vm486 = vcmask 387394
      %487 = vst.msk [vmem:[%s170] sm:$0x4] %vm486, %v459
      %vm488 = vcmask 452994
      %489 = vst.msk [vmem:[%s170] sm:$0x4] %vm488, %v464
      %vm490 = vcmask 518594
      %491 = vst.msk [vmem:[%s170] sm:$0x4] %vm490, %v469
      %vm492 = vcmask 584194
      %493 = vst.msk [vmem:[%s170] sm:$0x4] %vm492, %v474
      %vm494 = vcmask 127044
      %495 = vst.msk [vmem:[%s170 - $0x1] sm:$0x10] %vm494, %v442
      %vm496 = vcmask 192644
      %497 = vst.msk [vmem:[%s170 - $0x1] sm:$0x10] %vm496, %v439
      %vm498 = vcmask 258244
      %499 = vst.msk [vmem:[%s170 - $0x1] sm:$0x10] %vm498, %v449
      %vm500 = vcmask 323844
      %501 = vst.msk [vmem:[%s170 - $0x1] sm:$0x10] %vm500, %v454
      %vm502 = vcmask 389444
      %503 = vst.msk [vmem:[%s170 - $0x1] sm:$0x10] %vm502, %v459
      %vm504 = vcmask 455044
      %505 = vst.msk [vmem:[%s170 - $0x1] sm:$0x10] %vm504, %v464
      %vm506 = vcmask 520644
      %507 = vst.msk [vmem:[%s170 - $0x1] sm:$0x10] %vm506, %v469
      %vm508 = vcmask 586244
      %509 = vst.msk [vmem:[%s170 - $0x1] sm:$0x10] %vm508, %v474
      %vm510 = vcmask 129094
      %511 = vst.msk [vmem:[%s170 - $0x2] sm:$0x40] %vm510, %v442
      %vm512 = vcmask 194694
      %513 = vst.msk [vmem:[%s170 - $0x2] sm:$0x40] %vm512, %v439
      %vm514 = vcmask 260294
      %515 = vst.msk [vmem:[%s170 - $0x2] sm:$0x40] %vm514, %v449
      %vm516 = vcmask 325894
      %517 = vst.msk [vmem:[%s170 - $0x2] sm:$0x40] %vm516, %v454
      %vm518 = vcmask 391494
      %519 = vst.msk [vmem:[%s170 - $0x2] sm:$0x40] %vm518, %v459
      %vm520 = vcmask 457094
      %521 = vst.msk [vmem:[%s170 - $0x2] sm:$0x40] %vm520, %v464
      %vm522 = vcmask 522694
      %523 = vst.msk [vmem:[%s170 - $0x2] sm:$0x40] %vm522, %v469
      %vm524 = vcmask 588294
      %525 = vst.msk [vmem:[%s170 - $0x2] sm:$0x40] %vm524, %v474
      %v527 = vrot.slane %v426, 1
      %v529 = vmax.f32 %v426, %v527
      %531 = vrot.lane.b32.xlu0 %v529, 120
      %v532 = vpop.permute.xlu0 %531
      %v534 = vmax.f32 %v529, %v532
      %536 = vrot.lane.b32.xlu0 %v534, 8
      %v537 = vpop.permute.xlu0 %536
      %539 = vst.msk [vmem:[%s170 + $0x5] sm:$0x1] %vm444, %v537
      %540 = vst.msk [vmem:[%s170 + $0x5] sm:$0x1] %vm446, %v534
      %541 = vrot.lane.b32.xlu0 %v534, 120
      %v542 = vpop.permute.xlu0 %541
      %544 = vst.msk [vmem:[%s170 + $0x5] sm:$0x1] %vm451, %v542
      %545 = vrot.lane.b32.xlu0 %v534, 112
      %v546 = vpop.permute.xlu0 %545
      %548 = vst.msk [vmem:[%s170 + $0x5] sm:$0x1] %vm456, %v546
      %549 = vrot.lane.b32.xlu0 %v534, 104
      %v550 = vpop.permute.xlu0 %549
      %552 = vst.msk [vmem:[%s170 + $0x5] sm:$0x1] %vm461, %v550
      %553 = vrot.lane.b32.xlu0 %v534, 96
      %v554 = vpop.permute.xlu0 %553
      %556 = vst.msk [vmem:[%s170 + $0x5] sm:$0x1] %vm466, %v554
      %557 = vrot.lane.b32.xlu0 %v534, 88
      %v558 = vpop.permute.xlu0 %557
      %560 = vst.msk [vmem:[%s170 + $0x5] sm:$0x1] %vm471, %v558
      %561 = vrot.lane.b32.xlu0 %v534, 80
      %v562 = vpop.permute.xlu0 %561
      %564 = vst.msk [vmem:[%s170 + $0x5] sm:$0x1] %vm476, %v562
      %565 = vst.msk [vmem:[%s170 + $0x4] sm:$0x4] %vm478, %v537
      %566 = vst.msk [vmem:[%s170 + $0x4] sm:$0x4] %vm480, %v534
      %567 = vst.msk [vmem:[%s170 + $0x4] sm:$0x4] %vm482, %v542
      %568 = vst.msk [vmem:[%s170 + $0x4] sm:$0x4] %vm484, %v546
      %569 = vst.msk [vmem:[%s170 + $0x4] sm:$0x4] %vm486, %v550
      %570 = vst.msk [vmem:[%s170 + $0x4] sm:$0x4] %vm488, %v554
      %571 = vst.msk [vmem:[%s170 + $0x4] sm:$0x4] %vm490, %v558
      %572 = vst.msk [vmem:[%s170 + $0x4] sm:$0x4] %vm492, %v562
      %573 = vst.msk [vmem:[%s170 + $0x3] sm:$0x10] %vm494, %v537
      %574 = vst.msk [vmem:[%s170 + $0x3] sm:$0x10] %vm496, %v534
      %575 = vst.msk [vmem:[%s170 + $0x3] sm:$0x10] %vm498, %v542
      %576 = vst.msk [vmem:[%s170 + $0x3] sm:$0x10] %vm500, %v546
      %577 = vst.msk [vmem:[%s170 + $0x3] sm:$0x10] %vm502, %v550
      %578 = vst.msk [vmem:[%s170 + $0x3] sm:$0x10] %vm504, %v554
      %579 = vst.msk [vmem:[%s170 + $0x3] sm:$0x10] %vm506, %v558
      %580 = vst.msk [vmem:[%s170 + $0x3] sm:$0x10] %vm508, %v562
      %581 = vst.msk [vmem:[%s170 + $0x2] sm:$0x40] %vm510, %v537
      %582 = vst.msk [vmem:[%s170 + $0x2] sm:$0x40] %vm512, %v534
      %583 = vst.msk [vmem:[%s170 + $0x2] sm:$0x40] %vm514, %v542
      %584 = vst.msk [vmem:[%s170 + $0x2] sm:$0x40] %vm516, %v546
      %585 = vst.msk [vmem:[%s170 + $0x2] sm:$0x40] %vm518, %v550
      %586 = vst.msk [vmem:[%s170 + $0x2] sm:$0x40] %vm520, %v554
      %587 = vst.msk [vmem:[%s170 + $0x2] sm:$0x40] %vm522, %v558
      %588 = vst.msk [vmem:[%s170 + $0x2] sm:$0x40] %vm524, %v562
      %p589 = scmp.lt.s32.totalorder %s14, 1
      %s590 = scalar_select %p589, %s14, 1
      %s591 = smul.addr %s590, 2
      %s592 = smul.addr %s591, 8
      %s593 = scalar_lea.vmem %s3, %s592
      // Predicated region
      $region33: #{simclr_forward.5} parent=31 // pred_check
        %p594 = pneg %p100
      $region34: #{simclr_forward.5} parent=31 // pred_check_branch
        %596 = sbr.rel (%p594) target = $region36
      $region35: #{simclr_forward.5} parent=31 // pred_region
        _
      $region36: #{simclr_forward.5} parent=31 // pred_fallthru
        _
    $region32: #{simclr_forward.5} parent=5 // pred_fallthru
      _
    %p597 = scmp.le.s32.totalorder 2, %s9
    // Predicated region
    $region37: #{simclr_forward.5} parent=5 // pred_check
      %p598 = pneg %p597
    $region38: #{simclr_forward.5} parent=5 // pred_check_branch
      %600 = sbr.rel (%p598) target = $region40
    $region39: #{simclr_forward.5} parent=5 // pred_region
      %s601 = ssub.s32 %s9, 2
      // Predicated region
      $region41: #{simclr_forward.5} parent=39 // pred_check
        %p602 = pneg %p106
      $region42: #{simclr_forward.5} parent=39 // pred_check_branch
        %604 = sbr.rel (%p602) target = $region44
      $region43: #{simclr_forward.5} parent=39 // pred_region
        %p605 = scmp.lt.s32.totalorder %s15, 1
        %s606 = scalar_select %p605, %s15, 1
        %s607 = smul.addr %s606, 2
        %s608 = smul.addr %s607, 8
        %s609 = scalar_lea.vmem %s3, %s608
      $region44: #{simclr_forward.5} parent=39 // pred_fallthru
        _
    $region40: #{simclr_forward.5} parent=5 // pred_fallthru
      _
  $region6: #{simclr_forward.5} parent=0 // loop_footer
    %s13 = sadd.s32 1, %s9
  $region7: #{simclr_forward.5} parent=0 // loop_footer_branch
    %8 = sbr.rel target = $region3
  $region8: #{simclr_forward.5} parent=0 // loop_exit
    _

// kernel: simclr_forward.9
$region0: #{simclr_forward.9}
  #allocation0 [shape = 'u32[]', space=smem, size = 0x4, offset = 0x4, fixed_abs, tag = 'smem constant byte address 0x4 - core index']
  #allocation1 [shape = 'u32[144,128]{1,0:T(1,128)}', space=vmem, size = 0x12000, scoped, tag = 'internal scratch']
  %s0 = inlined_call_operand.vmem [shape: f32[2,64], index: 0, kind: input, shape index: {}]
  %s1 = inlined_call_operand.vmem [shape: bf16[64,32], index: 1, kind: input, shape index: {}]
  %s2 = inlined_call_operand.vmem [shape: f32[1,32], index: 2, kind: input, shape index: {}]
  %s3 = inlined_call_operand.vmem [shape: bf16[32,32], index: 3, kind: input, shape index: {}]
  %s4 = inlined_call_operand.vmem [shape: f32[1,32], index: 4, kind: input, shape index: {}]
  %s5 = inlined_call_operand.vmem [shape: bf16[32,16], index: 5, kind: input, shape index: {}]
  %s6 = inlined_call_operand.vmem [shape: f32[1,16], index: 6, kind: input, shape index: {}]
  %s7 = inlined_call_operand.hbm [shape: f32[2,32], index: 7, kind: output, shape index: {0}]
  %s8 = inlined_call_operand.hbm [shape: f32[2,16], index: 8, kind: output, shape index: {1}]
  %9 = xla_tuple %s7, %s8
  %s10 = sld [smem:[#allocation0]]
  $region46: #{simclr_forward.9} parent=0
    _
  %s12 = ssub.s32 1, %s10
  %s13 = scalar_select 0, %s12, %s10
  $region1: #{simclr_forward.9} parent=0
    #allocation2 [shape = 'u8[1024]{0}', space=vmem, size = 0x400, scoped, tag = 'output window, operand 0, single buffered']
    #allocation3 [shape = 's32[1]{0}', space=sflag, size = 0x4, scoped, tag = 'scoped memory for simclr_forward.9']
    #allocation4 [shape = 'u8[1024]{0}', space=vmem, size = 0x400, scoped, tag = 'output window, operand 1, single buffered']
    #allocation5 [shape = 's32[1]{0}', space=sflag, size = 0x4, scoped, tag = 'scoped memory for simclr_forward.9']
    %14 = vsyncpa [#allocation3], 0
    %15 = vsyncpa [#allocation5], 0
    // Predicated region
    $region2: #{simclr_forward.9} parent=1 // pred_check
      _
    $region3: #{simclr_forward.9} parent=1 // pred_check_branch
      %17 = sbr.rel (0) target = $region5
    $region4: #{simclr_forward.9} parent=1 // pred_region
      _
    $region5: #{simclr_forward.9} parent=1 // pred_fallthru
      _
    // Predicated region
    $region6: #{simclr_forward.9} parent=1 // pred_check
      _
    $region7: #{simclr_forward.9} parent=1 // pred_check_branch
      %19 = sbr.rel (0) target = $region9
    $region8: #{simclr_forward.9} parent=1 // pred_region
      _
    $region9: #{simclr_forward.9} parent=1 // pred_fallthru
      _
    // Predicated region
    $region10: #{simclr_forward.9} parent=1 // pred_check
      _
    $region11: #{simclr_forward.9} parent=1 // pred_check_branch
      %21 = sbr.rel (0) target = $region13
    $region12: #{simclr_forward.9} parent=1 // pred_region
      _
    $region13: #{simclr_forward.9} parent=1 // pred_fallthru
      _
    // Predicated region
    $region14: #{simclr_forward.9} parent=1 // pred_check
      _
    $region15: #{simclr_forward.9} parent=1 // pred_check_branch
      %23 = sbr.rel (0) target = $region17
    $region16: #{simclr_forward.9} parent=1 // pred_region
      _
    $region17: #{simclr_forward.9} parent=1 // pred_fallthru
      _
    // Predicated region
    $region18: #{simclr_forward.9} parent=1 // pred_check
      _
    $region19: #{simclr_forward.9} parent=1 // pred_check_branch
      %25 = sbr.rel (0) target = $region21
    $region20: #{simclr_forward.9} parent=1 // pred_region
      _
    $region21: #{simclr_forward.9} parent=1 // pred_fallthru
      _
    // Predicated region
    $region22: #{simclr_forward.9} parent=1 // pred_check
      _
    $region23: #{simclr_forward.9} parent=1 // pred_check_branch
      %27 = sbr.rel (0) target = $region25
    $region24: #{simclr_forward.9} parent=1 // pred_region
      _
    $region25: #{simclr_forward.9} parent=1 // pred_fallthru
      _
    // Predicated region
    $region26: #{simclr_forward.9} parent=1 // pred_check
      _
    $region27: #{simclr_forward.9} parent=1 // pred_check_branch
      %29 = sbr.rel (0) target = $region29
    $region28: #{simclr_forward.9} parent=1 // pred_region
      _
    $region29: #{simclr_forward.9} parent=1 // pred_fallthru
      _
    %v31 = vld [vmem:[%s0] sm:$0x3]
    %v32 = vpack.c.bf16 %v31, %v31
    %v33 = vld [vmem:[%s1] sm:$0xf]
    %v34 = vld [vmem:[%s1 + $0x4] sm:$0xf]
    %v35 = vld [vmem:[%s1 + $0x8] sm:$0xf]
    %v36 = vld [vmem:[%s1 + $0xc] sm:$0xf]
    %v37 = vld [vmem:[%s1 + $0x10] sm:$0xf]
    %v38 = vld [vmem:[%s1 + $0x14] sm:$0xf]
    %v39 = vld [vmem:[%s1 + $0x18] sm:$0xf]
    %v40 = vld [vmem:[%s1 + $0x1c] sm:$0xf]
    %v41 = vld [vmem:[%s2] sm:$0x1]
    %v43 = vlaneseq
    %v44 = vshrl.u32 %v43, 7
    %v45 = vsub.s32 0, %v44
    %v46 = vrot.slane %v41, %v45
    %v56 = vunpack.c.l.b16 %v33
    %v57 = vunpack.c.l.b16 %v34
    %v58 = vunpack.c.l.b16 %v35
    %v59 = vunpack.c.l.b16 %v36
    %v60 = vunpack.c.l.b16 %v37
    %v61 = vunpack.c.l.b16 %v38
    %v62 = vunpack.c.l.b16 %v39
    %v63 = vunpack.c.l.b16 %v40
    %v64 = vpack.c.b16 %v57, %v56
    %v65 = vpack.c.b16 %v59, %v58
    %v66 = vpack.c.b16 %v61, %v60
    %v67 = vpack.c.b16 %v63, %v62
    %vm72 = vcmask 523264
    %v74 = vsel %vm72, %v32, 0
    %76 = vmatprep.subr.bf16.mxu0 0
    %77 = vmatpush1.bf16.msra.mxu0 0
    %78 = vmatprep.subr.bf16.mxu0 0
    %79 = vmatpush1.bf16.msra.mxu0 0
    %80 = vmatprep.subr.bf16.mxu0 0
    %81 = vmatpush1.bf16.msra.mxu0 0
    %82 = vmatprep.subr.bf16.mxu0 0
    %83 = vmatpush1.bf16.msra.mxu0 0
    %84 = vmatprep.subr.bf16.mxu0 0
    %85 = vmatpush1.bf16.msra.mxu0 %v67
    %86 = vmatprep.subr.bf16.mxu0 0
    %87 = vmatpush1.bf16.msra.mxu0 %v66
    %88 = vmatprep.subr.bf16.mxu0 0
    %89 = vmatpush1.bf16.msra.mxu0 %v65
    %90 = vmatprep.subr.bf16.mxu0 0
    %91 = vmatpush1.bf16.msra.mxu0 %v64
    %92 = vmatprep.subr.bf16.mxu0 0
    %93 = vmatpush2.bf16.msra.mxu0 0
    %94 = vmatprep.subr.bf16.mxu0 0
    %95 = vmatpush2.bf16.msra.mxu0 0
    %96 = vmatprep.subr.bf16.mxu0 0
    %97 = vmatpush2.bf16.msra.mxu0 0
    %98 = vmatprep.subr.bf16.mxu0 0
    %99 = vmatpush2.bf16.msra.mxu0 0
    %100 = vmatprep.subr.bf16.mxu0 0
    %101 = vmatpush2.bf16.msra.mxu0 0
    %102 = vmatprep.subr.bf16.mxu0 0
    %103 = vmatpush2.bf16.msra.mxu0 0
    %104 = vmatprep.subr.bf16.mxu0 0
    %105 = vmatpush2.bf16.msra.mxu0 0
    %106 = vmatprep.subr.bf16.mxu0 0
    %107 = vmatpush2.bf16.msra.mxu0 0
    %108 = vmatprep.mubr.bf16.mxu0 0
    %109 = vmatmul.mubr.bf16.gmra.mxu0 %v74
    %v110 = vpop.f32.mrf.mxu0
    %v111 = vadd.f32 %v46, %v110
    %v112 = vpop.f32.mrf.mxu0
    %v113 = vpop.f32.mrf.mxu0
    %v114 = vpop.f32.mrf.mxu0
    %115 = vdwg.mxu0
    %v116 = vmul.f32 %v111, %v111
    %vm117 = vcmask 254976
    %v118 = vsel %vm117, %v116, 0.0
    %119 = vadd.xlane.f32.xlu0 %v118
    %v120 = vpop.xlane.xlu0 %119
    %v121 = vmax.f32 %v120, 1e-24
    %v122 = vrsqrt.pop %v121
    %v123 = vmul.f32 %v111, %v122
    %124 = vst.msk [vmem:[#allocation2] sm:$0x3] %vm117, %v123
    %v125 = vpack.c.bf16 %v123, %v123
    %v126 = vld [vmem:[%s3] sm:$0xf]
    %v127 = vld [vmem:[%s3 + $0x4] sm:$0xf]
    %v128 = vld [vmem:[%s3 + $0x8] sm:$0xf]
    %v129 = vld [vmem:[%s3 + $0xc] sm:$0xf]
    %v130 = vld [vmem:[%s4] sm:$0x1]
    %v132 = vlaneseq
    %v133 = vshrl.u32 %v132, 7
    %v134 = vsub.s32 0, %v133
    %v135 = vrot.slane %v130, %v134
    %v141 = vunpack.c.l.b16 %v126
    %v142 = vunpack.c.l.b16 %v127
    %v143 = vunpack.c.l.b16 %v128
    %v144 = vunpack.c.l.b16 %v129
    %v145 = vpack.c.b16 %v142, %v141
    %v146 = vpack.c.b16 %v144, %v143
    %vm149 = vcmask 261120
    %v151 = vsel %vm149, %v125, 0
    %153 = vmatprep.subr.bf16.mxu0 0
    %154 = vmatpush1.bf16.msra.mxu0 0
    %155 = vmatprep.subr.bf16.mxu0 0
    %156 = vmatpush1.bf16.msra.mxu0 0
    %157 = vmatprep.subr.bf16.mxu0 0
    %158 = vmatpush1.bf16.msra.mxu0 0
    %159 = vmatprep.subr.bf16.mxu0 0
    %160 = vmatpush1.bf16.msra.mxu0 0
    %161 = vmatprep.subr.bf16.mxu0 0
    %162 = vmatpush1.bf16.msra.mxu0 0
    %163 = vmatprep.subr.bf16.mxu0 0
    %164 = vmatpush1.bf16.msra.mxu0 0
    %165 = vmatprep.subr.bf16.mxu0 0
    %166 = vmatpush1.bf16.msra.mxu0 %v146
    %167 = vmatprep.subr.bf16.mxu0 0
    %168 = vmatpush1.bf16.msra.mxu0 %v145
    %169 = vmatprep.subr.bf16.mxu0 0
    %170 = vmatpush2.bf16.msra.mxu0 0
    %171 = vmatprep.subr.bf16.mxu0 0
    %172 = vmatpush2.bf16.msra.mxu0 0
    %173 = vmatprep.subr.bf16.mxu0 0
    %174 = vmatpush2.bf16.msra.mxu0 0
    %175 = vmatprep.subr.bf16.mxu0 0
    %176 = vmatpush2.bf16.msra.mxu0 0
    %177 = vmatprep.subr.bf16.mxu0 0
    %178 = vmatpush2.bf16.msra.mxu0 0
    %179 = vmatprep.subr.bf16.mxu0 0
    %180 = vmatpush2.bf16.msra.mxu0 0
    %181 = vmatprep.subr.bf16.mxu0 0
    %182 = vmatpush2.bf16.msra.mxu0 0
    %183 = vmatprep.subr.bf16.mxu0 0
    %184 = vmatpush2.bf16.msra.mxu0 0
    %185 = vmatprep.mubr.bf16.mxu0 0
    %186 = vmatmul.mubr.bf16.gmra.mxu0 %v151
    %v187 = vpop.f32.mrf.mxu0
    %v188 = vadd.f32 %v135, %v187
    %v189 = vpop.f32.mrf.mxu0
    %v190 = vpop.f32.mrf.mxu0
    %v191 = vpop.f32.mrf.mxu0
    %192 = vdwg.mxu0
    %v193 = vmax.f32 %v188, 0.0
    %v194 = vpack.c.bf16 %v193, %v193
    %v195 = vld [vmem:[%s5] sm:$0xf]
    %v196 = vld [vmem:[%s5 + $0x4] sm:$0xf]
    %v197 = vld [vmem:[%s5 + $0x8] sm:$0xf]
    %v198 = vld [vmem:[%s5 + $0xc] sm:$0xf]
    %v199 = vld [vmem:[%s6] sm:$0x1]
    %v201 = vlaneseq
    %v202 = vshrl.u32 %v201, 7
    %v203 = vsub.s32 0, %v202
    %v204 = vrot.slane %v199, %v203
    %v210 = vunpack.c.l.b16 %v195
    %v211 = vunpack.c.l.b16 %v196
    %v212 = vunpack.c.l.b16 %v197
    %v213 = vunpack.c.l.b16 %v198
    %v214 = vpack.c.b16 %v211, %v210
    %v215 = vpack.c.b16 %v213, %v212
    %v219 = vsel %vm149, %v194, 0
    %221 = vmatprep.subr.bf16.mxu0 0
    %222 = vmatpush1.bf16.msra.mxu0 0
    %223 = vmatprep.subr.bf16.mxu0 0
    %224 = vmatpush1.bf16.msra.mxu0 0
    %225 = vmatprep.subr.bf16.mxu0 0
    %226 = vmatpush1.bf16.msra.mxu0 0
    %227 = vmatprep.subr.bf16.mxu0 0
    %228 = vmatpush1.bf16.msra.mxu0 0
    %229 = vmatprep.subr.bf16.mxu0 0
    %230 = vmatpush1.bf16.msra.mxu0 0
    %231 = vmatprep.subr.bf16.mxu0 0
    %232 = vmatpush1.bf16.msra.mxu0 0
    %233 = vmatprep.subr.bf16.mxu0 0
    %234 = vmatpush1.bf16.msra.mxu0 %v215
    %235 = vmatprep.subr.bf16.mxu0 0
    %236 = vmatpush1.bf16.msra.mxu0 %v214
    %237 = vmatprep.subr.bf16.mxu0 0
    %238 = vmatpush2.bf16.msra.mxu0 0
    %239 = vmatprep.subr.bf16.mxu0 0
    %240 = vmatpush2.bf16.msra.mxu0 0
    %241 = vmatprep.subr.bf16.mxu0 0
    %242 = vmatpush2.bf16.msra.mxu0 0
    %243 = vmatprep.subr.bf16.mxu0 0
    %244 = vmatpush2.bf16.msra.mxu0 0
    %245 = vmatprep.subr.bf16.mxu0 0
    %246 = vmatpush2.bf16.msra.mxu0 0
    %247 = vmatprep.subr.bf16.mxu0 0
    %248 = vmatpush2.bf16.msra.mxu0 0
    %249 = vmatprep.subr.bf16.mxu0 0
    %250 = vmatpush2.bf16.msra.mxu0 0
    %251 = vmatprep.subr.bf16.mxu0 0
    %252 = vmatpush2.bf16.msra.mxu0 0
    %253 = vmatprep.mubr.bf16.mxu0 0
    %254 = vmatmul.mubr.bf16.gmra.mxu0 %v219
    %v255 = vpop.f32.mrf.mxu0
    %v256 = vadd.f32 %v204, %v255
    %v257 = vpop.f32.mrf.mxu0
    %v258 = vpop.f32.mrf.mxu0
    %v259 = vpop.f32.mrf.mxu0
    %260 = vdwg.mxu0
    %vm261 = vcmask 123904
    %262 = vst.msk [vmem:[#allocation4] sm:$0x3] %vm261, %v256
    // Predicated region
    $region30: #{simclr_forward.9} parent=1 // pred_check
      _
    $region31: #{simclr_forward.9} parent=1 // pred_check_branch
      %264 = sbr.rel (0) target = $region33
    $region32: #{simclr_forward.9} parent=1 // pred_region
      %s266 = ssub.s32 32, 32
      %267 = vsyncadd [#allocation3], %s266
      %s269 = sshll.u32 [#allocation2], 4
      %s270 = int_to_ptr.vmem [resolvable:$true] %s269
      %272 = dma.vmem_to_hbm [thread:$0]  %s270, 32, %s7, [#allocation3]
    $region33: #{simclr_forward.9} parent=1 // pred_fallthru
      _
    // Predicated region
    $region34: #{simclr_forward.9} parent=1 // pred_check
      _
    $region35: #{simclr_forward.9} parent=1 // pred_check_branch
      %274 = sbr.rel (0) target = $region37
    $region36: #{simclr_forward.9} parent=1 // pred_region
      %s276 = ssub.s32 32, 32
      %277 = vsyncadd [#allocation5], %s276
      %s279 = sshll.u32 [#allocation4], 4
      %s280 = int_to_ptr.vmem [resolvable:$true] %s279
      %282 = dma.vmem_to_hbm [thread:$0]  %s280, 32, %s8, [#allocation5]
    $region37: #{simclr_forward.9} parent=1 // pred_fallthru
      _
    // Predicated region
    $region38: #{simclr_forward.9} parent=1 // pred_check
      _
    $region39: #{simclr_forward.9} parent=1 // pred_check_branch
      %284 = sbr.rel (0) target = $region41
    $region40: #{simclr_forward.9} parent=1 // pred_region
      %285 = dma.done [#allocation3], 32
    $region41: #{simclr_forward.9} parent=1 // pred_fallthru
      _
    // Predicated region
    $region42: #{simclr_forward.9} parent=1 // pred_check
      _
    $region43: #{simclr_forward.9} parent=1 // pred_check_branch
      %287 = sbr.rel (0) target = $region45
    $region44: #{simclr_forward.9} parent=1 // pred_region
      %288 = dma.done [#allocation5], 32
    $region45: #{simclr_forward.9} parent=1 // pred_fallthru
      _
    %289 = vsyncpa [#allocation3], 1
    %290 = vsyncpa [#allocation5], 1

</llo_original>
